<compile_context>
chip_gen: v7x
topology: tpu7x:2x2x1
jax: 0.10.0
libtpu: 0.0.40
codegen_flags: <defaults>
</compile_context>

<pallas_src>
import functools

import jax
import jax.numpy as jnp
from jax.experimental import pallas as pl
from jax.experimental.pallas import tpu as pltpu


COMPUTE_DTYPE = jnp.bfloat16    # MXU operand dtype (accumulation stays f32)
ACT_DTYPE = jnp.bfloat16        # inter-layer activation storage dtype

_MOSAIC_PARAMS = pltpu.CompilerParams(
    dimension_semantics=("parallel",),          # batch blocks are independent
    vmem_limit_bytes=32 * 1024 * 1024,          # fits v7x scoped default too
)


def _batch_block(n, p, target_rows=256):
    """Largest divisor B of n such that B*p does not exceed ~target_rows.

    Fills the 256-row MXU (v6e/v7x) for the small-spatial layers while keeping
    per-step blocks bounded (<= target_rows * K rows of bf16)."""
    want = max(1, target_rows // p)
    best = 1
    for b in range(1, n + 1):
        if n % b == 0 and b <= want:
            best = b
    return best


# ----------------------------------------------------------------------------
# Pallas kernels
# ----------------------------------------------------------------------------
def _conv_lrelu_kernel(p_ref, w_ref, o_ref, *, bb, slope):
    """B samples:  out = LeakyReLU(patches @ w)   (bf16 operands, f32 acc)."""
    P, K = p_ref.shape[1], p_ref.shape[2]
    p = p_ref[...].reshape(bb * P, K)                       # leading-dim merge
    acc = jnp.dot(p, w_ref[...], preferred_element_type=jnp.float32)
    y = jnp.where(acc > 0, acc, slope * acc)
    o_ref[...] = y.reshape(bb, P, -1).astype(o_ref.dtype)


def _gn_lrelu(x, sc_ref, ga_ref, gamma, beta, *, cg, eps, slope):
    """GroupNorm (two-pass, centered variance) + LeakyReLU on x: (B, P, C) f32.

    Group reduce/broadcast is a factored (C,G)x(G,C) matmul pair (the gather
    matrix carries the 1/(P*cg) scale); skipped entirely when cg == 1.
    """
    _, P, _ = x.shape
    csum = jnp.sum(x, axis=1)                               # (B, C)
    if cg == 1:                                             # static branch
        mean_c = csum * (1.0 / P)
    else:
        mean_c = jnp.dot(
            jnp.dot(csum, sc_ref[...], preferred_element_type=jnp.float32),
            ga_ref[...], preferred_element_type=jnp.float32)
    d = x - mean_c[:, None, :]
    dsq = jnp.sum(d * d, axis=1)                            # (B, C)
    if cg == 1:
        var_c = dsq * (1.0 / P)
    else:
        var_c = jnp.dot(
            jnp.dot(dsq, sc_ref[...], preferred_element_type=jnp.float32),
            ga_ref[...], preferred_element_type=jnp.float32)
    inv = jax.lax.rsqrt(var_c + eps)                        # (B, C)
    y = d * inv[:, None, :] * gamma + beta                  # gamma/beta: (1, C)
    return jnp.where(y > 0, y, slope * y)


def _conv_gn_lrelu_kernel(p_ref, w_ref, sc_ref, ga_ref, g_ref, b_ref, o_ref, *,
                          bb, cg, eps, slope):
    """B samples:  out = LeakyReLU(GroupNorm(patches @ w))  (fused epilogue)."""
    P, K = p_ref.shape[1], p_ref.shape[2]
    p = p_ref[...].reshape(bb * P, K)
    acc = jnp.dot(p, w_ref[...], preferred_element_type=jnp.float32)
    y = _gn_lrelu(acc.reshape(bb, P, -1), sc_ref, ga_ref,
                  g_ref[...], b_ref[...], cg=cg, eps=eps, slope=slope)
    o_ref[...] = y.astype(o_ref.dtype)


def _conv_gn_lrelu_head_kernel(p_ref, w_ref, sc_ref, ga_ref, g_ref, b_ref,
                               w5_ref, o_ref, *, bb, cg, eps, slope):
    """B samples: conv4 + GroupNorm + LeakyReLU + conv5(4x4 valid) + Sigmoid.

    conv5 over a 4x4 map collapses to a per-sample full dot: sum(y * w5_slab).
    """
    P, K = p_ref.shape[1], p_ref.shape[2]
    p = p_ref[...].reshape(bb * P, K)
    acc = jnp.dot(p, w_ref[...], preferred_element_type=jnp.float32)
    y = _gn_lrelu(acc.reshape(bb, P, -1), sc_ref, ga_ref,
                  g_ref[...], b_ref[...], cg=cg, eps=eps, slope=slope)
    prod = y * w5_ref[...]                                  # (B, 16, C) f32
    t = jnp.sum(prod, axis=2, keepdims=True)                # lane reduce
    logit = jnp.sum(t, axis=1, keepdims=True)               # (B, 1, 1)
    # Sigmoid via EUP exp + approximate EUP reciprocal (no VPU divide).
    o_ref[...] = pl.reciprocal(1.0 + jnp.exp(-logit), approx=True)


# ----------------------------------------------------------------------------
# Pallas wrappers
# ----------------------------------------------------------------------------
def _group_mats(C, groups, spatial):
    """Factored group averaging: scatter (C,G) 0/1 and gather (G,C) scaled."""
    cg = C // groups
    gid = jnp.arange(C) // cg
    scatter = (gid[:, None] == jnp.arange(groups)[None, :]).astype(jnp.float32)
    gather = (jnp.arange(groups)[:, None] == gid[None, :]).astype(jnp.float32)
    return scatter, gather / float(spatial * cg)


def conv_lrelu(patches, w_mat, *, slope=0.2):
    """patches: (N, P, K) bf16, w_mat: (K, C) -> (N, P, C) bf16."""
    N, P, K = patches.shape
    C = w_mat.shape[1]
    B = _batch_block(N, P)
    return pl.pallas_call(
        functools.partial(_conv_lrelu_kernel, bb=B, slope=slope),
        out_shape=jax.ShapeDtypeStruct((N, P, C), ACT_DTYPE),
        grid_spec=pltpu.PrefetchScalarGridSpec(
            num_scalar_prefetch=0,
            grid=(N // B,),
            in_specs=[pl.BlockSpec((B, P, K), lambda n: (n, 0, 0)),
                      pl.BlockSpec((K, C), lambda n: (0, 0))],
            out_specs=pl.BlockSpec((B, P, C), lambda n: (n, 0, 0))),
        compiler_params=_MOSAIC_PARAMS,
    )(patches.astype(COMPUTE_DTYPE), w_mat.astype(COMPUTE_DTYPE))


def conv_gn_lrelu(patches, w_mat, gamma, beta, groups, *, eps=1e-5, slope=0.2):
    """Fused conv + GroupNorm + LeakyReLU, gridded over batch blocks."""
    N, P, K = patches.shape
    C = w_mat.shape[1]
    cg = C // groups
    B = _batch_block(N, P)
    scatter, gather = _group_mats(C, groups, P)
    return pl.pallas_call(
        functools.partial(_conv_gn_lrelu_kernel, bb=B, cg=cg, eps=eps,
                          slope=slope),
        out_shape=jax.ShapeDtypeStruct((N, P, C), ACT_DTYPE),
        grid_spec=pltpu.PrefetchScalarGridSpec(
            num_scalar_prefetch=0,
            grid=(N // B,),
            in_specs=[pl.BlockSpec((B, P, K), lambda n: (n, 0, 0)),
                      pl.BlockSpec((K, C), lambda n: (0, 0)),
                      pl.BlockSpec((C, groups), lambda n: (0, 0)),
                      pl.BlockSpec((groups, C), lambda n: (0, 0)),
                      pl.BlockSpec((1, C), lambda n: (0, 0)),
                      pl.BlockSpec((1, C), lambda n: (0, 0))],
            out_specs=pl.BlockSpec((B, P, C), lambda n: (n, 0, 0))),
        compiler_params=_MOSAIC_PARAMS,
    )(patches.astype(COMPUTE_DTYPE), w_mat.astype(COMPUTE_DTYPE),
      scatter, gather, gamma.reshape(1, C), beta.reshape(1, C))


def conv_gn_lrelu_head(patches, w_mat, gamma, beta, groups, w5_slab, *,
                       eps=1e-5, slope=0.2):
    """Fused conv4 + GroupNorm + LeakyReLU + conv5 + Sigmoid -> (N,) f32."""
    N, P, K = patches.shape
    C = w_mat.shape[1]
    cg = C // groups
    B = _batch_block(N, P)
    scatter, gather = _group_mats(C, groups, P)
    out = pl.pallas_call(
        functools.partial(_conv_gn_lrelu_head_kernel, bb=B, cg=cg, eps=eps,
                          slope=slope),
        out_shape=jax.ShapeDtypeStruct((N, 1, 1), jnp.float32),
        grid_spec=pltpu.PrefetchScalarGridSpec(
            num_scalar_prefetch=0,
            grid=(N // B,),
            in_specs=[pl.BlockSpec((B, P, K), lambda n: (n, 0, 0)),
                      pl.BlockSpec((K, C), lambda n: (0, 0)),
                      pl.BlockSpec((C, groups), lambda n: (0, 0)),
                      pl.BlockSpec((groups, C), lambda n: (0, 0)),
                      pl.BlockSpec((1, C), lambda n: (0, 0)),
                      pl.BlockSpec((1, C), lambda n: (0, 0)),
                      pl.BlockSpec((P, C), lambda n: (0, 0))],
            out_specs=pl.BlockSpec((B, 1, 1), lambda n: (n, 0, 0))),
        compiler_params=_MOSAIC_PARAMS,
    )(patches.astype(COMPUTE_DTYPE), w_mat.astype(COMPUTE_DTYPE),
      scatter, gather, gamma.reshape(1, C), beta.reshape(1, C),
      w5_slab.astype(jnp.float32))
    return out.reshape(-1)


# ----------------------------------------------------------------------------
# Conv glue: im2col + weight layout conversion (plain JAX, no compute)
# TODO(synk): patch extraction (4x4 stride-2 windowing) stays as JAX glue; an
# in-kernel build needs stride-2 sublane reads + minor-dim reshapes with no
# guaranteed Mosaic lowering, so the patch tensors are emitted in bf16 instead
# (halves the inflated-patch HBM traffic).
# ----------------------------------------------------------------------------
def _im2col(x, k, stride, pad):
    """x NHWC -> (N, Ho*Wo, k*k*C), patch features ordered (dy, dx, c)."""
    N, H, W, C = x.shape
    if pad > 0:
        x = jnp.pad(x, ((0, 0), (pad, pad), (pad, pad), (0, 0)))
    Hp, Wp = H + 2 * pad, W + 2 * pad
    Ho = (Hp - k) // stride + 1
    Wo = (Wp - k) // stride + 1
    cols = []
    for dy in range(k):
        for dx in range(k):
            cols.append(x[:, dy:dy + stride * Ho:stride,
                          dx:dx + stride * Wo:stride, :])
    patches = jnp.concatenate(cols, axis=-1)                # (N, Ho, Wo, kkC)
    return patches.reshape(N, Ho * Wo, k * k * C), (Ho, Wo)


def _w_matrix(w_oihw):
    """OIHW -> (KH*KW*Cin, Cout) matching the (dy, dx, c) patch ordering."""
    cout, cin, kh, kw = w_oihw.shape
    return jnp.transpose(w_oihw, (2, 3, 1, 0)).reshape(kh * kw * cin, cout)


# ----------------------------------------------------------------------------
# Discriminator forward (matches nn.Sequential in the PyTorch module)
# ----------------------------------------------------------------------------
def discriminator_forward(x_nchw, params, ndf):
    # NCHW -> NHWC, bf16 once up front (same rounding as casting each conv
    # input to bf16; accumulation and all epilogues stay f32 in-kernel).
    x = jnp.transpose(x_nchw, (0, 2, 3, 1)).astype(COMPUTE_DTYPE)
    N, H, W, C = x.shape

    # layer 1: conv(nc->ndf, 4,2,1) + LeakyReLU.  Pad Cin 3 -> 8 so the im2col
    # contraction dim is 128 (lane aligned); padded channels are zero.
    cpad = (-C) % 8
    x_p = jnp.pad(x, ((0, 0), (0, 0), (0, 0), (0, cpad)))
    w1 = jnp.pad(params["w1"], ((0, 0), (0, cpad), (0, 0), (0, 0)))
    patches, (Ho, Wo) = _im2col(x_p, 4, 2, 1)
    h = conv_lrelu(patches, _w_matrix(w1)).reshape(N, Ho, Wo, -1)

    # layer 2: conv + GroupNorm + LeakyReLU (fused)
    patches, (Ho, Wo) = _im2col(h, 4, 2, 1)
    h = conv_gn_lrelu(patches, _w_matrix(params["w2"]), params["g2"],
                      params["b2"], min(32, ndf * 2)).reshape(N, Ho, Wo, -1)

    # layer 3: conv + GroupNorm + LeakyReLU (fused, batch-blocked)
    patches, (Ho, Wo) = _im2col(h, 4, 2, 1)
    h = conv_gn_lrelu(patches, _w_matrix(params["w3"]), params["g3"],
                      params["b3"], min(32, ndf * 4)).reshape(N, Ho, Wo, -1)

    # layers 4+5: conv + GroupNorm + LeakyReLU + conv5(4x4 valid) + Sigmoid
    patches, (Ho, Wo) = _im2col(h, 4, 2, 1)                 # (N, 16, 16*4*ndf)
    # w5 as (spatial = oy*Wo+ox, Cin) slab matching conv4's output row layout.
    w5_slab = jnp.transpose(params["w5"][0], (1, 2, 0)).reshape(Ho * Wo, -1)
    out = conv_gn_lrelu_head(patches, _w_matrix(params["w4"]), params["g4"],
                             params["b4"], min(32, ndf * 8), w5_slab)
    return out                                  # (N,)  == .view(-1,1).squeeze(1)


# ----------------------------------------------------------------------------
# Pure-JAX reference for verification.  matmul_dtype=bf16 reproduces the
# kernel's operand rounding (f32 accumulation via preferred_element_type);
# matmul_dtype=f32 is the exact PyTorch-equivalent path.
# ----------------------------------------------------------------------------
def reference_forward(x_nchw, params, ndf, matmul_dtype=jnp.float32):
    x = jnp.transpose(x_nchw, (0, 2, 3, 1))

    def conv(h, w, s, p, dt):
        w_hwio = jnp.transpose(w, (2, 3, 1, 0))
        return jax.lax.conv_general_dilated(
            h.astype(dt), w_hwio.astype(dt), (s, s), [(p, p), (p, p)],
            dimension_numbers=("NHWC", "HWIO", "NHWC"),
            preferred_element_type=jnp.float32)

    def gn(x, gamma, beta, groups, eps=1e-5):
        N, H, W, C = x.shape
        cg = C // groups
        xr = x.reshape(N, H, W, groups, cg)
        mean = xr.mean(axis=(1, 2, 4), keepdims=True)
        var = ((xr - mean) ** 2).mean(axis=(1, 2, 4), keepdims=True)
        y = ((xr - mean) / jnp.sqrt(var + eps)).reshape(N, H, W, C)
        return y * gamma.reshape(1, 1, 1, C) + beta.reshape(1, 1, 1, C)

    lrelu = lambda t: jnp.where(t > 0, t, 0.2 * t)
    h = lrelu(conv(x, params["w1"], 2, 1, matmul_dtype))
    h = lrelu(gn(conv(h, params["w2"], 2, 1, matmul_dtype), params["g2"],
                 params["b2"], min(32, ndf * 2)))
    h = lrelu(gn(conv(h, params["w3"], 2, 1, matmul_dtype), params["g3"],
                 params["b3"], min(32, ndf * 4)))
    h = lrelu(gn(conv(h, params["w4"], 2, 1, matmul_dtype), params["g4"],
                 params["b4"], min(32, ndf * 8)))
    # conv5 is done in f32 in the kernel too (elementwise with the f32 GN out).
    h = jax.nn.sigmoid(conv(h, params["w5"], 1, 0, jnp.float32))
    return h.reshape(-1)


# ----------------------------------------------------------------------------
if __name__ == "__main__":
    nc, ndf, batch = 3, 8, 2          # small but DCGAN-consistent (64x64 input)
    key = jax.random.PRNGKey(0)
    ks = jax.random.split(key, 12)

    def normal(k, shape, scale=0.02):
        return scale * jax.random.normal(k, shape, jnp.float32)

    params = {
        "w1": normal(ks[0], (ndf, nc, 4, 4)),
        "w2": normal(ks[1], (ndf * 2, ndf, 4, 4)),
        "g2": 1.0 + normal(ks[2], (ndf * 2,), 0.1),
        "b2": normal(ks[3], (ndf * 2,), 0.1),
        "w3": normal(ks[4], (ndf * 4, ndf * 2, 4, 4)),
        "g3": 1.0 + normal(ks[5], (ndf * 4,), 0.1),
        "b3": normal(ks[6], (ndf * 4,), 0.1),
        "w4": normal(ks[7], (ndf * 8, ndf * 4, 4, 4)),
        "g4": 1.0 + normal(ks[8], (ndf * 8,), 0.1),
        "b4": normal(ks[9], (ndf * 8,), 0.1),
        "w5": normal(ks[10], (1, ndf * 8, 4, 4)),
    }

    # PyTorch-style NCHW input; DCGAN discriminator expects 64x64 images.
    x = jax.random.normal(ks[11], (batch, nc, 64, 64), jnp.float32)

    fwd = jax.jit(lambda xx, pp: discriminator_forward(xx, pp, ndf))
    out = jax.block_until_ready(fwd(x, params))

    # Reference with the same bf16 matmul-operand rounding (tight check) and
    # the exact f32 PyTorch-equivalent path (loose check).
    ref_lp = jax.block_until_ready(reference_forward(x, params, ndf,
                                                     jnp.bfloat16))
    ref_fp = jax.block_until_ready(reference_forward(x, params, ndf,
                                                     jnp.float32))

    assert out.shape == (batch,), out.shape
    assert bool(jnp.all(jnp.isfinite(out)))
    assert bool(jnp.allclose(out, ref_lp, rtol=5e-3, atol=5e-3)), (out, ref_lp)
    assert bool(jnp.allclose(out, ref_fp, rtol=5e-2, atol=5e-2)), (out, ref_fp)

    print("KERNEL_OK")
</pallas_src>

<mosaic_0001>
module attributes {stable_mosaic.version = 11 : i64} {
  func.func @_conv_lrelu_kernel(%arg0: i32, %arg1: memref<1x1024x128xbf16, #tpu.memory_space<vmem>>, %arg2: memref<128x8xbf16, #tpu.memory_space<vmem>>, %arg3: memref<1x1024x8xbf16, #tpu.memory_space<vmem>>) attributes {dimension_semantics = [#tpu.dimension_semantics<parallel>], iteration_bounds = array<i64: 2>, scalar_prefetch = 0 : i64, scratch_operands = 0 : i64, tpu.core_type = #tpu.core_type<tc>, window_params = [{transform_indices = @transform_0, window_bounds = array<i64: 1, 1024, 128>}, {pipeline_mode = #tpu.pipeline_mode<synchronous>, transform_indices = @transform_1, window_bounds = array<i64: 128, 8>}, {transform_indices = @transform_2, window_bounds = array<i64: 1, 1024, 8>}]} {
    %c0 = arith.constant 0 : index
    %c0_0 = arith.constant 0 : index
    %c0_1 = arith.constant 0 : index
    %0 = vector.load %arg1[%c0, %c0_0, %c0_1] : memref<1x1024x128xbf16, #tpu.memory_space<vmem>>, vector<1x1024x128xbf16>
    %1 = vector.shape_cast %0 : vector<1x1024x128xbf16> to vector<1024x128xbf16>
    %c0_2 = arith.constant 0 : index
    %c0_3 = arith.constant 0 : index
    %2 = vector.load %arg2[%c0_2, %c0_3] : memref<128x8xbf16, #tpu.memory_space<vmem>>, vector<128x8xbf16>
    %cst = arith.constant dense<0.000000e+00> : vector<1024x8xf32>
    %3 = tpu.matmul %1, %2, %cst {dimension_numbers = #tpu.dot_dimension_numbers<[1], [0], [0], [1], [0, 0, 1, 1], [], []>} : vector<1024x128xbf16>, vector<128x8xbf16>, vector<1024x8xf32> -> vector<1024x8xf32>
    %cst_4 = arith.constant 0.000000e+00 : f32
    %4 = vector.broadcast %cst_4 : f32 to vector<1024x8xf32>
    %5 = arith.cmpf ogt, %3, %4 : vector<1024x8xf32>
    %cst_5 = arith.constant 2.000000e-01 : f32
    %6 = vector.broadcast %cst_5 : f32 to vector<1024x8xf32>
    %7 = arith.mulf %6, %3 : vector<1024x8xf32>
    %8 = arith.select %5, %3, %7 : vector<1024x8xi1>, vector<1024x8xf32>
    %9 = vector.shape_cast %8 : vector<1024x8xf32> to vector<1x1024x8xf32>
    %10 = arith.truncf %9 : vector<1x1024x8xf32> to vector<1x1024x8xbf16>
    %c0_6 = arith.constant 0 : index
    %c0_7 = arith.constant 0 : index
    %c0_8 = arith.constant 0 : index
    %11 = vector.load %arg3[%c0_6, %c0_7, %c0_8] : memref<1x1024x8xbf16, #tpu.memory_space<vmem>>, vector<1x1024x8xbf16>
    tpu.vector_store %arg3[%c0_6, %c0_7, %c0_8], %10 {strides = array<i32>} : memref<1x1024x8xbf16, #tpu.memory_space<vmem>>, vector<1x1024x8xbf16>,
    return
  }
  func.func @transform_0(%arg0: i32) -> (i32, i32, i32) {
    %c0_i32 = arith.constant 0 : i32
    %c0_i32_0 = arith.constant 0 : i32
    %c0_i32_1 = arith.constant 0 : i32
    return %arg0, %c0_i32, %c0_i32_0 : i32, i32, i32
  }
  func.func @transform_1(%arg0: i32) -> (i32, i32) {
    %c0_i32 = arith.constant 0 : i32
    %c0_i32_0 = arith.constant 0 : i32
    %c0_i32_1 = arith.constant 0 : i32
    return %c0_i32, %c0_i32_0 : i32, i32
  }
  func.func @transform_2(%arg0: i32) -> (i32, i32, i32) {
    %c0_i32 = arith.constant 0 : i32
    %c0_i32_0 = arith.constant 0 : i32
    %c0_i32_1 = arith.constant 0 : i32
    return %arg0, %c0_i32, %c0_i32_0 : i32, i32, i32
  }
}

module attributes {stable_mosaic.version = 11 : i64} {
  func.func @_conv_gn_lrelu_kernel(%arg0: i32, %arg1: memref<1x256x128xbf16, #tpu.memory_space<vmem>>, %arg2: memref<128x16xbf16, #tpu.memory_space<vmem>>, %arg3: memref<16x16xf32, #tpu.memory_space<vmem>>, %arg4: memref<16x16xf32, #tpu.memory_space<vmem>>, %arg5: memref<1x16xf32, #tpu.memory_space<vmem>>, %arg6: memref<1x16xf32, #tpu.memory_space<vmem>>, %arg7: memref<1x256x16xbf16, #tpu.memory_space<vmem>>) attributes {dimension_semantics = [#tpu.dimension_semantics<parallel>], iteration_bounds = array<i64: 2>, scalar_prefetch = 0 : i64, scratch_operands = 0 : i64, tpu.core_type = #tpu.core_type<tc>, window_params = [{transform_indices = @transform_0, window_bounds = array<i64: 1, 256, 128>}, {pipeline_mode = #tpu.pipeline_mode<synchronous>, transform_indices = @transform_1, window_bounds = array<i64: 128, 16>}, {pipeline_mode = #tpu.pipeline_mode<synchronous>, transform_indices = @transform_2, window_bounds = array<i64: 16, 16>}, {pipeline_mode = #tpu.pipeline_mode<synchronous>, transform_indices = @transform_3, window_bounds = array<i64: 16, 16>}, {pipeline_mode = #tpu.pipeline_mode<synchronous>, transform_indices = @transform_4, window_bounds = array<i64: 1, 16>}, {pipeline_mode = #tpu.pipeline_mode<synchronous>, transform_indices = @transform_5, window_bounds = array<i64: 1, 16>}, {transform_indices = @transform_6, window_bounds = array<i64: 1, 256, 16>}]} {
    %c0 = arith.constant 0 : index
    %c0_0 = arith.constant 0 : index
    %c0_1 = arith.constant 0 : index
    %0 = vector.load %arg1[%c0, %c0_0, %c0_1] : memref<1x256x128xbf16, #tpu.memory_space<vmem>>, vector<1x256x128xbf16>
    %1 = vector.shape_cast %0 : vector<1x256x128xbf16> to vector<256x128xbf16>
    %c0_2 = arith.constant 0 : index
    %c0_3 = arith.constant 0 : index
    %2 = vector.load %arg2[%c0_2, %c0_3] : memref<128x16xbf16, #tpu.memory_space<vmem>>, vector<128x16xbf16>
    %cst = arith.constant dense<0.000000e+00> : vector<256x16xf32>
    %3 = tpu.matmul %1, %2, %cst {dimension_numbers = #tpu.dot_dimension_numbers<[1], [0], [0], [1], [0, 0, 1, 1], [], []>} : vector<256x128xbf16>, vector<128x16xbf16>, vector<256x16xf32> -> vector<256x16xf32>
    %4 = vector.shape_cast %3 : vector<256x16xf32> to vector<1x256x16xf32>
    %c0_4 = arith.constant 0 : index
    %c0_5 = arith.constant 0 : index
    %5 = vector.load %arg5[%c0_4, %c0_5] : memref<1x16xf32, #tpu.memory_space<vmem>>, vector<1x16xf32>
    %c0_6 = arith.constant 0 : index
    %c0_7 = arith.constant 0 : index
    %6 = vector.load %arg6[%c0_6, %c0_7] : memref<1x16xf32, #tpu.memory_space<vmem>>, vector<1x16xf32>
    %cst_8 = arith.constant dense<0.000000e+00> : vector<1x16xf32>
    %7 = vector.multi_reduction <add>, %4, %cst_8 [1] : vector<1x256x16xf32> to vector<1x16xf32>
    %cst_9 = arith.constant 3.906250e-03 : f32
    %8 = vector.broadcast %cst_9 : f32 to vector<1x16xf32>
    %9 = arith.mulf %7, %8 : vector<1x16xf32>
    %10 = vector.shape_cast %9 : vector<1x16xf32> to vector<1x1x16xf32>
    %11 = vector.broadcast %10 : vector<1x1x16xf32> to vector<1x256x16xf32>
    %12 = arith.subf %4, %11 : vector<1x256x16xf32>
    %13 = arith.mulf %12, %12 : vector<1x256x16xf32>
    %cst_10 = arith.constant dense<0.000000e+00> : vector<1x16xf32>
    %14 = vector.multi_reduction <add>, %13, %cst_10 [1] : vector<1x256x16xf32> to vector<1x16xf32>
    %cst_11 = arith.constant 3.906250e-03 : f32
    %15 = vector.broadcast %cst_11 : f32 to vector<1x16xf32>
    %16 = arith.mulf %14, %15 : vector<1x16xf32>
    %cst_12 = arith.constant 9.99999974E-6 : f32
    %17 = vector.broadcast %cst_12 : f32 to vector<1x16xf32>
    %18 = arith.addf %16, %17 : vector<1x16xf32>
    %19 = math.rsqrt %18 : vector<1x16xf32>
    %20 = vector.shape_cast %19 : vector<1x16xf32> to vector<1x1x16xf32>
    %21 = vector.broadcast %20 : vector<1x1x16xf32> to vector<1x256x16xf32>
    %22 = arith.mulf %12, %21 : vector<1x256x16xf32>
    %23 = vector.shape_cast %5 : vector<1x16xf32> to vector<1x1x16xf32>
    %24 = vector.broadcast %23 : vector<1x1x16xf32> to vector<1x256x16xf32>
    %25 = arith.mulf %22, %24 : vector<1x256x16xf32>
    %26 = vector.shape_cast %6 : vector<1x16xf32> to vector<1x1x16xf32>
    %27 = vector.broadcast %26 : vector<1x1x16xf32> to vector<1x256x16xf32>
    %28 = arith.addf %25, %27 : vector<1x256x16xf32>
    %cst_13 = arith.constant 0.000000e+00 : f32
    %29 = vector.broadcast %cst_13 : f32 to vector<1x256x16xf32>
    %30 = arith.cmpf ogt, %28, %29 : vector<1x256x16xf32>
    %cst_14 = arith.constant 2.000000e-01 : f32
    %31 = vector.broadcast %cst_14 : f32 to vector<1x256x16xf32>
    %32 = arith.mulf %31, %28 : vector<1x256x16xf32>
    %33 = arith.select %30, %28, %32 : vector<1x256x16xi1>, vector<1x256x16xf32>
    %34 = arith.truncf %33 : vector<1x256x16xf32> to vector<1x256x16xbf16>
    %c0_15 = arith.constant 0 : index
    %c0_16 = arith.constant 0 : index
    %c0_17 = arith.constant 0 : index
    %35 = vector.load %arg7[%c0_15, %c0_16, %c0_17] : memref<1x256x16xbf16, #tpu.memory_space<vmem>>, vector<1x256x16xbf16>
    tpu.vector_store %arg7[%c0_15, %c0_16, %c0_17], %34 {strides = array<i32>} : memref<1x256x16xbf16, #tpu.memory_space<vmem>>, vector<1x256x16xbf16>,
    return
  }
  func.func @transform_0(%arg0: i32) -> (i32, i32, i32) {
    %c0_i32 = arith.constant 0 : i32
    %c0_i32_0 = arith.constant 0 : i32
    %c0_i32_1 = arith.constant 0 : i32
    return %arg0, %c0_i32, %c0_i32_0 : i32, i32, i32
  }
  func.func @transform_1(%arg0: i32) -> (i32, i32) {
    %c0_i32 = arith.constant 0 : i32
    %c0_i32_0 = arith.constant 0 : i32
    %c0_i32_1 = arith.constant 0 : i32
    return %c0_i32, %c0_i32_0 : i32, i32
  }
  func.func @transform_2(%arg0: i32) -> (i32, i32) {
    %c0_i32 = arith.constant 0 : i32
    %c0_i32_0 = arith.constant 0 : i32
    %c0_i32_1 = arith.constant 0 : i32
    return %c0_i32, %c0_i32_0 : i32, i32
  }
  func.func @transform_3(%arg0: i32) -> (i32, i32) {
    %c0_i32 = arith.constant 0 : i32
    %c0_i32_0 = arith.constant 0 : i32
    %c0_i32_1 = arith.constant 0 : i32
    return %c0_i32, %c0_i32_0 : i32, i32
  }
  func.func @transform_4(%arg0: i32) -> (i32, i32) {
    %c0_i32 = arith.constant 0 : i32
    %c0_i32_0 = arith.constant 0 : i32
    %c0_i32_1 = arith.constant 0 : i32
    return %c0_i32, %c0_i32_0 : i32, i32
  }
  func.func @transform_5(%arg0: i32) -> (i32, i32) {
    %c0_i32 = arith.constant 0 : i32
    %c0_i32_0 = arith.constant 0 : i32
    %c0_i32_1 = arith.constant 0 : i32
    return %c0_i32, %c0_i32_0 : i32, i32
  }
  func.func @transform_6(%arg0: i32) -> (i32, i32, i32) {
    %c0_i32 = arith.constant 0 : i32
    %c0_i32_0 = arith.constant 0 : i32
    %c0_i32_1 = arith.constant 0 : i32
    return %arg0, %c0_i32, %c0_i32_0 : i32, i32, i32
  }
}

module attributes {stable_mosaic.version = 11 : i64} {
  func.func @_conv_gn_lrelu_kernel(%arg0: i32, %arg1: memref<2x64x256xbf16, #tpu.memory_space<vmem>>, %arg2: memref<256x32xbf16, #tpu.memory_space<vmem>>, %arg3: memref<32x32xf32, #tpu.memory_space<vmem>>, %arg4: memref<32x32xf32, #tpu.memory_space<vmem>>, %arg5: memref<1x32xf32, #tpu.memory_space<vmem>>, %arg6: memref<1x32xf32, #tpu.memory_space<vmem>>, %arg7: memref<2x64x32xbf16, #tpu.memory_space<vmem>>) attributes {dimension_semantics = [#tpu.dimension_semantics<parallel>], iteration_bounds = array<i64: 1>, scalar_prefetch = 0 : i64, scratch_operands = 0 : i64, tpu.core_type = #tpu.core_type<tc>, window_params = [{transform_indices = @transform_0, window_bounds = array<i64: 2, 64, 256>}, {pipeline_mode = #tpu.pipeline_mode<synchronous>, transform_indices = @transform_1, window_bounds = array<i64: 256, 32>}, {pipeline_mode = #tpu.pipeline_mode<synchronous>, transform_indices = @transform_2, window_bounds = array<i64: 32, 32>}, {pipeline_mode = #tpu.pipeline_mode<synchronous>, transform_indices = @transform_3, window_bounds = array<i64: 32, 32>}, {pipeline_mode = #tpu.pipeline_mode<synchronous>, transform_indices = @transform_4, window_bounds = array<i64: 1, 32>}, {pipeline_mode = #tpu.pipeline_mode<synchronous>, transform_indices = @transform_5, window_bounds = array<i64: 1, 32>}, {transform_indices = @transform_6, window_bounds = array<i64: 2, 64, 32>}]} {
    %c0 = arith.constant 0 : index
    %c0_0 = arith.constant 0 : index
    %c0_1 = arith.constant 0 : index
    %0 = vector.load %arg1[%c0, %c0_0, %c0_1] : memref<2x64x256xbf16, #tpu.memory_space<vmem>>, vector<2x64x256xbf16>
    %1 = vector.shape_cast %0 : vector<2x64x256xbf16> to vector<128x256xbf16>
    %c0_2 = arith.constant 0 : index
    %c0_3 = arith.constant 0 : index
    %2 = vector.load %arg2[%c0_2, %c0_3] : memref<256x32xbf16, #tpu.memory_space<vmem>>, vector<256x32xbf16>
    %cst = arith.constant dense<0.000000e+00> : vector<128x32xf32>
    %3 = tpu.matmul %1, %2, %cst {dimension_numbers = #tpu.dot_dimension_numbers<[1], [0], [0], [1], [0, 0, 1, 1], [], []>} : vector<128x256xbf16>, vector<256x32xbf16>, vector<128x32xf32> -> vector<128x32xf32>
    %4 = vector.shape_cast %3 : vector<128x32xf32> to vector<2x64x32xf32>
    %c0_4 = arith.constant 0 : index
    %c0_5 = arith.constant 0 : index
    %5 = vector.load %arg5[%c0_4, %c0_5] : memref<1x32xf32, #tpu.memory_space<vmem>>, vector<1x32xf32>
    %c0_6 = arith.constant 0 : index
    %c0_7 = arith.constant 0 : index
    %6 = vector.load %arg6[%c0_6, %c0_7] : memref<1x32xf32, #tpu.memory_space<vmem>>, vector<1x32xf32>
    %cst_8 = arith.constant dense<0.000000e+00> : vector<2x32xf32>
    %7 = vector.multi_reduction <add>, %4, %cst_8 [1] : vector<2x64x32xf32> to vector<2x32xf32>
    %cst_9 = arith.constant 1.562500e-02 : f32
    %8 = vector.broadcast %cst_9 : f32 to vector<2x32xf32>
    %9 = arith.mulf %7, %8 : vector<2x32xf32>
    %10 = vector.shape_cast %9 : vector<2x32xf32> to vector<2x1x32xf32>
    %11 = vector.broadcast %10 : vector<2x1x32xf32> to vector<2x64x32xf32>
    %12 = arith.subf %4, %11 : vector<2x64x32xf32>
    %13 = arith.mulf %12, %12 : vector<2x64x32xf32>
    %cst_10 = arith.constant dense<0.000000e+00> : vector<2x32xf32>
    %14 = vector.multi_reduction <add>, %13, %cst_10 [1] : vector<2x64x32xf32> to vector<2x32xf32>
    %cst_11 = arith.constant 1.562500e-02 : f32
    %15 = vector.broadcast %cst_11 : f32 to vector<2x32xf32>
    %16 = arith.mulf %14, %15 : vector<2x32xf32>
    %cst_12 = arith.constant 9.99999974E-6 : f32
    %17 = vector.broadcast %cst_12 : f32 to vector<2x32xf32>
    %18 = arith.addf %16, %17 : vector<2x32xf32>
    %19 = math.rsqrt %18 : vector<2x32xf32>
    %20 = vector.shape_cast %19 : vector<2x32xf32> to vector<2x1x32xf32>
    %21 = vector.broadcast %20 : vector<2x1x32xf32> to vector<2x64x32xf32>
    %22 = arith.mulf %12, %21 : vector<2x64x32xf32>
    %23 = vector.shape_cast %5 : vector<1x32xf32> to vector<1x1x32xf32>
    %24 = vector.broadcast %23 : vector<1x1x32xf32> to vector<2x64x32xf32>
    %25 = arith.mulf %22, %24 : vector<2x64x32xf32>
    %26 = vector.shape_cast %6 : vector<1x32xf32> to vector<1x1x32xf32>
    %27 = vector.broadcast %26 : vector<1x1x32xf32> to vector<2x64x32xf32>
    %28 = arith.addf %25, %27 : vector<2x64x32xf32>
    %cst_13 = arith.constant 0.000000e+00 : f32
    %29 = vector.broadcast %cst_13 : f32 to vector<2x64x32xf32>
    %30 = arith.cmpf ogt, %28, %29 : vector<2x64x32xf32>
    %cst_14 = arith.constant 2.000000e-01 : f32
    %31 = vector.broadcast %cst_14 : f32 to vector<2x64x32xf32>
    %32 = arith.mulf %31, %28 : vector<2x64x32xf32>
    %33 = arith.select %30, %28, %32 : vector<2x64x32xi1>, vector<2x64x32xf32>
    %34 = arith.truncf %33 : vector<2x64x32xf32> to vector<2x64x32xbf16>
    %c0_15 = arith.constant 0 : index
    %c0_16 = arith.constant 0 : index
    %c0_17 = arith.constant 0 : index
    %35 = vector.load %arg7[%c0_15, %c0_16, %c0_17] : memref<2x64x32xbf16, #tpu.memory_space<vmem>>, vector<2x64x32xbf16>
    tpu.vector_store %arg7[%c0_15, %c0_16, %c0_17], %34 {strides = array<i32>} : memref<2x64x32xbf16, #tpu.memory_space<vmem>>, vector<2x64x32xbf16>,
    return
  }
  func.func @transform_0(%arg0: i32) -> (i32, i32, i32) {
    %c0_i32 = arith.constant 0 : i32
    %c0_i32_0 = arith.constant 0 : i32
    %c0_i32_1 = arith.constant 0 : i32
    return %arg0, %c0_i32, %c0_i32_0 : i32, i32, i32
  }
  func.func @transform_1(%arg0: i32) -> (i32, i32) {
    %c0_i32 = arith.constant 0 : i32
    %c0_i32_0 = arith.constant 0 : i32
    %c0_i32_1 = arith.constant 0 : i32
    return %c0_i32, %c0_i32_0 : i32, i32
  }
  func.func @transform_2(%arg0: i32) -> (i32, i32) {
    %c0_i32 = arith.constant 0 : i32
    %c0_i32_0 = arith.constant 0 : i32
    %c0_i32_1 = arith.constant 0 : i32
    return %c0_i32, %c0_i32_0 : i32, i32
  }
  func.func @transform_3(%arg0: i32) -> (i32, i32) {
    %c0_i32 = arith.constant 0 : i32
    %c0_i32_0 = arith.constant 0 : i32
    %c0_i32_1 = arith.constant 0 : i32
    return %c0_i32, %c0_i32_0 : i32, i32
  }
  func.func @transform_4(%arg0: i32) -> (i32, i32) {
    %c0_i32 = arith.constant 0 : i32
    %c0_i32_0 = arith.constant 0 : i32
    %c0_i32_1 = arith.constant 0 : i32
    return %c0_i32, %c0_i32_0 : i32, i32
  }
  func.func @transform_5(%arg0: i32) -> (i32, i32) {
    %c0_i32 = arith.constant 0 : i32
    %c0_i32_0 = arith.constant 0 : i32
    %c0_i32_1 = arith.constant 0 : i32
    return %c0_i32, %c0_i32_0 : i32, i32
  }
  func.func @transform_6(%arg0: i32) -> (i32, i32, i32) {
    %c0_i32 = arith.constant 0 : i32
    %c0_i32_0 = arith.constant 0 : i32
    %c0_i32_1 = arith.constant 0 : i32
    return %arg0, %c0_i32, %c0_i32_0 : i32, i32, i32
  }
}

module attributes {stable_mosaic.version = 11 : i64} {
  func.func @_conv_gn_lrelu_head_kernel(%arg0: i32, %arg1: memref<2x16x512xbf16, #tpu.memory_space<vmem>>, %arg2: memref<512x64xbf16, #tpu.memory_space<vmem>>, %arg3: memref<64x32xf32, #tpu.memory_space<vmem>>, %arg4: memref<32x64xf32, #tpu.memory_space<vmem>>, %arg5: memref<1x64xf32, #tpu.memory_space<vmem>>, %arg6: memref<1x64xf32, #tpu.memory_space<vmem>>, %arg7: memref<16x64xf32, #tpu.memory_space<vmem>>, %arg8: memref<2x1x1xf32, #tpu.memory_space<vmem>>) attributes {dimension_semantics = [#tpu.dimension_semantics<parallel>], iteration_bounds = array<i64: 1>, scalar_prefetch = 0 : i64, scratch_operands = 0 : i64, tpu.core_type = #tpu.core_type<tc>, window_params = [{transform_indices = @transform_0, window_bounds = array<i64: 2, 16, 512>}, {pipeline_mode = #tpu.pipeline_mode<synchronous>, transform_indices = @transform_1, window_bounds = array<i64: 512, 64>}, {pipeline_mode = #tpu.pipeline_mode<synchronous>, transform_indices = @transform_2, window_bounds = array<i64: 64, 32>}, {pipeline_mode = #tpu.pipeline_mode<synchronous>, transform_indices = @transform_3, window_bounds = array<i64: 32, 64>}, {pipeline_mode = #tpu.pipeline_mode<synchronous>, transform_indices = @transform_4, window_bounds = array<i64: 1, 64>}, {pipeline_mode = #tpu.pipeline_mode<synchronous>, transform_indices = @transform_5, window_bounds = array<i64: 1, 64>}, {pipeline_mode = #tpu.pipeline_mode<synchronous>, transform_indices = @transform_6, window_bounds = array<i64: 16, 64>}, {transform_indices = @transform_7, window_bounds = array<i64: 2, 1, 1>}]} {
    %c0 = arith.constant 0 : index
    %c0_0 = arith.constant 0 : index
    %c0_1 = arith.constant 0 : index
    %0 = vector.load %arg1[%c0, %c0_0, %c0_1] : memref<2x16x512xbf16, #tpu.memory_space<vmem>>, vector<2x16x512xbf16>
    %1 = vector.shape_cast %0 : vector<2x16x512xbf16> to vector<32x512xbf16>
    %c0_2 = arith.constant 0 : index
    %c0_3 = arith.constant 0 : index
    %2 = vector.load %arg2[%c0_2, %c0_3] : memref<512x64xbf16, #tpu.memory_space<vmem>>, vector<512x64xbf16>
    %cst = arith.constant dense<0.000000e+00> : vector<32x64xf32>
    %3 = tpu.matmul %1, %2, %cst {dimension_numbers = #tpu.dot_dimension_numbers<[1], [0], [0], [1], [0, 0, 1, 1], [], []>} : vector<32x512xbf16>, vector<512x64xbf16>, vector<32x64xf32> -> vector<32x64xf32>
    %4 = vector.shape_cast %3 : vector<32x64xf32> to vector<2x16x64xf32>
    %c0_4 = arith.constant 0 : index
    %c0_5 = arith.constant 0 : index
    %5 = vector.load %arg5[%c0_4, %c0_5] : memref<1x64xf32, #tpu.memory_space<vmem>>, vector<1x64xf32>
    %c0_6 = arith.constant 0 : index
    %c0_7 = arith.constant 0 : index
    %6 = vector.load %arg6[%c0_6, %c0_7] : memref<1x64xf32, #tpu.memory_space<vmem>>, vector<1x64xf32>
    %cst_8 = arith.constant dense<0.000000e+00> : vector<2x64xf32>
    %7 = vector.multi_reduction <add>, %4, %cst_8 [1] : vector<2x16x64xf32> to vector<2x64xf32>
    %c0_9 = arith.constant 0 : index
    %c0_10 = arith.constant 0 : index
    %8 = vector.load %arg3[%c0_9, %c0_10] : memref<64x32xf32, #tpu.memory_space<vmem>>, vector<64x32xf32>
    %cst_11 = arith.constant dense<0.000000e+00> : vector<2x32xf32>
    %9 = tpu.matmul %7, %8, %cst_11 {dimension_numbers = #tpu.dot_dimension_numbers<[1], [0], [0], [1], [0, 0, 1, 1], [], []>} : vector<2x64xf32>, vector<64x32xf32>, vector<2x32xf32> -> vector<2x32xf32>
    %c0_12 = arith.constant 0 : index
    %c0_13 = arith.constant 0 : index
    %10 = vector.load %arg4[%c0_12, %c0_13] : memref<32x64xf32, #tpu.memory_space<vmem>>, vector<32x64xf32>
    %cst_14 = arith.constant dense<0.000000e+00> : vector<2x64xf32>
    %11 = tpu.matmul %9, %10, %cst_14 {dimension_numbers = #tpu.dot_dimension_numbers<[1], [0], [0], [1], [0, 0, 1, 1], [], []>} : vector<2x32xf32>, vector<32x64xf32>, vector<2x64xf32> -> vector<2x64xf32>
    %12 = vector.shape_cast %11 : vector<2x64xf32> to vector<2x1x64xf32>
    %13 = vector.broadcast %12 : vector<2x1x64xf32> to vector<2x16x64xf32>
    %14 = arith.subf %4, %13 : vector<2x16x64xf32>
    %15 = arith.mulf %14, %14 : vector<2x16x64xf32>
    %cst_15 = arith.constant dense<0.000000e+00> : vector<2x64xf32>
    %16 = vector.multi_reduction <add>, %15, %cst_15 [1] : vector<2x16x64xf32> to vector<2x64xf32>
    %c0_16 = arith.constant 0 : index
    %c0_17 = arith.constant 0 : index
    %17 = vector.load %arg3[%c0_16, %c0_17] : memref<64x32xf32, #tpu.memory_space<vmem>>, vector<64x32xf32>
    %cst_18 = arith.constant dense<0.000000e+00> : vector<2x32xf32>
    %18 = tpu.matmul %16, %17, %cst_18 {dimension_numbers = #tpu.dot_dimension_numbers<[1], [0], [0], [1], [0, 0, 1, 1], [], []>} : vector<2x64xf32>, vector<64x32xf32>, vector<2x32xf32> -> vector<2x32xf32>
    %c0_19 = arith.constant 0 : index
    %c0_20 = arith.constant 0 : index
    %19 = vector.load %arg4[%c0_19, %c0_20] : memref<32x64xf32, #tpu.memory_space<vmem>>, vector<32x64xf32>
    %cst_21 = arith.constant dense<0.000000e+00> : vector<2x64xf32>
    %20 = tpu.matmul %18, %19, %cst_21 {dimension_numbers = #tpu.dot_dimension_numbers<[1], [0], [0], [1], [0, 0, 1, 1], [], []>} : vector<2x32xf32>, vector<32x64xf32>, vector<2x64xf32> -> vector<2x64xf32>
    %cst_22 = arith.constant 9.99999974E-6 : f32
    %21 = vector.broadcast %cst_22 : f32 to vector<2x64xf32>
    %22 = arith.addf %20, %21 : vector<2x64xf32>
    %23 = math.rsqrt %22 : vector<2x64xf32>
    %24 = vector.shape_cast %23 : vector<2x64xf32> to vector<2x1x64xf32>
    %25 = vector.broadcast %24 : vector<2x1x64xf32> to vector<2x16x64xf32>
    %26 = arith.mulf %14, %25 : vector<2x16x64xf32>
    %27 = vector.shape_cast %5 : vector<1x64xf32> to vector<1x1x64xf32>
    %28 = vector.broadcast %27 : vector<1x1x64xf32> to vector<2x16x64xf32>
    %29 = arith.mulf %26, %28 : vector<2x16x64xf32>
    %30 = vector.shape_cast %6 : vector<1x64xf32> to vector<1x1x64xf32>
    %31 = vector.broadcast %30 : vector<1x1x64xf32> to vector<2x16x64xf32>
    %32 = arith.addf %29, %31 : vector<2x16x64xf32>
    %cst_23 = arith.constant 0.000000e+00 : f32
    %33 = vector.broadcast %cst_23 : f32 to vector<2x16x64xf32>
    %34 = arith.cmpf ogt, %32, %33 : vector<2x16x64xf32>
    %cst_24 = arith.constant 2.000000e-01 : f32
    %35 = vector.broadcast %cst_24 : f32 to vector<2x16x64xf32>
    %36 = arith.mulf %35, %32 : vector<2x16x64xf32>
    %37 = arith.select %34, %32, %36 : vector<2x16x64xi1>, vector<2x16x64xf32>
    %c0_25 = arith.constant 0 : index
    %c0_26 = arith.constant 0 : index
    %38 = vector.load %arg7[%c0_25, %c0_26] : memref<16x64xf32, #tpu.memory_space<vmem>>, vector<16x64xf32>
    %39 = vector.shape_cast %38 : vector<16x64xf32> to vector<1x16x64xf32>
    %40 = vector.broadcast %39 : vector<1x16x64xf32> to vector<2x16x64xf32>
    %41 = arith.mulf %37, %40 : vector<2x16x64xf32>
    %cst_27 = arith.constant dense<0.000000e+00> : vector<2x16xf32>
    %42 = vector.multi_reduction <add>, %41, %cst_27 [2] : vector<2x16x64xf32> to vector<2x16xf32>
    %43 = vector.shape_cast %42 : vector<2x16xf32> to vector<2x16x1xf32>
    %cst_28 = arith.constant dense<0.000000e+00> : vector<2x1xf32>
    %44 = vector.multi_reduction <add>, %43, %cst_28 [1] : vector<2x16x1xf32> to vector<2x1xf32>
    %45 = vector.shape_cast %44 : vector<2x1xf32> to vector<2x1x1xf32>
    %cst_29 = arith.constant 0.000000e+00 : f32
    %46 = vector.broadcast %cst_29 : f32 to vector<2x1x1xf32>
    %47 = arith.subf %46, %45 : vector<2x1x1xf32>
    %48 = math.exp %47 : vector<2x1x1xf32>
    %cst_30 = arith.constant 1.000000e+00 : f32
    %49 = vector.broadcast %cst_30 : f32 to vector<2x1x1xf32>
    %50 = arith.addf %49, %48 : vector<2x1x1xf32>
    %51 = tpu.reciprocal %50 {approx = true} : vector<2x1x1xf32> -> vector<2x1x1xf32>
    %c0_31 = arith.constant 0 : index
    %c0_32 = arith.constant 0 : index
    %c0_33 = arith.constant 0 : index
    %52 = vector.load %arg8[%c0_31, %c0_32, %c0_33] : memref<2x1x1xf32, #tpu.memory_space<vmem>>, vector<2x1x1xf32>
    tpu.vector_store %arg8[%c0_31, %c0_32, %c0_33], %51 {strides = array<i32>} : memref<2x1x1xf32, #tpu.memory_space<vmem>>, vector<2x1x1xf32>,
    return
  }
  func.func @transform_0(%arg0: i32) -> (i32, i32, i32) {
    %c0_i32 = arith.constant 0 : i32
    %c0_i32_0 = arith.constant 0 : i32
    %c0_i32_1 = arith.constant 0 : i32
    return %arg0, %c0_i32, %c0_i32_0 : i32, i32, i32
  }
  func.func @transform_1(%arg0: i32) -> (i32, i32) {
    %c0_i32 = arith.constant 0 : i32
    %c0_i32_0 = arith.constant 0 : i32
    %c0_i32_1 = arith.constant 0 : i32
    return %c0_i32, %c0_i32_0 : i32, i32
  }
  func.func @transform_2(%arg0: i32) -> (i32, i32) {
    %c0_i32 = arith.constant 0 : i32
    %c0_i32_0 = arith.constant 0 : i32
    %c0_i32_1 = arith.constant 0 : i32
    return %c0_i32, %c0_i32_0 : i32, i32
  }
  func.func @transform_3(%arg0: i32) -> (i32, i32) {
    %c0_i32 = arith.constant 0 : i32
    %c0_i32_0 = arith.constant 0 : i32
    %c0_i32_1 = arith.constant 0 : i32
    return %c0_i32, %c0_i32_0 : i32, i32
  }
  func.func @transform_4(%arg0: i32) -> (i32, i32) {
    %c0_i32 = arith.constant 0 : i32
    %c0_i32_0 = arith.constant 0 : i32
    %c0_i32_1 = arith.constant 0 : i32
    return %c0_i32, %c0_i32_0 : i32, i32
  }
  func.func @transform_5(%arg0: i32) -> (i32, i32) {
    %c0_i32 = arith.constant 0 : i32
    %c0_i32_0 = arith.constant 0 : i32
    %c0_i32_1 = arith.constant 0 : i32
    return %c0_i32, %c0_i32_0 : i32, i32
  }
  func.func @transform_6(%arg0: i32) -> (i32, i32) {
    %c0_i32 = arith.constant 0 : i32
    %c0_i32_0 = arith.constant 0 : i32
    %c0_i32_1 = arith.constant 0 : i32
    return %c0_i32, %c0_i32_0 : i32, i32
  }
  func.func @transform_7(%arg0: i32) -> (i32, i32, i32) {
    %c0_i32 = arith.constant 0 : i32
    %c0_i32_0 = arith.constant 0 : i32
    %c0_i32_1 = arith.constant 0 : i32
    return %arg0, %c0_i32, %c0_i32_0 : i32, i32, i32
  }
}

</mosaic_0001>

<llo_original>
// kernel: _lambda_.4
$region0: #{_lambda_.4}
  #allocation0 [shape = 'u32[]', space=smem, size = 0x4, offset = 0x4, fixed_abs, tag = 'smem constant byte address 0x4 - core index']
  #allocation1 [shape = 'u32[144,128]{1,0:T(1,128)}', space=vmem, size = 0x12000, scoped, tag = 'internal scratch']
  %s0 = inlined_call_operand.vmem [shape: bf16[2,1024,128], index: 0, kind: input, shape index: {}]
  %s1 = inlined_call_operand.vmem [shape: bf16[128,8], index: 1, kind: input, shape index: {}]
  %s2 = inlined_call_operand.vmem [shape: bf16[2,1024,8], index: 2, kind: output, shape index: {}]
  %s3 = sld [smem:[#allocation0]]
  $region41: #{_lambda_.4} parent=0
    _
  %s5 = ssub.s32 1, %s3
  %s6 = scalar_select 0, %s5, %s3
  loop: start=0, step=1, limit=4
  $region2: #{_lambda_.4} parent=0 // loop_pre_header
    _
  $region3: #{_lambda_.4} parent=0 // loop_header
    %s8 = sphi 0, %s12
    %p9 = scmp.ge.s32.totalorder %s8, 4
    %s18 = sphi 0, %s20
    %s21 = sphi 0, %s18
    %s22 = sphi 0, %s21
    %s38 = sphi 0, %s22
    %s42 = sphi 0, %s42
    %s44 = sphi 0, %s42
    %s45 = sphi 0, %s44
    %s59 = sphi 0, %s45
    %s65 = sphi 0, %s67
    %s68 = sphi 0, %s65
    %s69 = sphi 0, %s68
    %s85 = sphi 0, %s69
  $region4: #{_lambda_.4} parent=0 // loop_header_branch
    %11 = sbr.rel (%p9) target = $region8
  $region5: #{_lambda_.4} parent=0 // loop_body
    %s13 = ssub.s32 %s8, 1
    %s14 = ssub.s32 %s8, 2
    %s15 = sadd.s32 %s8, 1
    %s16 = ssub.s32 %s8, %s15
    %p17 = scmp.eq.s32.totalorder %s16, 0
    %s19 = sadd.s32 %s18, 1
    %s20 = scalar_select %p17, %s18, %s19
    %p23 = pneg %p17
    %p24 = scmp.eq.s32.totalorder %s8, 1
    %p25 = por %p23, %p24
    %p26 = scmp.ne.s32.totalorder %s18, %s21
    %p27 = scmp.eq.s32.totalorder %s8, 0
    %p28 = por %p26, %p27
    %p29 = scmp.ne.s32.totalorder %s18, %s21
    %p30 = scmp.eq.s32.totalorder %s13, 1
    %p31 = por %p29, %p30
    %p32 = scmp.ne.s32.totalorder %s21, %s22
    %p33 = scmp.eq.s32.totalorder %s13, 0
    %p34 = por %p32, %p33
    %p35 = scmp.ne.s32.totalorder %s21, %s22
    %p36 = scmp.eq.s32.totalorder %s14, 1
    %p37 = por %p35, %p36
    %p39 = scmp.ne.s32.totalorder %s22, %s38
    %p40 = scmp.eq.s32.totalorder %s14, 0
    %p41 = por %p39, %p40
    %s43 = sadd.s32 %s42, 1
    %p46 = scmp.eq.s32.totalorder %s8, 1
    %p47 = scmp.ne.s32.totalorder %s42, %s44
    %p48 = scmp.eq.s32.totalorder %s8, 0
    %p49 = por %p47, %p48
    %p50 = scmp.ne.s32.totalorder %s42, %s44
    %p51 = scmp.eq.s32.totalorder %s13, 1
    %p52 = por %p50, %p51
    %p53 = scmp.ne.s32.totalorder %s44, %s45
    %p54 = scmp.eq.s32.totalorder %s13, 0
    %p55 = por %p53, %p54
    %p56 = scmp.ne.s32.totalorder %s44, %s45
    %p57 = scmp.eq.s32.totalorder %s14, 1
    %p58 = por %p56, %p57
    %p60 = scmp.ne.s32.totalorder %s45, %s59
    %p61 = scmp.eq.s32.totalorder %s14, 0
    %p62 = por %p60, %p61
    %s63 = ssub.s32 %s8, %s15
    %p64 = scmp.eq.s32.totalorder %s63, 0
    %s66 = sadd.s32 %s65, 1
    %s67 = scalar_select %p64, %s65, %s66
    %p70 = pneg %p64
    %p71 = scmp.eq.s32.totalorder %s8, 1
    %p72 = por %p70, %p71
    %p73 = scmp.ne.s32.totalorder %s65, %s68
    %p74 = scmp.eq.s32.totalorder %s8, 0
    %p75 = por %p73, %p74
    %p76 = scmp.ne.s32.totalorder %s65, %s68
    %p77 = scmp.eq.s32.totalorder %s13, 1
    %p78 = por %p76, %p77
    %p79 = scmp.ne.s32.totalorder %s68, %s69
    %p80 = scmp.eq.s32.totalorder %s13, 0
    %p81 = por %p79, %p80
    %p82 = scmp.ne.s32.totalorder %s68, %s69
    %p83 = scmp.eq.s32.totalorder %s14, 1
    %p84 = por %p82, %p83
    %p86 = scmp.ne.s32.totalorder %s69, %s85
    %p87 = scmp.eq.s32.totalorder %s14, 0
    %p88 = por %p86, %p87
    %p89 = scmp.le.s32.totalorder 1, %s8
    %p90 = scmp.lt.s32.totalorder %s8, 3
    %p91 = pnand %p89, %p90
    %p92 = pneg %p91
    // Predicated region
    $region9: #{_lambda_.4} parent=5 // pred_check
      _
    $region10: #{_lambda_.4} parent=5 // pred_check_branch
      %94 = sbr.rel (%p91) target = $region12
    $region11: #{_lambda_.4} parent=5 // pred_region
      %s95 = ssub.s32 %s8, 1
      // Predicated region
      $region13: #{_lambda_.4} parent=11 // pred_check
        %p96 = pneg %p55
      $region14: #{_lambda_.4} parent=11 // pred_check_branch
        %98 = sbr.rel (%p96) target = $region16
      $region15: #{_lambda_.4} parent=11 // pred_region
        _
      $region16: #{_lambda_.4} parent=11 // pred_fallthru
        _
    $region12: #{_lambda_.4} parent=5 // pred_fallthru
      _
    %p99 = scmp.lt.s32.totalorder %s8, 2
    // Predicated region
    $region17: #{_lambda_.4} parent=5 // pred_check
      %p100 = pneg %p99
    $region18: #{_lambda_.4} parent=5 // pred_check_branch
      %102 = sbr.rel (%p100) target = $region20
    $region19: #{_lambda_.4} parent=5 // pred_region
      // Predicated region
      $region21: #{_lambda_.4} parent=19 // pred_check
        %p103 = pneg %p28
      $region22: #{_lambda_.4} parent=19 // pred_check_branch
        %105 = sbr.rel (%p103) target = $region24
      $region23: #{_lambda_.4} parent=19 // pred_region
        %p106 = scmp.lt.s32.totalorder %s8, 1
        %s107 = scalar_select %p106, %s8, 1
        %s108 = smul.addr %s107, 128
        %s109 = smul.addr %s108, 4
        %s110 = scalar_lea.vmem %s0, %s109
      $region24: #{_lambda_.4} parent=19 // pred_fallthru
        _
    $region20: #{_lambda_.4} parent=5 // pred_fallthru
      _
    %p111 = scmp.le.s32.totalorder 1, %s8
    %p112 = scmp.lt.s32.totalorder %s8, 3
    %p113 = pnand %p111, %p112
    %p114 = pneg %p113
    // Predicated region
    $region25: #{_lambda_.4} parent=5 // pred_check
      _
    $region26: #{_lambda_.4} parent=5 // pred_check_branch
      %116 = sbr.rel (%p113) target = $region28
    $region27: #{_lambda_.4} parent=5 // pred_region
      %s117 = ssub.s32 %s8, 1
      %p118 = scmp.lt.s32.totalorder %s13, 1
      %s119 = scalar_select %p118, %s13, 1
      %s120 = smul.addr %s119, 128
      %s121 = smul.addr %s120, 4
      %s122 = scalar_lea.vmem %s0, %s121
      %p123 = pneg %p34
      %p124 = pneg %p31
      %p125 = pneg %p55
      %p126 = pneg %p52
      %p127 = pneg %p81
      %p128 = pneg %p78
      %p129 = scmp.lt.s32.totalorder %s13, 1
      %s130 = scalar_select %p129, %s13, 1
      %s131 = smul.addr %s130, 128
      %s132 = smul.addr %s131, 4
      %s133 = scalar_lea.vmem %s2, %s132
      %p134 = scmp.lt.s32.totalorder %s13, 1
      %s135 = scalar_select %p134, %s13, 1
      %s136 = smul.addr %s135, 128
      %s137 = smul.addr %s136, 4
      %s138 = scalar_lea.vmem %s0, %s137
      %p139 = scmp.lt.s32.totalorder %s13, 1
      %s140 = scalar_select %p139, %s13, 1
      %s141 = smul.addr %s140, 128
      %s142 = smul.addr %s141, 4
      %s143 = scalar_lea.vmem %s2, %s142
      %v145 = vld [vmem:[%s138] sm:$0xf]
      %v146 = vld [vmem:[%s138 + $0x4] sm:$0xf]
      %v147 = vld [vmem:[%s138 + $0x8] sm:$0xf]
      %v148 = vld [vmem:[%s138 + $0xc] sm:$0xf]
      %v149 = vld [vmem:[%s138 + $0x10] sm:$0xf]
      %v150 = vld [vmem:[%s138 + $0x14] sm:$0xf]
      %v151 = vld [vmem:[%s138 + $0x18] sm:$0xf]
      %v152 = vld [vmem:[%s138 + $0x1c] sm:$0xf]
      %v153 = vld [vmem:[%s138 + $0x20] sm:$0xf]
      %v154 = vld [vmem:[%s138 + $0x24] sm:$0xf]
      %v155 = vld [vmem:[%s138 + $0x28] sm:$0xf]
      %v156 = vld [vmem:[%s138 + $0x2c] sm:$0xf]
      %v157 = vld [vmem:[%s138 + $0x30] sm:$0xf]
      %v158 = vld [vmem:[%s138 + $0x34] sm:$0xf]
      %v159 = vld [vmem:[%s138 + $0x38] sm:$0xf]
      %v160 = vld [vmem:[%s138 + $0x3c] sm:$0xf]
      %v161 = vld [vmem:[%s138 + $0x40] sm:$0xf]
      %v162 = vld [vmem:[%s138 + $0x44] sm:$0xf]
      %v163 = vld [vmem:[%s138 + $0x48] sm:$0xf]
      %v164 = vld [vmem:[%s138 + $0x4c] sm:$0xf]
      %v165 = vld [vmem:[%s138 + $0x50] sm:$0xf]
      %v166 = vld [vmem:[%s138 + $0x54] sm:$0xf]
      %v167 = vld [vmem:[%s138 + $0x58] sm:$0xf]
      %v168 = vld [vmem:[%s138 + $0x5c] sm:$0xf]
      %v169 = vld [vmem:[%s138 + $0x60] sm:$0xf]
      %v170 = vld [vmem:[%s138 + $0x64] sm:$0xf]
      %v171 = vld [vmem:[%s138 + $0x68] sm:$0xf]
      %v172 = vld [vmem:[%s138 + $0x6c] sm:$0xf]
      %v173 = vld [vmem:[%s138 + $0x70] sm:$0xf]
      %v174 = vld [vmem:[%s138 + $0x74] sm:$0xf]
      %v175 = vld [vmem:[%s138 + $0x78] sm:$0xf]
      %v176 = vld [vmem:[%s138 + $0x7c] sm:$0xf]
      %v177 = vld [vmem:[%s138 + $0x80] sm:$0xf]
      %v178 = vld [vmem:[%s138 + $0x84] sm:$0xf]
      %v179 = vld [vmem:[%s138 + $0x88] sm:$0xf]
      %v180 = vld [vmem:[%s138 + $0x8c] sm:$0xf]
      %v181 = vld [vmem:[%s138 + $0x90] sm:$0xf]
      %v182 = vld [vmem:[%s138 + $0x94] sm:$0xf]
      %v183 = vld [vmem:[%s138 + $0x98] sm:$0xf]
      %v184 = vld [vmem:[%s138 + $0x9c] sm:$0xf]
      %v185 = vld [vmem:[%s138 + $0xa0] sm:$0xf]
      %v186 = vld [vmem:[%s138 + $0xa4] sm:$0xf]
      %v187 = vld [vmem:[%s138 + $0xa8] sm:$0xf]
      %v188 = vld [vmem:[%s138 + $0xac] sm:$0xf]
      %v189 = vld [vmem:[%s138 + $0xb0] sm:$0xf]
      %v190 = vld [vmem:[%s138 + $0xb4] sm:$0xf]
      %v191 = vld [vmem:[%s138 + $0xb8] sm:$0xf]
      %v192 = vld [vmem:[%s138 + $0xbc] sm:$0xf]
      %v193 = vld [vmem:[%s138 + $0xc0] sm:$0xf]
      %v194 = vld [vmem:[%s138 + $0xc4] sm:$0xf]
      %v195 = vld [vmem:[%s138 + $0xc8] sm:$0xf]
      %v196 = vld [vmem:[%s138 + $0xcc] sm:$0xf]
      %v197 = vld [vmem:[%s138 + $0xd0] sm:$0xf]
      %v198 = vld [vmem:[%s138 + $0xd4] sm:$0xf]
      %v199 = vld [vmem:[%s138 + $0xd8] sm:$0xf]
      %v200 = vld [vmem:[%s138 + $0xdc] sm:$0xf]
      %v201 = vld [vmem:[%s138 + $0xe0] sm:$0xf]
      %v202 = vld [vmem:[%s138 + $0xe4] sm:$0xf]
      %v203 = vld [vmem:[%s138 + $0xe8] sm:$0xf]
      %v204 = vld [vmem:[%s138 + $0xec] sm:$0xf]
      %v205 = vld [vmem:[%s138 + $0xf0] sm:$0xf]
      %v206 = vld [vmem:[%s138 + $0xf4] sm:$0xf]
      %v207 = vld [vmem:[%s138 + $0xf8] sm:$0xf]
      %v208 = vld [vmem:[%s138 + $0xfc] sm:$0xf]
      %v209 = vld [vmem:[%s138 + $0x100] sm:$0xf]
      %v210 = vld [vmem:[%s138 + $0x104] sm:$0xf]
      %v211 = vld [vmem:[%s138 + $0x108] sm:$0xf]
      %v212 = vld [vmem:[%s138 + $0x10c] sm:$0xf]
      %v213 = vld [vmem:[%s138 + $0x110] sm:$0xf]
      %v214 = vld [vmem:[%s138 + $0x114] sm:$0xf]
      %v215 = vld [vmem:[%s138 + $0x118] sm:$0xf]
      %v216 = vld [vmem:[%s138 + $0x11c] sm:$0xf]
      %v217 = vld [vmem:[%s138 + $0x120] sm:$0xf]
      %v218 = vld [vmem:[%s138 + $0x124] sm:$0xf]
      %v219 = vld [vmem:[%s138 + $0x128] sm:$0xf]
      %v220 = vld [vmem:[%s138 + $0x12c] sm:$0xf]
      %v221 = vld [vmem:[%s138 + $0x130] sm:$0xf]
      %v222 = vld [vmem:[%s138 + $0x134] sm:$0xf]
      %v223 = vld [vmem:[%s138 + $0x138] sm:$0xf]
      %v224 = vld [vmem:[%s138 + $0x13c] sm:$0xf]
      %v225 = vld [vmem:[%s138 + $0x140] sm:$0xf]
      %v226 = vld [vmem:[%s138 + $0x144] sm:$0xf]
      %v227 = vld [vmem:[%s138 + $0x148] sm:$0xf]
      %v228 = vld [vmem:[%s138 + $0x14c] sm:$0xf]
      %v229 = vld [vmem:[%s138 + $0x150] sm:$0xf]
      %v230 = vld [vmem:[%s138 + $0x154] sm:$0xf]
      %v231 = vld [vmem:[%s138 + $0x158] sm:$0xf]
      %v232 = vld [vmem:[%s138 + $0x15c] sm:$0xf]
      %v233 = vld [vmem:[%s138 + $0x160] sm:$0xf]
      %v234 = vld [vmem:[%s138 + $0x164] sm:$0xf]
      %v235 = vld [vmem:[%s138 + $0x168] sm:$0xf]
      %v236 = vld [vmem:[%s138 + $0x16c] sm:$0xf]
      %v237 = vld [vmem:[%s138 + $0x170] sm:$0xf]
      %v238 = vld [vmem:[%s138 + $0x174] sm:$0xf]
      %v239 = vld [vmem:[%s138 + $0x178] sm:$0xf]
      %v240 = vld [vmem:[%s138 + $0x17c] sm:$0xf]
      %v241 = vld [vmem:[%s138 + $0x180] sm:$0xf]
      %v242 = vld [vmem:[%s138 + $0x184] sm:$0xf]
      %v243 = vld [vmem:[%s138 + $0x188] sm:$0xf]
      %v244 = vld [vmem:[%s138 + $0x18c] sm:$0xf]
      %v245 = vld [vmem:[%s138 + $0x190] sm:$0xf]
      %v246 = vld [vmem:[%s138 + $0x194] sm:$0xf]
      %v247 = vld [vmem:[%s138 + $0x198] sm:$0xf]
      %v248 = vld [vmem:[%s138 + $0x19c] sm:$0xf]
      %v249 = vld [vmem:[%s138 + $0x1a0] sm:$0xf]
      %v250 = vld [vmem:[%s138 + $0x1a4] sm:$0xf]
      %v251 = vld [vmem:[%s138 + $0x1a8] sm:$0xf]
      %v252 = vld [vmem:[%s138 + $0x1ac] sm:$0xf]
      %v253 = vld [vmem:[%s138 + $0x1b0] sm:$0xf]
      %v254 = vld [vmem:[%s138 + $0x1b4] sm:$0xf]
      %v255 = vld [vmem:[%s138 + $0x1b8] sm:$0xf]
      %v256 = vld [vmem:[%s138 + $0x1bc] sm:$0xf]
      %v257 = vld [vmem:[%s138 + $0x1c0] sm:$0xf]
      %v258 = vld [vmem:[%s138 + $0x1c4] sm:$0xf]
      %v259 = vld [vmem:[%s138 + $0x1c8] sm:$0xf]
      %v260 = vld [vmem:[%s138 + $0x1cc] sm:$0xf]
      %v261 = vld [vmem:[%s138 + $0x1d0] sm:$0xf]
      %v262 = vld [vmem:[%s138 + $0x1d4] sm:$0xf]
      %v263 = vld [vmem:[%s138 + $0x1d8] sm:$0xf]
      %v264 = vld [vmem:[%s138 + $0x1dc] sm:$0xf]
      %v265 = vld [vmem:[%s138 + $0x1e0] sm:$0xf]
      %v266 = vld [vmem:[%s138 + $0x1e4] sm:$0xf]
      %v267 = vld [vmem:[%s138 + $0x1e8] sm:$0xf]
      %v268 = vld [vmem:[%s138 + $0x1ec] sm:$0xf]
      %v269 = vld [vmem:[%s138 + $0x1f0] sm:$0xf]
      %v270 = vld [vmem:[%s138 + $0x1f4] sm:$0xf]
      %v271 = vld [vmem:[%s138 + $0x1f8] sm:$0xf]
      %v272 = vld [vmem:[%s138 + $0x1fc] sm:$0xf]
      %v273 = vld [vmem:[%s1] sm:$0xf]
      %v274 = vld [vmem:[%s1 + $0x4] sm:$0xf]
      %v275 = vld [vmem:[%s1 + $0x8] sm:$0xf]
      %v276 = vld [vmem:[%s1 + $0xc] sm:$0xf]
      %v277 = vld [vmem:[%s1 + $0x10] sm:$0xf]
      %v278 = vld [vmem:[%s1 + $0x14] sm:$0xf]
      %v279 = vld [vmem:[%s1 + $0x18] sm:$0xf]
      %v280 = vld [vmem:[%s1 + $0x1c] sm:$0xf]
      %v281 = vld [vmem:[%s1 + $0x20] sm:$0xf]
      %v282 = vld [vmem:[%s1 + $0x24] sm:$0xf]
      %v283 = vld [vmem:[%s1 + $0x28] sm:$0xf]
      %v284 = vld [vmem:[%s1 + $0x2c] sm:$0xf]
      %v285 = vld [vmem:[%s1 + $0x30] sm:$0xf]
      %v286 = vld [vmem:[%s1 + $0x34] sm:$0xf]
      %v287 = vld [vmem:[%s1 + $0x38] sm:$0xf]
      %v288 = vld [vmem:[%s1 + $0x3c] sm:$0xf]
      %v417 = vunpack.c.l.b16 %v145
      %v418 = vunpack.c.l.b16 %v146
      %v419 = vunpack.c.l.b16 %v147
      %v420 = vunpack.c.l.b16 %v148
      %v421 = vunpack.c.l.b16 %v149
      %v422 = vunpack.c.l.b16 %v150
      %v423 = vunpack.c.l.b16 %v151
      %v424 = vunpack.c.l.b16 %v152
      %v425 = vunpack.c.l.b16 %v153
      %v426 = vunpack.c.l.b16 %v154
      %v427 = vunpack.c.l.b16 %v155
      %v428 = vunpack.c.l.b16 %v156
      %v429 = vunpack.c.l.b16 %v157
      %v430 = vunpack.c.l.b16 %v158
      %v431 = vunpack.c.l.b16 %v159
      %v432 = vunpack.c.l.b16 %v160
      %v433 = vunpack.c.l.b16 %v161
      %v434 = vunpack.c.l.b16 %v162
      %v435 = vunpack.c.l.b16 %v163
      %v436 = vunpack.c.l.b16 %v164
      %v437 = vunpack.c.l.b16 %v165
      %v438 = vunpack.c.l.b16 %v166
      %v439 = vunpack.c.l.b16 %v167
      %v440 = vunpack.c.l.b16 %v168
      %v441 = vunpack.c.l.b16 %v169
      %v442 = vunpack.c.l.b16 %v170
      %v443 = vunpack.c.l.b16 %v171
      %v444 = vunpack.c.l.b16 %v172
      %v445 = vunpack.c.l.b16 %v173
      %v446 = vunpack.c.l.b16 %v174
      %v447 = vunpack.c.l.b16 %v175
      %v448 = vunpack.c.l.b16 %v176
      %v449 = vunpack.c.l.b16 %v177
      %v450 = vunpack.c.l.b16 %v178
      %v451 = vunpack.c.l.b16 %v179
      %v452 = vunpack.c.l.b16 %v180
      %v453 = vunpack.c.l.b16 %v181
      %v454 = vunpack.c.l.b16 %v182
      %v455 = vunpack.c.l.b16 %v183
      %v456 = vunpack.c.l.b16 %v184
      %v457 = vunpack.c.l.b16 %v185
      %v458 = vunpack.c.l.b16 %v186
      %v459 = vunpack.c.l.b16 %v187
      %v460 = vunpack.c.l.b16 %v188
      %v461 = vunpack.c.l.b16 %v189
      %v462 = vunpack.c.l.b16 %v190
      %v463 = vunpack.c.l.b16 %v191
      %v464 = vunpack.c.l.b16 %v192
      %v465 = vunpack.c.l.b16 %v193
      %v466 = vunpack.c.l.b16 %v194
      %v467 = vunpack.c.l.b16 %v195
      %v468 = vunpack.c.l.b16 %v196
      %v469 = vunpack.c.l.b16 %v197
      %v470 = vunpack.c.l.b16 %v198
      %v471 = vunpack.c.l.b16 %v199
      %v472 = vunpack.c.l.b16 %v200
      %v473 = vunpack.c.l.b16 %v201
      %v474 = vunpack.c.l.b16 %v202
      %v475 = vunpack.c.l.b16 %v203
      %v476 = vunpack.c.l.b16 %v204
      %v477 = vunpack.c.l.b16 %v205
      %v478 = vunpack.c.l.b16 %v206
      %v479 = vunpack.c.l.b16 %v207
      %v480 = vunpack.c.l.b16 %v208
      %v481 = vunpack.c.l.b16 %v209
      %v482 = vunpack.c.l.b16 %v210
      %v483 = vunpack.c.l.b16 %v211
      %v484 = vunpack.c.l.b16 %v212
      %v485 = vunpack.c.l.b16 %v213
      %v486 = vunpack.c.l.b16 %v214
      %v487 = vunpack.c.l.b16 %v215
      %v488 = vunpack.c.l.b16 %v216
      %v489 = vunpack.c.l.b16 %v217
      %v490 = vunpack.c.l.b16 %v218
      %v491 = vunpack.c.l.b16 %v219
      %v492 = vunpack.c.l.b16 %v220
      %v493 = vunpack.c.l.b16 %v221
      %v494 = vunpack.c.l.b16 %v222
      %v495 = vunpack.c.l.b16 %v223
      %v496 = vunpack.c.l.b16 %v224
      %v497 = vunpack.c.l.b16 %v225
      %v498 = vunpack.c.l.b16 %v226
      %v499 = vunpack.c.l.b16 %v227
      %v500 = vunpack.c.l.b16 %v228
      %v501 = vunpack.c.l.b16 %v229
      %v502 = vunpack.c.l.b16 %v230
      %v503 = vunpack.c.l.b16 %v231
      %v504 = vunpack.c.l.b16 %v232
      %v505 = vunpack.c.l.b16 %v233
      %v506 = vunpack.c.l.b16 %v234
      %v507 = vunpack.c.l.b16 %v235
      %v508 = vunpack.c.l.b16 %v236
      %v509 = vunpack.c.l.b16 %v237
      %v510 = vunpack.c.l.b16 %v238
      %v511 = vunpack.c.l.b16 %v239
      %v512 = vunpack.c.l.b16 %v240
      %v513 = vunpack.c.l.b16 %v241
      %v514 = vunpack.c.l.b16 %v242
      %v515 = vunpack.c.l.b16 %v243
      %v516 = vunpack.c.l.b16 %v244
      %v517 = vunpack.c.l.b16 %v245
      %v518 = vunpack.c.l.b16 %v246
      %v519 = vunpack.c.l.b16 %v247
      %v520 = vunpack.c.l.b16 %v248
      %v521 = vunpack.c.l.b16 %v249
      %v522 = vunpack.c.l.b16 %v250
      %v523 = vunpack.c.l.b16 %v251
      %v524 = vunpack.c.l.b16 %v252
      %v525 = vunpack.c.l.b16 %v253
      %v526 = vunpack.c.l.b16 %v254
      %v527 = vunpack.c.l.b16 %v255
      %v528 = vunpack.c.l.b16 %v256
      %v529 = vunpack.c.l.b16 %v257
      %v530 = vunpack.c.l.b16 %v258
      %v531 = vunpack.c.l.b16 %v259
      %v532 = vunpack.c.l.b16 %v260
      %v533 = vunpack.c.l.b16 %v261
      %v534 = vunpack.c.l.b16 %v262
      %v535 = vunpack.c.l.b16 %v263
      %v536 = vunpack.c.l.b16 %v264
      %v537 = vunpack.c.l.b16 %v265
      %v538 = vunpack.c.l.b16 %v266
      %v539 = vunpack.c.l.b16 %v267
      %v540 = vunpack.c.l.b16 %v268
      %v541 = vunpack.c.l.b16 %v269
      %v542 = vunpack.c.l.b16 %v270
      %v543 = vunpack.c.l.b16 %v271
      %v544 = vunpack.c.l.b16 %v272
      %v545 = vpack.c.b16 %v418, %v417
      %v546 = vpack.c.b16 %v420, %v419
      %v547 = vpack.c.b16 %v422, %v421
      %v548 = vpack.c.b16 %v424, %v423
      %v549 = vpack.c.b16 %v426, %v425
      %v550 = vpack.c.b16 %v428, %v427
      %v551 = vpack.c.b16 %v430, %v429
      %v552 = vpack.c.b16 %v432, %v431
      %v553 = vpack.c.b16 %v434, %v433
      %v554 = vpack.c.b16 %v436, %v435
      %v555 = vpack.c.b16 %v438, %v437
      %v556 = vpack.c.b16 %v440, %v439
      %v557 = vpack.c.b16 %v442, %v441
      %v558 = vpack.c.b16 %v444, %v443
      %v559 = vpack.c.b16 %v446, %v445
      %v560 = vpack.c.b16 %v448, %v447
      %v561 = vpack.c.b16 %v450, %v449
      %v562 = vpack.c.b16 %v452, %v451
      %v563 = vpack.c.b16 %v454, %v453
      %v564 = vpack.c.b16 %v456, %v455
      %v565 = vpack.c.b16 %v458, %v457
      %v566 = vpack.c.b16 %v460, %v459
      %v567 = vpack.c.b16 %v462, %v461
      %v568 = vpack.c.b16 %v464, %v463
      %v569 = vpack.c.b16 %v466, %v465
      %v570 = vpack.c.b16 %v468, %v467
      %v571 = vpack.c.b16 %v470, %v469
      %v572 = vpack.c.b16 %v472, %v471
      %v573 = vpack.c.b16 %v474, %v473
      %v574 = vpack.c.b16 %v476, %v475
      %v575 = vpack.c.b16 %v478, %v477
      %v576 = vpack.c.b16 %v480, %v479
      %v577 = vpack.c.b16 %v482, %v481
      %v578 = vpack.c.b16 %v484, %v483
      %v579 = vpack.c.b16 %v486, %v485
      %v580 = vpack.c.b16 %v488, %v487
      %v581 = vpack.c.b16 %v490, %v489
      %v582 = vpack.c.b16 %v492, %v491
      %v583 = vpack.c.b16 %v494, %v493
      %v584 = vpack.c.b16 %v496, %v495
      %v585 = vpack.c.b16 %v498, %v497
      %v586 = vpack.c.b16 %v500, %v499
      %v587 = vpack.c.b16 %v502, %v501
      %v588 = vpack.c.b16 %v504, %v503
      %v589 = vpack.c.b16 %v506, %v505
      %v590 = vpack.c.b16 %v508, %v507
      %v591 = vpack.c.b16 %v510, %v509
      %v592 = vpack.c.b16 %v512, %v511
      %v593 = vpack.c.b16 %v514, %v513
      %v594 = vpack.c.b16 %v516, %v515
      %v595 = vpack.c.b16 %v518, %v517
      %v596 = vpack.c.b16 %v520, %v519
      %v597 = vpack.c.b16 %v522, %v521
      %v598 = vpack.c.b16 %v524, %v523
      %v599 = vpack.c.b16 %v526, %v525
      %v600 = vpack.c.b16 %v528, %v527
      %v601 = vpack.c.b16 %v530, %v529
      %v602 = vpack.c.b16 %v532, %v531
      %v603 = vpack.c.b16 %v534, %v533
      %v604 = vpack.c.b16 %v536, %v535
      %v605 = vpack.c.b16 %v538, %v537
      %v606 = vpack.c.b16 %v540, %v539
      %v607 = vpack.c.b16 %v542, %v541
      %v608 = vpack.c.b16 %v544, %v543
      %v689 = vunpack.c.l.b16 %v273
      %v690 = vunpack.c.l.b16 %v274
      %v691 = vunpack.c.l.b16 %v275
      %v692 = vunpack.c.l.b16 %v276
      %v693 = vunpack.c.l.b16 %v277
      %v694 = vunpack.c.l.b16 %v278
      %v695 = vunpack.c.l.b16 %v279
      %v696 = vunpack.c.l.b16 %v280
      %v697 = vunpack.c.l.b16 %v281
      %v698 = vunpack.c.l.b16 %v282
      %v699 = vunpack.c.l.b16 %v283
      %v700 = vunpack.c.l.b16 %v284
      %v701 = vunpack.c.l.b16 %v285
      %v702 = vunpack.c.l.b16 %v286
      %v703 = vunpack.c.l.b16 %v287
      %v704 = vunpack.c.l.b16 %v288
      %v705 = vpack.c.b16 %v690, %v689
      %v706 = vpack.c.b16 %v692, %v691
      %v707 = vpack.c.b16 %v694, %v693
      %v708 = vpack.c.b16 %v696, %v695
      %v709 = vpack.c.b16 %v698, %v697
      %v710 = vpack.c.b16 %v700, %v699
      %v711 = vpack.c.b16 %v702, %v701
      %v712 = vpack.c.b16 %v704, %v703
      %721 = vmatprep.subr.bf16.mxu0 0
      %722 = vmatpush1.bf16.msra.mxu0 %v705
      %723 = vmatprep.subr.bf16.mxu0 0
      %724 = vmatpush1.bf16.msra.mxu0 %v706
      %725 = vmatprep.subr.bf16.mxu0 0
      %726 = vmatpush1.bf16.msra.mxu0 %v707
      %727 = vmatprep.subr.bf16.mxu0 0
      %728 = vmatpush1.bf16.msra.mxu0 %v708
      %729 = vmatprep.subr.bf16.mxu0 0
      %730 = vmatpush1.bf16.msra.mxu0 %v709
      %731 = vmatprep.subr.bf16.mxu0 0
      %732 = vmatpush1.bf16.msra.mxu0 %v710
      %733 = vmatprep.subr.bf16.mxu0 0
      %734 = vmatpush1.bf16.msra.mxu0 %v711
      %735 = vmatprep.subr.bf16.mxu0 0
      %736 = vmatpush1.bf16.msra.mxu0 %v712
      %737 = vmatprep.subr.bf16.mxu0 0
      %738 = vmatpush1.bf16.msra.mxu0 0
      %739 = vmatprep.subr.bf16.mxu0 0
      %740 = vmatpush1.bf16.msra.mxu0 0
      %741 = vmatprep.subr.bf16.mxu0 0
      %742 = vmatpush1.bf16.msra.mxu0 0
      %743 = vmatprep.subr.bf16.mxu0 0
      %744 = vmatpush1.bf16.msra.mxu0 0
      %745 = vmatprep.subr.bf16.mxu0 0
      %746 = vmatpush1.bf16.msra.mxu0 0
      %747 = vmatprep.subr.bf16.mxu0 0
      %748 = vmatpush1.bf16.msra.mxu0 0
      %749 = vmatprep.subr.bf16.mxu0 0
      %750 = vmatpush1.bf16.msra.mxu0 0
      %751 = vmatprep.subr.bf16.mxu0 0
      %752 = vmatpush1.bf16.msra.mxu0 0
      %753 = vmatprep.mubr.bf16.mxu0 0
      %754 = vmatmul.mubr.bf16.gmra.mrb[0].mxu0 %v545
      %v755 = vpop.f32.mrb[0].mxu0
      %v756 = vadd.f32 0.0, %v755
      %v757 = vpop.f32.mrb[0].mxu0
      %v758 = vpop.f32.mrb[0].mxu0
      %v759 = vadd.f32 0.0, %v758
      %v760 = vpop.f32.mrb[0].mxu0
      %761 = vmatprep.mubr.bf16.mxu0 0
      %762 = vmatmul.mubr.bf16.gmra.mrb[0].mxu0 %v546
      %v763 = vpop.f32.mrb[0].mxu0
      %v764 = vadd.f32 0.0, %v763
      %v765 = vpop.f32.mrb[0].mxu0
      %v766 = vpop.f32.mrb[0].mxu0
      %v767 = vadd.f32 0.0, %v766
      %v768 = vpop.f32.mrb[0].mxu0
      %769 = vmatprep.mubr.bf16.mxu0 0
      %770 = vmatmul.mubr.bf16.gmra.mrb[0].mxu0 %v547
      %v771 = vpop.f32.mrb[0].mxu0
      %v772 = vadd.f32 0.0, %v771
      %v773 = vpop.f32.mrb[0].mxu0
      %v774 = vpop.f32.mrb[0].mxu0
      %v775 = vadd.f32 0.0, %v774
      %v776 = vpop.f32.mrb[0].mxu0
      %777 = vmatprep.mubr.bf16.mxu0 0
      %778 = vmatmul.mubr.bf16.gmra.mrb[0].mxu0 %v548
      %v779 = vpop.f32.mrb[0].mxu0
      %v780 = vadd.f32 0.0, %v779
      %v781 = vpop.f32.mrb[0].mxu0
      %v782 = vpop.f32.mrb[0].mxu0
      %v783 = vadd.f32 0.0, %v782
      %v784 = vpop.f32.mrb[0].mxu0
      %785 = vmatprep.mubr.bf16.mxu0 0
      %786 = vmatmul.mubr.bf16.gmra.mrb[0].mxu0 %v549
      %v787 = vpop.f32.mrb[0].mxu0
      %v788 = vadd.f32 0.0, %v787
      %v789 = vpop.f32.mrb[0].mxu0
      %v790 = vpop.f32.mrb[0].mxu0
      %v791 = vadd.f32 0.0, %v790
      %v792 = vpop.f32.mrb[0].mxu0
      %793 = vmatprep.mubr.bf16.mxu0 0
      %794 = vmatmul.mubr.bf16.gmra.mrb[0].mxu0 %v550
      %v795 = vpop.f32.mrb[0].mxu0
      %v796 = vadd.f32 0.0, %v795
      %v797 = vpop.f32.mrb[0].mxu0
      %v798 = vpop.f32.mrb[0].mxu0
      %v799 = vadd.f32 0.0, %v798
      %v800 = vpop.f32.mrb[0].mxu0
      %801 = vmatprep.mubr.bf16.mxu0 0
      %802 = vmatmul.mubr.bf16.gmra.mrb[0].mxu0 %v551
      %v803 = vpop.f32.mrb[0].mxu0
      %v804 = vadd.f32 0.0, %v803
      %v805 = vpop.f32.mrb[0].mxu0
      %v806 = vpop.f32.mrb[0].mxu0
      %v807 = vadd.f32 0.0, %v806
      %v808 = vpop.f32.mrb[0].mxu0
      %809 = vmatprep.mubr.bf16.mxu0 0
      %810 = vmatmul.mubr.bf16.gmra.mrb[0].mxu0 %v552
      %v811 = vpop.f32.mrb[0].mxu0
      %v812 = vadd.f32 0.0, %v811
      %v813 = vpop.f32.mrb[0].mxu0
      %v814 = vpop.f32.mrb[0].mxu0
      %v815 = vadd.f32 0.0, %v814
      %v816 = vpop.f32.mrb[0].mxu0
      %817 = vmatprep.mubr.bf16.mxu0 0
      %818 = vmatmul.mubr.bf16.gmra.mrb[0].mxu0 %v553
      %v819 = vpop.f32.mrb[0].mxu0
      %v820 = vadd.f32 0.0, %v819
      %v821 = vpop.f32.mrb[0].mxu0
      %v822 = vpop.f32.mrb[0].mxu0
      %v823 = vadd.f32 0.0, %v822
      %v824 = vpop.f32.mrb[0].mxu0
      %825 = vmatprep.mubr.bf16.mxu0 0
      %826 = vmatmul.mubr.bf16.gmra.mrb[0].mxu0 %v554
      %v827 = vpop.f32.mrb[0].mxu0
      %v828 = vadd.f32 0.0, %v827
      %v829 = vpop.f32.mrb[0].mxu0
      %v830 = vpop.f32.mrb[0].mxu0
      %v831 = vadd.f32 0.0, %v830
      %v832 = vpop.f32.mrb[0].mxu0
      %833 = vmatprep.mubr.bf16.mxu0 0
      %834 = vmatmul.mubr.bf16.gmra.mrb[0].mxu0 %v555
      %v835 = vpop.f32.mrb[0].mxu0
      %v836 = vadd.f32 0.0, %v835
      %v837 = vpop.f32.mrb[0].mxu0
      %v838 = vpop.f32.mrb[0].mxu0
      %v839 = vadd.f32 0.0, %v838
      %v840 = vpop.f32.mrb[0].mxu0
      %841 = vmatprep.mubr.bf16.mxu0 0
      %842 = vmatmul.mubr.bf16.gmra.mrb[0].mxu0 %v556
      %v843 = vpop.f32.mrb[0].mxu0
      %v844 = vadd.f32 0.0, %v843
      %v845 = vpop.f32.mrb[0].mxu0
      %v846 = vpop.f32.mrb[0].mxu0
      %v847 = vadd.f32 0.0, %v846
      %v848 = vpop.f32.mrb[0].mxu0
      %849 = vmatprep.mubr.bf16.mxu0 0
      %850 = vmatmul.mubr.bf16.gmra.mrb[0].mxu0 %v557
      %v851 = vpop.f32.mrb[0].mxu0
      %v852 = vadd.f32 0.0, %v851
      %v853 = vpop.f32.mrb[0].mxu0
      %v854 = vpop.f32.mrb[0].mxu0
      %v855 = vadd.f32 0.0, %v854
      %v856 = vpop.f32.mrb[0].mxu0
      %857 = vmatprep.mubr.bf16.mxu0 0
      %858 = vmatmul.mubr.bf16.gmra.mrb[0].mxu0 %v558
      %v859 = vpop.f32.mrb[0].mxu0
      %v860 = vadd.f32 0.0, %v859
      %v861 = vpop.f32.mrb[0].mxu0
      %v862 = vpop.f32.mrb[0].mxu0
      %v863 = vadd.f32 0.0, %v862
      %v864 = vpop.f32.mrb[0].mxu0
      %865 = vmatprep.mubr.bf16.mxu0 0
      %866 = vmatmul.mubr.bf16.gmra.mrb[0].mxu0 %v559
      %v867 = vpop.f32.mrb[0].mxu0
      %v868 = vadd.f32 0.0, %v867
      %v869 = vpop.f32.mrb[0].mxu0
      %v870 = vpop.f32.mrb[0].mxu0
      %v871 = vadd.f32 0.0, %v870
      %v872 = vpop.f32.mrb[0].mxu0
      %873 = vmatprep.mubr.bf16.mxu0 0
      %874 = vmatmul.mubr.bf16.gmra.mrb[0].mxu0 %v560
      %v875 = vpop.f32.mrb[0].mxu0
      %v876 = vadd.f32 0.0, %v875
      %v877 = vpop.f32.mrb[0].mxu0
      %v878 = vpop.f32.mrb[0].mxu0
      %v879 = vadd.f32 0.0, %v878
      %v880 = vpop.f32.mrb[0].mxu0
      %881 = vmatprep.mubr.bf16.mxu0 0
      %882 = vmatmul.mubr.bf16.gmra.mrb[0].mxu0 %v561
      %v883 = vpop.f32.mrb[0].mxu0
      %v884 = vadd.f32 0.0, %v883
      %v885 = vpop.f32.mrb[0].mxu0
      %v886 = vpop.f32.mrb[0].mxu0
      %v887 = vadd.f32 0.0, %v886
      %v888 = vpop.f32.mrb[0].mxu0
      %889 = vmatprep.mubr.bf16.mxu0 0
      %890 = vmatmul.mubr.bf16.gmra.mrb[0].mxu0 %v562
      %v891 = vpop.f32.mrb[0].mxu0
      %v892 = vadd.f32 0.0, %v891
      %v893 = vpop.f32.mrb[0].mxu0
      %v894 = vpop.f32.mrb[0].mxu0
      %v895 = vadd.f32 0.0, %v894
      %v896 = vpop.f32.mrb[0].mxu0
      %897 = vmatprep.mubr.bf16.mxu0 0
      %898 = vmatmul.mubr.bf16.gmra.mrb[0].mxu0 %v563
      %v899 = vpop.f32.mrb[0].mxu0
      %v900 = vadd.f32 0.0, %v899
      %v901 = vpop.f32.mrb[0].mxu0
      %v902 = vpop.f32.mrb[0].mxu0
      %v903 = vadd.f32 0.0, %v902
      %v904 = vpop.f32.mrb[0].mxu0
      %905 = vmatprep.mubr.bf16.mxu0 0
      %906 = vmatmul.mubr.bf16.gmra.mrb[0].mxu0 %v564
      %v907 = vpop.f32.mrb[0].mxu0
      %v908 = vadd.f32 0.0, %v907
      %v909 = vpop.f32.mrb[0].mxu0
      %v910 = vpop.f32.mrb[0].mxu0
      %v911 = vadd.f32 0.0, %v910
      %v912 = vpop.f32.mrb[0].mxu0
      %913 = vmatprep.mubr.bf16.mxu0 0
      %914 = vmatmul.mubr.bf16.gmra.mrb[0].mxu0 %v565
      %v915 = vpop.f32.mrb[0].mxu0
      %v916 = vadd.f32 0.0, %v915
      %v917 = vpop.f32.mrb[0].mxu0
      %v918 = vpop.f32.mrb[0].mxu0
      %v919 = vadd.f32 0.0, %v918
      %v920 = vpop.f32.mrb[0].mxu0
      %921 = vmatprep.mubr.bf16.mxu0 0
      %922 = vmatmul.mubr.bf16.gmra.mrb[0].mxu0 %v566
      %v923 = vpop.f32.mrb[0].mxu0
      %v924 = vadd.f32 0.0, %v923
      %v925 = vpop.f32.mrb[0].mxu0
      %v926 = vpop.f32.mrb[0].mxu0
      %v927 = vadd.f32 0.0, %v926
      %v928 = vpop.f32.mrb[0].mxu0
      %929 = vmatprep.mubr.bf16.mxu0 0
      %930 = vmatmul.mubr.bf16.gmra.mrb[0].mxu0 %v567
      %v931 = vpop.f32.mrb[0].mxu0
      %v932 = vadd.f32 0.0, %v931
      %v933 = vpop.f32.mrb[0].mxu0
      %v934 = vpop.f32.mrb[0].mxu0
      %v935 = vadd.f32 0.0, %v934
      %v936 = vpop.f32.mrb[0].mxu0
      %937 = vmatprep.mubr.bf16.mxu0 0
      %938 = vmatmul.mubr.bf16.gmra.mrb[0].mxu0 %v568
      %v939 = vpop.f32.mrb[0].mxu0
      %v940 = vadd.f32 0.0, %v939
      %v941 = vpop.f32.mrb[0].mxu0
      %v942 = vpop.f32.mrb[0].mxu0
      %v943 = vadd.f32 0.0, %v942
      %v944 = vpop.f32.mrb[0].mxu0
      %945 = vmatprep.mubr.bf16.mxu0 0
      %946 = vmatmul.mubr.bf16.gmra.mrb[0].mxu0 %v569
      %v947 = vpop.f32.mrb[0].mxu0
      %v948 = vadd.f32 0.0, %v947
      %v949 = vpop.f32.mrb[0].mxu0
      %v950 = vpop.f32.mrb[0].mxu0
      %v951 = vadd.f32 0.0, %v950
      %v952 = vpop.f32.mrb[0].mxu0
      %953 = vmatprep.mubr.bf16.mxu0 0
      %954 = vmatmul.mubr.bf16.gmra.mrb[0].mxu0 %v570
      %v955 = vpop.f32.mrb[0].mxu0
      %v956 = vadd.f32 0.0, %v955
      %v957 = vpop.f32.mrb[0].mxu0
      %v958 = vpop.f32.mrb[0].mxu0
      %v959 = vadd.f32 0.0, %v958
      %v960 = vpop.f32.mrb[0].mxu0
      %961 = vmatprep.mubr.bf16.mxu0 0
      %962 = vmatmul.mubr.bf16.gmra.mrb[0].mxu0 %v571
      %v963 = vpop.f32.mrb[0].mxu0
      %v964 = vadd.f32 0.0, %v963
      %v965 = vpop.f32.mrb[0].mxu0
      %v966 = vpop.f32.mrb[0].mxu0
      %v967 = vadd.f32 0.0, %v966
      %v968 = vpop.f32.mrb[0].mxu0
      %969 = vmatprep.mubr.bf16.mxu0 0
      %970 = vmatmul.mubr.bf16.gmra.mrb[0].mxu0 %v572
      %v971 = vpop.f32.mrb[0].mxu0
      %v972 = vadd.f32 0.0, %v971
      %v973 = vpop.f32.mrb[0].mxu0
      %v974 = vpop.f32.mrb[0].mxu0
      %v975 = vadd.f32 0.0, %v974
      %v976 = vpop.f32.mrb[0].mxu0
      %977 = vmatprep.mubr.bf16.mxu0 0
      %978 = vmatmul.mubr.bf16.gmra.mrb[0].mxu0 %v573
      %v979 = vpop.f32.mrb[0].mxu0
      %v980 = vadd.f32 0.0, %v979
      %v981 = vpop.f32.mrb[0].mxu0
      %v982 = vpop.f32.mrb[0].mxu0
      %v983 = vadd.f32 0.0, %v982
      %v984 = vpop.f32.mrb[0].mxu0
      %985 = vmatprep.mubr.bf16.mxu0 0
      %986 = vmatmul.mubr.bf16.gmra.mrb[0].mxu0 %v574
      %v987 = vpop.f32.mrb[0].mxu0
      %v988 = vadd.f32 0.0, %v987
      %v989 = vpop.f32.mrb[0].mxu0
      %v990 = vpop.f32.mrb[0].mxu0
      %v991 = vadd.f32 0.0, %v990
      %v992 = vpop.f32.mrb[0].mxu0
      %993 = vmatprep.mubr.bf16.mxu0 0
      %994 = vmatmul.mubr.bf16.gmra.mrb[0].mxu0 %v575
      %v995 = vpop.f32.mrb[0].mxu0
      %v996 = vadd.f32 0.0, %v995
      %v997 = vpop.f32.mrb[0].mxu0
      %v998 = vpop.f32.mrb[0].mxu0
      %v999 = vadd.f32 0.0, %v998
      %v1000 = vpop.f32.mrb[0].mxu0
      %1001 = vmatprep.mubr.bf16.mxu0 0
      %1002 = vmatmul.mubr.bf16.gmra.mrb[0].mxu0 %v576
      %v1003 = vpop.f32.mrb[0].mxu0
      %v1004 = vadd.f32 0.0, %v1003
      %v1005 = vpop.f32.mrb[0].mxu0
      %v1006 = vpop.f32.mrb[0].mxu0
      %v1007 = vadd.f32 0.0, %v1006
      %v1008 = vpop.f32.mrb[0].mxu0
      %1009 = vmatprep.mubr.bf16.mxu0 0
      %1010 = vmatmul.mubr.bf16.gmra.mrb[0].mxu0 %v577
      %v1011 = vpop.f32.mrb[0].mxu0
      %v1012 = vadd.f32 0.0, %v1011
      %v1013 = vpop.f32.mrb[0].mxu0
      %v1014 = vpop.f32.mrb[0].mxu0
      %v1015 = vadd.f32 0.0, %v1014
      %v1016 = vpop.f32.mrb[0].mxu0
      %1017 = vmatprep.mubr.bf16.mxu0 0
      %1018 = vmatmul.mubr.bf16.gmra.mrb[0].mxu0 %v578
      %v1019 = vpop.f32.mrb[0].mxu0
      %v1020 = vadd.f32 0.0, %v1019
      %v1021 = vpop.f32.mrb[0].mxu0
      %v1022 = vpop.f32.mrb[0].mxu0
      %v1023 = vadd.f32 0.0, %v1022
      %v1024 = vpop.f32.mrb[0].mxu0
      %1025 = vmatprep.mubr.bf16.mxu0 0
      %1026 = vmatmul.mubr.bf16.gmra.mrb[0].mxu0 %v579
      %v1027 = vpop.f32.mrb[0].mxu0
      %v1028 = vadd.f32 0.0, %v1027
      %v1029 = vpop.f32.mrb[0].mxu0
      %v1030 = vpop.f32.mrb[0].mxu0
      %v1031 = vadd.f32 0.0, %v1030
      %v1032 = vpop.f32.mrb[0].mxu0
      %1033 = vmatprep.mubr.bf16.mxu0 0
      %1034 = vmatmul.mubr.bf16.gmra.mrb[0].mxu0 %v580
      %v1035 = vpop.f32.mrb[0].mxu0
      %v1036 = vadd.f32 0.0, %v1035
      %v1037 = vpop.f32.mrb[0].mxu0
      %v1038 = vpop.f32.mrb[0].mxu0
      %v1039 = vadd.f32 0.0, %v1038
      %v1040 = vpop.f32.mrb[0].mxu0
      %1041 = vmatprep.mubr.bf16.mxu0 0
      %1042 = vmatmul.mubr.bf16.gmra.mrb[0].mxu0 %v581
      %v1043 = vpop.f32.mrb[0].mxu0
      %v1044 = vadd.f32 0.0, %v1043
      %v1045 = vpop.f32.mrb[0].mxu0
      %v1046 = vpop.f32.mrb[0].mxu0
      %v1047 = vadd.f32 0.0, %v1046
      %v1048 = vpop.f32.mrb[0].mxu0
      %1049 = vmatprep.mubr.bf16.mxu0 0
      %1050 = vmatmul.mubr.bf16.gmra.mrb[0].mxu0 %v582
      %v1051 = vpop.f32.mrb[0].mxu0
      %v1052 = vadd.f32 0.0, %v1051
      %v1053 = vpop.f32.mrb[0].mxu0
      %v1054 = vpop.f32.mrb[0].mxu0
      %v1055 = vadd.f32 0.0, %v1054
      %v1056 = vpop.f32.mrb[0].mxu0
      %1057 = vmatprep.mubr.bf16.mxu0 0
      %1058 = vmatmul.mubr.bf16.gmra.mrb[0].mxu0 %v583
      %v1059 = vpop.f32.mrb[0].mxu0
      %v1060 = vadd.f32 0.0, %v1059
      %v1061 = vpop.f32.mrb[0].mxu0
      %v1062 = vpop.f32.mrb[0].mxu0
      %v1063 = vadd.f32 0.0, %v1062
      %v1064 = vpop.f32.mrb[0].mxu0
      %1065 = vmatprep.mubr.bf16.mxu0 0
      %1066 = vmatmul.mubr.bf16.gmra.mrb[0].mxu0 %v584
      %v1067 = vpop.f32.mrb[0].mxu0
      %v1068 = vadd.f32 0.0, %v1067
      %v1069 = vpop.f32.mrb[0].mxu0
      %v1070 = vpop.f32.mrb[0].mxu0
      %v1071 = vadd.f32 0.0, %v1070
      %v1072 = vpop.f32.mrb[0].mxu0
      %1073 = vmatprep.mubr.bf16.mxu0 0
      %1074 = vmatmul.mubr.bf16.gmra.mrb[0].mxu0 %v585
      %v1075 = vpop.f32.mrb[0].mxu0
      %v1076 = vadd.f32 0.0, %v1075
      %v1077 = vpop.f32.mrb[0].mxu0
      %v1078 = vpop.f32.mrb[0].mxu0
      %v1079 = vadd.f32 0.0, %v1078
      %v1080 = vpop.f32.mrb[0].mxu0
      %1081 = vmatprep.mubr.bf16.mxu0 0
      %1082 = vmatmul.mubr.bf16.gmra.mrb[0].mxu0 %v586
      %v1083 = vpop.f32.mrb[0].mxu0
      %v1084 = vadd.f32 0.0, %v1083
      %v1085 = vpop.f32.mrb[0].mxu0
      %v1086 = vpop.f32.mrb[0].mxu0
      %v1087 = vadd.f32 0.0, %v1086
      %v1088 = vpop.f32.mrb[0].mxu0
      %1089 = vmatprep.mubr.bf16.mxu0 0
      %1090 = vmatmul.mubr.bf16.gmra.mrb[0].mxu0 %v587
      %v1091 = vpop.f32.mrb[0].mxu0
      %v1092 = vadd.f32 0.0, %v1091
      %v1093 = vpop.f32.mrb[0].mxu0
      %v1094 = vpop.f32.mrb[0].mxu0
      %v1095 = vadd.f32 0.0, %v1094
      %v1096 = vpop.f32.mrb[0].mxu0
      %1097 = vmatprep.mubr.bf16.mxu0 0
      %1098 = vmatmul.mubr.bf16.gmra.mrb[0].mxu0 %v588
      %v1099 = vpop.f32.mrb[0].mxu0
      %v1100 = vadd.f32 0.0, %v1099
      %v1101 = vpop.f32.mrb[0].mxu0
      %v1102 = vpop.f32.mrb[0].mxu0
      %v1103 = vadd.f32 0.0, %v1102
      %v1104 = vpop.f32.mrb[0].mxu0
      %1105 = vmatprep.mubr.bf16.mxu0 0
      %1106 = vmatmul.mubr.bf16.gmra.mrb[0].mxu0 %v589
      %v1107 = vpop.f32.mrb[0].mxu0
      %v1108 = vadd.f32 0.0, %v1107
      %v1109 = vpop.f32.mrb[0].mxu0
      %v1110 = vpop.f32.mrb[0].mxu0
      %v1111 = vadd.f32 0.0, %v1110
      %v1112 = vpop.f32.mrb[0].mxu0
      %1113 = vmatprep.mubr.bf16.mxu0 0
      %1114 = vmatmul.mubr.bf16.gmra.mrb[0].mxu0 %v590
      %v1115 = vpop.f32.mrb[0].mxu0
      %v1116 = vadd.f32 0.0, %v1115
      %v1117 = vpop.f32.mrb[0].mxu0
      %v1118 = vpop.f32.mrb[0].mxu0
      %v1119 = vadd.f32 0.0, %v1118
      %v1120 = vpop.f32.mrb[0].mxu0
      %1121 = vmatprep.mubr.bf16.mxu0 0
      %1122 = vmatmul.mubr.bf16.gmra.mrb[0].mxu0 %v591
      %v1123 = vpop.f32.mrb[0].mxu0
      %v1124 = vadd.f32 0.0, %v1123
      %v1125 = vpop.f32.mrb[0].mxu0
      %v1126 = vpop.f32.mrb[0].mxu0
      %v1127 = vadd.f32 0.0, %v1126
      %v1128 = vpop.f32.mrb[0].mxu0
      %1129 = vmatprep.mubr.bf16.mxu0 0
      %1130 = vmatmul.mubr.bf16.gmra.mrb[0].mxu0 %v592
      %v1131 = vpop.f32.mrb[0].mxu0
      %v1132 = vadd.f32 0.0, %v1131
      %v1133 = vpop.f32.mrb[0].mxu0
      %v1134 = vpop.f32.mrb[0].mxu0
      %v1135 = vadd.f32 0.0, %v1134
      %v1136 = vpop.f32.mrb[0].mxu0
      %1137 = vmatprep.mubr.bf16.mxu0 0
      %1138 = vmatmul.mubr.bf16.gmra.mrb[0].mxu0 %v593
      %v1139 = vpop.f32.mrb[0].mxu0
      %v1140 = vadd.f32 0.0, %v1139
      %v1141 = vpop.f32.mrb[0].mxu0
      %v1142 = vpop.f32.mrb[0].mxu0
      %v1143 = vadd.f32 0.0, %v1142
      %v1144 = vpop.f32.mrb[0].mxu0
      %1145 = vmatprep.mubr.bf16.mxu0 0
      %1146 = vmatmul.mubr.bf16.gmra.mrb[0].mxu0 %v594
      %v1147 = vpop.f32.mrb[0].mxu0
      %v1148 = vadd.f32 0.0, %v1147
      %v1149 = vpop.f32.mrb[0].mxu0
      %v1150 = vpop.f32.mrb[0].mxu0
      %v1151 = vadd.f32 0.0, %v1150
      %v1152 = vpop.f32.mrb[0].mxu0
      %1153 = vmatprep.mubr.bf16.mxu0 0
      %1154 = vmatmul.mubr.bf16.gmra.mrb[0].mxu0 %v595
      %v1155 = vpop.f32.mrb[0].mxu0
      %v1156 = vadd.f32 0.0, %v1155
      %v1157 = vpop.f32.mrb[0].mxu0
      %v1158 = vpop.f32.mrb[0].mxu0
      %v1159 = vadd.f32 0.0, %v1158
      %v1160 = vpop.f32.mrb[0].mxu0
      %1161 = vmatprep.mubr.bf16.mxu0 0
      %1162 = vmatmul.mubr.bf16.gmra.mrb[0].mxu0 %v596
      %v1163 = vpop.f32.mrb[0].mxu0
      %v1164 = vadd.f32 0.0, %v1163
      %v1165 = vpop.f32.mrb[0].mxu0
      %v1166 = vpop.f32.mrb[0].mxu0
      %v1167 = vadd.f32 0.0, %v1166
      %v1168 = vpop.f32.mrb[0].mxu0
      %1169 = vmatprep.mubr.bf16.mxu0 0
      %1170 = vmatmul.mubr.bf16.gmra.mrb[0].mxu0 %v597
      %v1171 = vpop.f32.mrb[0].mxu0
      %v1172 = vadd.f32 0.0, %v1171
      %v1173 = vpop.f32.mrb[0].mxu0
      %v1174 = vpop.f32.mrb[0].mxu0
      %v1175 = vadd.f32 0.0, %v1174
      %v1176 = vpop.f32.mrb[0].mxu0
      %1177 = vmatprep.mubr.bf16.mxu0 0
      %1178 = vmatmul.mubr.bf16.gmra.mrb[0].mxu0 %v598
      %v1179 = vpop.f32.mrb[0].mxu0
      %v1180 = vadd.f32 0.0, %v1179
      %v1181 = vpop.f32.mrb[0].mxu0
      %v1182 = vpop.f32.mrb[0].mxu0
      %v1183 = vadd.f32 0.0, %v1182
      %v1184 = vpop.f32.mrb[0].mxu0
      %1185 = vmatprep.mubr.bf16.mxu0 0
      %1186 = vmatmul.mubr.bf16.gmra.mrb[0].mxu0 %v599
      %v1187 = vpop.f32.mrb[0].mxu0
      %v1188 = vadd.f32 0.0, %v1187
      %v1189 = vpop.f32.mrb[0].mxu0
      %v1190 = vpop.f32.mrb[0].mxu0
      %v1191 = vadd.f32 0.0, %v1190
      %v1192 = vpop.f32.mrb[0].mxu0
      %1193 = vmatprep.mubr.bf16.mxu0 0
      %1194 = vmatmul.mubr.bf16.gmra.mrb[0].mxu0 %v600
      %v1195 = vpop.f32.mrb[0].mxu0
      %v1196 = vadd.f32 0.0, %v1195
      %v1197 = vpop.f32.mrb[0].mxu0
      %v1198 = vpop.f32.mrb[0].mxu0
      %v1199 = vadd.f32 0.0, %v1198
      %v1200 = vpop.f32.mrb[0].mxu0
      %1201 = vmatprep.mubr.bf16.mxu0 0
      %1202 = vmatmul.mubr.bf16.gmra.mrb[0].mxu0 %v601
      %v1203 = vpop.f32.mrb[0].mxu0
      %v1204 = vadd.f32 0.0, %v1203
      %v1205 = vpop.f32.mrb[0].mxu0
      %v1206 = vpop.f32.mrb[0].mxu0
      %v1207 = vadd.f32 0.0, %v1206
      %v1208 = vpop.f32.mrb[0].mxu0
      %1209 = vmatprep.mubr.bf16.mxu0 0
      %1210 = vmatmul.mubr.bf16.gmra.mrb[0].mxu0 %v602
      %v1211 = vpop.f32.mrb[0].mxu0
      %v1212 = vadd.f32 0.0, %v1211
      %v1213 = vpop.f32.mrb[0].mxu0
      %v1214 = vpop.f32.mrb[0].mxu0
      %v1215 = vadd.f32 0.0, %v1214
      %v1216 = vpop.f32.mrb[0].mxu0
      %1217 = vmatprep.mubr.bf16.mxu0 0
      %1218 = vmatmul.mubr.bf16.gmra.mrb[0].mxu0 %v603
      %v1219 = vpop.f32.mrb[0].mxu0
      %v1220 = vadd.f32 0.0, %v1219
      %v1221 = vpop.f32.mrb[0].mxu0
      %v1222 = vpop.f32.mrb[0].mxu0
      %v1223 = vadd.f32 0.0, %v1222
      %v1224 = vpop.f32.mrb[0].mxu0
      %1225 = vmatprep.mubr.bf16.mxu0 0
      %1226 = vmatmul.mubr.bf16.gmra.mrb[0].mxu0 %v604
      %v1227 = vpop.f32.mrb[0].mxu0
      %v1228 = vadd.f32 0.0, %v1227
      %v1229 = vpop.f32.mrb[0].mxu0
      %v1230 = vpop.f32.mrb[0].mxu0
      %v1231 = vadd.f32 0.0, %v1230
      %v1232 = vpop.f32.mrb[0].mxu0
      %1233 = vmatprep.mubr.bf16.mxu0 0
      %1234 = vmatmul.mubr.bf16.gmra.mrb[0].mxu0 %v605
      %v1235 = vpop.f32.mrb[0].mxu0
      %v1236 = vadd.f32 0.0, %v1235
      %v1237 = vpop.f32.mrb[0].mxu0
      %v1238 = vpop.f32.mrb[0].mxu0
      %v1239 = vadd.f32 0.0, %v1238
      %v1240 = vpop.f32.mrb[0].mxu0
      %1241 = vmatprep.mubr.bf16.mxu0 0
      %1242 = vmatmul.mubr.bf16.gmra.mrb[0].mxu0 %v606
      %v1243 = vpop.f32.mrb[0].mxu0
      %v1244 = vadd.f32 0.0, %v1243
      %v1245 = vpop.f32.mrb[0].mxu0
      %v1246 = vpop.f32.mrb[0].mxu0
      %v1247 = vadd.f32 0.0, %v1246
      %v1248 = vpop.f32.mrb[0].mxu0
      %1249 = vmatprep.mubr.bf16.mxu0 0
      %1250 = vmatmul.mubr.bf16.gmra.mrb[0].mxu0 %v607
      %v1251 = vpop.f32.mrb[0].mxu0
      %v1252 = vadd.f32 0.0, %v1251
      %v1253 = vpop.f32.mrb[0].mxu0
      %v1254 = vpop.f32.mrb[0].mxu0
      %v1255 = vadd.f32 0.0, %v1254
      %v1256 = vpop.f32.mrb[0].mxu0
      %1257 = vmatprep.mubr.bf16.mxu0 0
      %1258 = vmatmul.mubr.bf16.gmra.mrb[0].mxu0 %v608
      %v1259 = vpop.f32.mrb[0].mxu0
      %v1260 = vadd.f32 0.0, %v1259
      %v1261 = vpop.f32.mrb[0].mxu0
      %v1262 = vpop.f32.mrb[0].mxu0
      %v1263 = vadd.f32 0.0, %v1262
      %v1264 = vpop.f32.mrb[0].mxu0
      %1265 = vdwg.mxu0
      %vm1266 = vcmp.gt.f32.partialorder %v756, 0.0
      %vm1267 = vcmp.gt.f32.partialorder %v759, 0.0
      %vm1268 = vcmp.gt.f32.partialorder %v764, 0.0
      %vm1269 = vcmp.gt.f32.partialorder %v767, 0.0
      %vm1270 = vcmp.gt.f32.partialorder %v772, 0.0
      %vm1271 = vcmp.gt.f32.partialorder %v775, 0.0
      %vm1272 = vcmp.gt.f32.partialorder %v780, 0.0
      %vm1273 = vcmp.gt.f32.partialorder %v783, 0.0
      %vm1274 = vcmp.gt.f32.partialorder %v788, 0.0
      %vm1275 = vcmp.gt.f32.partialorder %v791, 0.0
      %vm1276 = vcmp.gt.f32.partialorder %v796, 0.0
      %vm1277 = vcmp.gt.f32.partialorder %v799, 0.0
      %vm1278 = vcmp.gt.f32.partialorder %v804, 0.0
      %vm1279 = vcmp.gt.f32.partialorder %v807, 0.0
      %vm1280 = vcmp.gt.f32.partialorder %v812, 0.0
      %vm1281 = vcmp.gt.f32.partialorder %v815, 0.0
      %vm1282 = vcmp.gt.f32.partialorder %v820, 0.0
      %vm1283 = vcmp.gt.f32.partialorder %v823, 0.0
      %vm1284 = vcmp.gt.f32.partialorder %v828, 0.0
      %vm1285 = vcmp.gt.f32.partialorder %v831, 0.0
      %vm1286 = vcmp.gt.f32.partialorder %v836, 0.0
      %vm1287 = vcmp.gt.f32.partialorder %v839, 0.0
      %vm1288 = vcmp.gt.f32.partialorder %v844, 0.0
      %vm1289 = vcmp.gt.f32.partialorder %v847, 0.0
      %vm1290 = vcmp.gt.f32.partialorder %v852, 0.0
      %vm1291 = vcmp.gt.f32.partialorder %v855, 0.0
      %vm1292 = vcmp.gt.f32.partialorder %v860, 0.0
      %vm1293 = vcmp.gt.f32.partialorder %v863, 0.0
      %vm1294 = vcmp.gt.f32.partialorder %v868, 0.0
      %vm1295 = vcmp.gt.f32.partialorder %v871, 0.0
      %vm1296 = vcmp.gt.f32.partialorder %v876, 0.0
      %vm1297 = vcmp.gt.f32.partialorder %v879, 0.0
      %vm1298 = vcmp.gt.f32.partialorder %v884, 0.0
      %vm1299 = vcmp.gt.f32.partialorder %v887, 0.0
      %vm1300 = vcmp.gt.f32.partialorder %v892, 0.0
      %vm1301 = vcmp.gt.f32.partialorder %v895, 0.0
      %vm1302 = vcmp.gt.f32.partialorder %v900, 0.0
      %vm1303 = vcmp.gt.f32.partialorder %v903, 0.0
      %vm1304 = vcmp.gt.f32.partialorder %v908, 0.0
      %vm1305 = vcmp.gt.f32.partialorder %v911, 0.0
      %vm1306 = vcmp.gt.f32.partialorder %v916, 0.0
      %vm1307 = vcmp.gt.f32.partialorder %v919, 0.0
      %vm1308 = vcmp.gt.f32.partialorder %v924, 0.0
      %vm1309 = vcmp.gt.f32.partialorder %v927, 0.0
      %vm1310 = vcmp.gt.f32.partialorder %v932, 0.0
      %vm1311 = vcmp.gt.f32.partialorder %v935, 0.0
      %vm1312 = vcmp.gt.f32.partialorder %v940, 0.0
      %vm1313 = vcmp.gt.f32.partialorder %v943, 0.0
      %vm1314 = vcmp.gt.f32.partialorder %v948, 0.0
      %vm1315 = vcmp.gt.f32.partialorder %v951, 0.0
      %vm1316 = vcmp.gt.f32.partialorder %v956, 0.0
      %vm1317 = vcmp.gt.f32.partialorder %v959, 0.0
      %vm1318 = vcmp.gt.f32.partialorder %v964, 0.0
      %vm1319 = vcmp.gt.f32.partialorder %v967, 0.0
      %vm1320 = vcmp.gt.f32.partialorder %v972, 0.0
      %vm1321 = vcmp.gt.f32.partialorder %v975, 0.0
      %vm1322 = vcmp.gt.f32.partialorder %v980, 0.0
      %vm1323 = vcmp.gt.f32.partialorder %v983, 0.0
      %vm1324 = vcmp.gt.f32.partialorder %v988, 0.0
      %vm1325 = vcmp.gt.f32.partialorder %v991, 0.0
      %vm1326 = vcmp.gt.f32.partialorder %v996, 0.0
      %vm1327 = vcmp.gt.f32.partialorder %v999, 0.0
      %vm1328 = vcmp.gt.f32.partialorder %v1004, 0.0
      %vm1329 = vcmp.gt.f32.partialorder %v1007, 0.0
      %vm1330 = vcmp.gt.f32.partialorder %v1012, 0.0
      %vm1331 = vcmp.gt.f32.partialorder %v1015, 0.0
      %vm1332 = vcmp.gt.f32.partialorder %v1020, 0.0
      %vm1333 = vcmp.gt.f32.partialorder %v1023, 0.0
      %vm1334 = vcmp.gt.f32.partialorder %v1028, 0.0
      %vm1335 = vcmp.gt.f32.partialorder %v1031, 0.0
      %vm1336 = vcmp.gt.f32.partialorder %v1036, 0.0
      %vm1337 = vcmp.gt.f32.partialorder %v1039, 0.0
      %vm1338 = vcmp.gt.f32.partialorder %v1044, 0.0
      %vm1339 = vcmp.gt.f32.partialorder %v1047, 0.0
      %vm1340 = vcmp.gt.f32.partialorder %v1052, 0.0
      %vm1341 = vcmp.gt.f32.partialorder %v1055, 0.0
      %vm1342 = vcmp.gt.f32.partialorder %v1060, 0.0
      %vm1343 = vcmp.gt.f32.partialorder %v1063, 0.0
      %vm1344 = vcmp.gt.f32.partialorder %v1068, 0.0
      %vm1345 = vcmp.gt.f32.partialorder %v1071, 0.0
      %vm1346 = vcmp.gt.f32.partialorder %v1076, 0.0
      %vm1347 = vcmp.gt.f32.partialorder %v1079, 0.0
      %vm1348 = vcmp.gt.f32.partialorder %v1084, 0.0
      %vm1349 = vcmp.gt.f32.partialorder %v1087, 0.0
      %vm1350 = vcmp.gt.f32.partialorder %v1092, 0.0
      %vm1351 = vcmp.gt.f32.partialorder %v1095, 0.0
      %vm1352 = vcmp.gt.f32.partialorder %v1100, 0.0
      %vm1353 = vcmp.gt.f32.partialorder %v1103, 0.0
      %vm1354 = vcmp.gt.f32.partialorder %v1108, 0.0
      %vm1355 = vcmp.gt.f32.partialorder %v1111, 0.0
      %vm1356 = vcmp.gt.f32.partialorder %v1116, 0.0
      %vm1357 = vcmp.gt.f32.partialorder %v1119, 0.0
      %vm1358 = vcmp.gt.f32.partialorder %v1124, 0.0
      %vm1359 = vcmp.gt.f32.partialorder %v1127, 0.0
      %vm1360 = vcmp.gt.f32.partialorder %v1132, 0.0
      %vm1361 = vcmp.gt.f32.partialorder %v1135, 0.0
      %vm1362 = vcmp.gt.f32.partialorder %v1140, 0.0
      %vm1363 = vcmp.gt.f32.partialorder %v1143, 0.0
      %vm1364 = vcmp.gt.f32.partialorder %v1148, 0.0
      %vm1365 = vcmp.gt.f32.partialorder %v1151, 0.0
      %vm1366 = vcmp.gt.f32.partialorder %v1156, 0.0
      %vm1367 = vcmp.gt.f32.partialorder %v1159, 0.0
      %vm1368 = vcmp.gt.f32.partialorder %v1164, 0.0
      %vm1369 = vcmp.gt.f32.partialorder %v1167, 0.0
      %vm1370 = vcmp.gt.f32.partialorder %v1172, 0.0
      %vm1371 = vcmp.gt.f32.partialorder %v1175, 0.0
      %vm1372 = vcmp.gt.f32.partialorder %v1180, 0.0
      %vm1373 = vcmp.gt.f32.partialorder %v1183, 0.0
      %vm1374 = vcmp.gt.f32.partialorder %v1188, 0.0
      %vm1375 = vcmp.gt.f32.partialorder %v1191, 0.0
      %vm1376 = vcmp.gt.f32.partialorder %v1196, 0.0
      %vm1377 = vcmp.gt.f32.partialorder %v1199, 0.0
      %vm1378 = vcmp.gt.f32.partialorder %v1204, 0.0
      %vm1379 = vcmp.gt.f32.partialorder %v1207, 0.0
      %vm1380 = vcmp.gt.f32.partialorder %v1212, 0.0
      %vm1381 = vcmp.gt.f32.partialorder %v1215, 0.0
      %vm1382 = vcmp.gt.f32.partialorder %v1220, 0.0
      %vm1383 = vcmp.gt.f32.partialorder %v1223, 0.0
      %vm1384 = vcmp.gt.f32.partialorder %v1228, 0.0
      %vm1385 = vcmp.gt.f32.partialorder %v1231, 0.0
      %vm1386 = vcmp.gt.f32.partialorder %v1236, 0.0
      %vm1387 = vcmp.gt.f32.partialorder %v1239, 0.0
      %vm1388 = vcmp.gt.f32.partialorder %v1244, 0.0
      %vm1389 = vcmp.gt.f32.partialorder %v1247, 0.0
      %vm1390 = vcmp.gt.f32.partialorder %v1252, 0.0
      %vm1391 = vcmp.gt.f32.partialorder %v1255, 0.0
      %vm1392 = vcmp.gt.f32.partialorder %v1260, 0.0
      %vm1393 = vcmp.gt.f32.partialorder %v1263, 0.0
      %v1394 = vmul.f32 %v756, 0.2
      %v1395 = vmul.f32 %v759, 0.2
      %v1396 = vmul.f32 %v764, 0.2
      %v1397 = vmul.f32 %v767, 0.2
      %v1398 = vmul.f32 %v772, 0.2
      %v1399 = vmul.f32 %v775, 0.2
      %v1400 = vmul.f32 %v780, 0.2
      %v1401 = vmul.f32 %v783, 0.2
      %v1402 = vmul.f32 %v788, 0.2
      %v1403 = vmul.f32 %v791, 0.2
      %v1404 = vmul.f32 %v796, 0.2
      %v1405 = vmul.f32 %v799, 0.2
      %v1406 = vmul.f32 %v804, 0.2
      %v1407 = vmul.f32 %v807, 0.2
      %v1408 = vmul.f32 %v812, 0.2
      %v1409 = vmul.f32 %v815, 0.2
      %v1410 = vmul.f32 %v820, 0.2
      %v1411 = vmul.f32 %v823, 0.2
      %v1412 = vmul.f32 %v828, 0.2
      %v1413 = vmul.f32 %v831, 0.2
      %v1414 = vmul.f32 %v836, 0.2
      %v1415 = vmul.f32 %v839, 0.2
      %v1416 = vmul.f32 %v844, 0.2
      %v1417 = vmul.f32 %v847, 0.2
      %v1418 = vmul.f32 %v852, 0.2
      %v1419 = vmul.f32 %v855, 0.2
      %v1420 = vmul.f32 %v860, 0.2
      %v1421 = vmul.f32 %v863, 0.2
      %v1422 = vmul.f32 %v868, 0.2
      %v1423 = vmul.f32 %v871, 0.2
      %v1424 = vmul.f32 %v876, 0.2
      %v1425 = vmul.f32 %v879, 0.2
      %v1426 = vmul.f32 %v884, 0.2
      %v1427 = vmul.f32 %v887, 0.2
      %v1428 = vmul.f32 %v892, 0.2
      %v1429 = vmul.f32 %v895, 0.2
      %v1430 = vmul.f32 %v900, 0.2
      %v1431 = vmul.f32 %v903, 0.2
      %v1432 = vmul.f32 %v908, 0.2
      %v1433 = vmul.f32 %v911, 0.2
      %v1434 = vmul.f32 %v916, 0.2
      %v1435 = vmul.f32 %v919, 0.2
      %v1436 = vmul.f32 %v924, 0.2
      %v1437 = vmul.f32 %v927, 0.2
      %v1438 = vmul.f32 %v932, 0.2
      %v1439 = vmul.f32 %v935, 0.2
      %v1440 = vmul.f32 %v940, 0.2
      %v1441 = vmul.f32 %v943, 0.2
      %v1442 = vmul.f32 %v948, 0.2
      %v1443 = vmul.f32 %v951, 0.2
      %v1444 = vmul.f32 %v956, 0.2
      %v1445 = vmul.f32 %v959, 0.2
      %v1446 = vmul.f32 %v964, 0.2
      %v1447 = vmul.f32 %v967, 0.2
      %v1448 = vmul.f32 %v972, 0.2
      %v1449 = vmul.f32 %v975, 0.2
      %v1450 = vmul.f32 %v980, 0.2
      %v1451 = vmul.f32 %v983, 0.2
      %v1452 = vmul.f32 %v988, 0.2
      %v1453 = vmul.f32 %v991, 0.2
      %v1454 = vmul.f32 %v996, 0.2
      %v1455 = vmul.f32 %v999, 0.2
      %v1456 = vmul.f32 %v1004, 0.2
      %v1457 = vmul.f32 %v1007, 0.2
      %v1458 = vmul.f32 %v1012, 0.2
      %v1459 = vmul.f32 %v1015, 0.2
      %v1460 = vmul.f32 %v1020, 0.2
      %v1461 = vmul.f32 %v1023, 0.2
      %v1462 = vmul.f32 %v1028, 0.2
      %v1463 = vmul.f32 %v1031, 0.2
      %v1464 = vmul.f32 %v1036, 0.2
      %v1465 = vmul.f32 %v1039, 0.2
      %v1466 = vmul.f32 %v1044, 0.2
      %v1467 = vmul.f32 %v1047, 0.2
      %v1468 = vmul.f32 %v1052, 0.2
      %v1469 = vmul.f32 %v1055, 0.2
      %v1470 = vmul.f32 %v1060, 0.2
      %v1471 = vmul.f32 %v1063, 0.2
      %v1472 = vmul.f32 %v1068, 0.2
      %v1473 = vmul.f32 %v1071, 0.2
      %v1474 = vmul.f32 %v1076, 0.2
      %v1475 = vmul.f32 %v1079, 0.2
      %v1476 = vmul.f32 %v1084, 0.2
      %v1477 = vmul.f32 %v1087, 0.2
      %v1478 = vmul.f32 %v1092, 0.2
      %v1479 = vmul.f32 %v1095, 0.2
      %v1480 = vmul.f32 %v1100, 0.2
      %v1481 = vmul.f32 %v1103, 0.2
      %v1482 = vmul.f32 %v1108, 0.2
      %v1483 = vmul.f32 %v1111, 0.2
      %v1484 = vmul.f32 %v1116, 0.2
      %v1485 = vmul.f32 %v1119, 0.2
      %v1486 = vmul.f32 %v1124, 0.2
      %v1487 = vmul.f32 %v1127, 0.2
      %v1488 = vmul.f32 %v1132, 0.2
      %v1489 = vmul.f32 %v1135, 0.2
      %v1490 = vmul.f32 %v1140, 0.2
      %v1491 = vmul.f32 %v1143, 0.2
      %v1492 = vmul.f32 %v1148, 0.2
      %v1493 = vmul.f32 %v1151, 0.2
      %v1494 = vmul.f32 %v1156, 0.2
      %v1495 = vmul.f32 %v1159, 0.2
      %v1496 = vmul.f32 %v1164, 0.2
      %v1497 = vmul.f32 %v1167, 0.2
      %v1498 = vmul.f32 %v1172, 0.2
      %v1499 = vmul.f32 %v1175, 0.2
      %v1500 = vmul.f32 %v1180, 0.2
      %v1501 = vmul.f32 %v1183, 0.2
      %v1502 = vmul.f32 %v1188, 0.2
      %v1503 = vmul.f32 %v1191, 0.2
      %v1504 = vmul.f32 %v1196, 0.2
      %v1505 = vmul.f32 %v1199, 0.2
      %v1506 = vmul.f32 %v1204, 0.2
      %v1507 = vmul.f32 %v1207, 0.2
      %v1508 = vmul.f32 %v1212, 0.2
      %v1509 = vmul.f32 %v1215, 0.2
      %v1510 = vmul.f32 %v1220, 0.2
      %v1511 = vmul.f32 %v1223, 0.2
      %v1512 = vmul.f32 %v1228, 0.2
      %v1513 = vmul.f32 %v1231, 0.2
      %v1514 = vmul.f32 %v1236, 0.2
      %v1515 = vmul.f32 %v1239, 0.2
      %v1516 = vmul.f32 %v1244, 0.2
      %v1517 = vmul.f32 %v1247, 0.2
      %v1518 = vmul.f32 %v1252, 0.2
      %v1519 = vmul.f32 %v1255, 0.2
      %v1520 = vmul.f32 %v1260, 0.2
      %v1521 = vmul.f32 %v1263, 0.2
      %v1522 = vsel %vm1266, %v756, %v1394
      %v1523 = vsel %vm1267, %v759, %v1395
      %v1524 = vsel %vm1268, %v764, %v1396
      %v1525 = vsel %vm1269, %v767, %v1397
      %v1526 = vsel %vm1270, %v772, %v1398
      %v1527 = vsel %vm1271, %v775, %v1399
      %v1528 = vsel %vm1272, %v780, %v1400
      %v1529 = vsel %vm1273, %v783, %v1401
      %v1530 = vsel %vm1274, %v788, %v1402
      %v1531 = vsel %vm1275, %v791, %v1403
      %v1532 = vsel %vm1276, %v796, %v1404
      %v1533 = vsel %vm1277, %v799, %v1405
      %v1534 = vsel %vm1278, %v804, %v1406
      %v1535 = vsel %vm1279, %v807, %v1407
      %v1536 = vsel %vm1280, %v812, %v1408
      %v1537 = vsel %vm1281, %v815, %v1409
      %v1538 = vsel %vm1282, %v820, %v1410
      %v1539 = vsel %vm1283, %v823, %v1411
      %v1540 = vsel %vm1284, %v828, %v1412
      %v1541 = vsel %vm1285, %v831, %v1413
      %v1542 = vsel %vm1286, %v836, %v1414
      %v1543 = vsel %vm1287, %v839, %v1415
      %v1544 = vsel %vm1288, %v844, %v1416
      %v1545 = vsel %vm1289, %v847, %v1417
      %v1546 = vsel %vm1290, %v852, %v1418
      %v1547 = vsel %vm1291, %v855, %v1419
      %v1548 = vsel %vm1292, %v860, %v1420
      %v1549 = vsel %vm1293, %v863, %v1421
      %v1550 = vsel %vm1294, %v868, %v1422
      %v1551 = vsel %vm1295, %v871, %v1423
      %v1552 = vsel %vm1296, %v876, %v1424
      %v1553 = vsel %vm1297, %v879, %v1425
      %v1554 = vsel %vm1298, %v884, %v1426
      %v1555 = vsel %vm1299, %v887, %v1427
      %v1556 = vsel %vm1300, %v892, %v1428
      %v1557 = vsel %vm1301, %v895, %v1429
      %v1558 = vsel %vm1302, %v900, %v1430
      %v1559 = vsel %vm1303, %v903, %v1431
      %v1560 = vsel %vm1304, %v908, %v1432
      %v1561 = vsel %vm1305, %v911, %v1433
      %v1562 = vsel %vm1306, %v916, %v1434
      %v1563 = vsel %vm1307, %v919, %v1435
      %v1564 = vsel %vm1308, %v924, %v1436
      %v1565 = vsel %vm1309, %v927, %v1437
      %v1566 = vsel %vm1310, %v932, %v1438
      %v1567 = vsel %vm1311, %v935, %v1439
      %v1568 = vsel %vm1312, %v940, %v1440
      %v1569 = vsel %vm1313, %v943, %v1441
      %v1570 = vsel %vm1314, %v948, %v1442
      %v1571 = vsel %vm1315, %v951, %v1443
      %v1572 = vsel %vm1316, %v956, %v1444
      %v1573 = vsel %vm1317, %v959, %v1445
      %v1574 = vsel %vm1318, %v964, %v1446
      %v1575 = vsel %vm1319, %v967, %v1447
      %v1576 = vsel %vm1320, %v972, %v1448
      %v1577 = vsel %vm1321, %v975, %v1449
      %v1578 = vsel %vm1322, %v980, %v1450
      %v1579 = vsel %vm1323, %v983, %v1451
      %v1580 = vsel %vm1324, %v988, %v1452
      %v1581 = vsel %vm1325, %v991, %v1453
      %v1582 = vsel %vm1326, %v996, %v1454
      %v1583 = vsel %vm1327, %v999, %v1455
      %v1584 = vsel %vm1328, %v1004, %v1456
      %v1585 = vsel %vm1329, %v1007, %v1457
      %v1586 = vsel %vm1330, %v1012, %v1458
      %v1587 = vsel %vm1331, %v1015, %v1459
      %v1588 = vsel %vm1332, %v1020, %v1460
      %v1589 = vsel %vm1333, %v1023, %v1461
      %v1590 = vsel %vm1334, %v1028, %v1462
      %v1591 = vsel %vm1335, %v1031, %v1463
      %v1592 = vsel %vm1336, %v1036, %v1464
      %v1593 = vsel %vm1337, %v1039, %v1465
      %v1594 = vsel %vm1338, %v1044, %v1466
      %v1595 = vsel %vm1339, %v1047, %v1467
      %v1596 = vsel %vm1340, %v1052, %v1468
      %v1597 = vsel %vm1341, %v1055, %v1469
      %v1598 = vsel %vm1342, %v1060, %v1470
      %v1599 = vsel %vm1343, %v1063, %v1471
      %v1600 = vsel %vm1344, %v1068, %v1472
      %v1601 = vsel %vm1345, %v1071, %v1473
      %v1602 = vsel %vm1346, %v1076, %v1474
      %v1603 = vsel %vm1347, %v1079, %v1475
      %v1604 = vsel %vm1348, %v1084, %v1476
      %v1605 = vsel %vm1349, %v1087, %v1477
      %v1606 = vsel %vm1350, %v1092, %v1478
      %v1607 = vsel %vm1351, %v1095, %v1479
      %v1608 = vsel %vm1352, %v1100, %v1480
      %v1609 = vsel %vm1353, %v1103, %v1481
      %v1610 = vsel %vm1354, %v1108, %v1482
      %v1611 = vsel %vm1355, %v1111, %v1483
      %v1612 = vsel %vm1356, %v1116, %v1484
      %v1613 = vsel %vm1357, %v1119, %v1485
      %v1614 = vsel %vm1358, %v1124, %v1486
      %v1615 = vsel %vm1359, %v1127, %v1487
      %v1616 = vsel %vm1360, %v1132, %v1488
      %v1617 = vsel %vm1361, %v1135, %v1489
      %v1618 = vsel %vm1362, %v1140, %v1490
      %v1619 = vsel %vm1363, %v1143, %v1491
      %v1620 = vsel %vm1364, %v1148, %v1492
      %v1621 = vsel %vm1365, %v1151, %v1493
      %v1622 = vsel %vm1366, %v1156, %v1494
      %v1623 = vsel %vm1367, %v1159, %v1495
      %v1624 = vsel %vm1368, %v1164, %v1496
      %v1625 = vsel %vm1369, %v1167, %v1497
      %v1626 = vsel %vm1370, %v1172, %v1498
      %v1627 = vsel %vm1371, %v1175, %v1499
      %v1628 = vsel %vm1372, %v1180, %v1500
      %v1629 = vsel %vm1373, %v1183, %v1501
      %v1630 = vsel %vm1374, %v1188, %v1502
      %v1631 = vsel %vm1375, %v1191, %v1503
      %v1632 = vsel %vm1376, %v1196, %v1504
      %v1633 = vsel %vm1377, %v1199, %v1505
      %v1634 = vsel %vm1378, %v1204, %v1506
      %v1635 = vsel %vm1379, %v1207, %v1507
      %v1636 = vsel %vm1380, %v1212, %v1508
      %v1637 = vsel %vm1381, %v1215, %v1509
      %v1638 = vsel %vm1382, %v1220, %v1510
      %v1639 = vsel %vm1383, %v1223, %v1511
      %v1640 = vsel %vm1384, %v1228, %v1512
      %v1641 = vsel %vm1385, %v1231, %v1513
      %v1642 = vsel %vm1386, %v1236, %v1514
      %v1643 = vsel %vm1387, %v1239, %v1515
      %v1644 = vsel %vm1388, %v1244, %v1516
      %v1645 = vsel %vm1389, %v1247, %v1517
      %v1646 = vsel %vm1390, %v1252, %v1518
      %v1647 = vsel %vm1391, %v1255, %v1519
      %v1648 = vsel %vm1392, %v1260, %v1520
      %v1649 = vsel %vm1393, %v1263, %v1521
      %v1650 = vpack.c.bf16 %v1523, %v1522
      %v1651 = vpack.c.bf16 %v1525, %v1524
      %v1652 = vpack.c.bf16 %v1527, %v1526
      %v1653 = vpack.c.bf16 %v1529, %v1528
      %v1654 = vpack.c.bf16 %v1531, %v1530
      %v1655 = vpack.c.bf16 %v1533, %v1532
      %v1656 = vpack.c.bf16 %v1535, %v1534
      %v1657 = vpack.c.bf16 %v1537, %v1536
      %v1658 = vpack.c.bf16 %v1539, %v1538
      %v1659 = vpack.c.bf16 %v1541, %v1540
      %v1660 = vpack.c.bf16 %v1543, %v1542
      %v1661 = vpack.c.bf16 %v1545, %v1544
      %v1662 = vpack.c.bf16 %v1547, %v1546
      %v1663 = vpack.c.bf16 %v1549, %v1548
      %v1664 = vpack.c.bf16 %v1551, %v1550
      %v1665 = vpack.c.bf16 %v1553, %v1552
      %v1666 = vpack.c.bf16 %v1555, %v1554
      %v1667 = vpack.c.bf16 %v1557, %v1556
      %v1668 = vpack.c.bf16 %v1559, %v1558
      %v1669 = vpack.c.bf16 %v1561, %v1560
      %v1670 = vpack.c.bf16 %v1563, %v1562
      %v1671 = vpack.c.bf16 %v1565, %v1564
      %v1672 = vpack.c.bf16 %v1567, %v1566
      %v1673 = vpack.c.bf16 %v1569, %v1568
      %v1674 = vpack.c.bf16 %v1571, %v1570
      %v1675 = vpack.c.bf16 %v1573, %v1572
      %v1676 = vpack.c.bf16 %v1575, %v1574
      %v1677 = vpack.c.bf16 %v1577, %v1576
      %v1678 = vpack.c.bf16 %v1579, %v1578
      %v1679 = vpack.c.bf16 %v1581, %v1580
      %v1680 = vpack.c.bf16 %v1583, %v1582
      %v1681 = vpack.c.bf16 %v1585, %v1584
      %v1682 = vpack.c.bf16 %v1587, %v1586
      %v1683 = vpack.c.bf16 %v1589, %v1588
      %v1684 = vpack.c.bf16 %v1591, %v1590
      %v1685 = vpack.c.bf16 %v1593, %v1592
      %v1686 = vpack.c.bf16 %v1595, %v1594
      %v1687 = vpack.c.bf16 %v1597, %v1596
      %v1688 = vpack.c.bf16 %v1599, %v1598
      %v1689 = vpack.c.bf16 %v1601, %v1600
      %v1690 = vpack.c.bf16 %v1603, %v1602
      %v1691 = vpack.c.bf16 %v1605, %v1604
      %v1692 = vpack.c.bf16 %v1607, %v1606
      %v1693 = vpack.c.bf16 %v1609, %v1608
      %v1694 = vpack.c.bf16 %v1611, %v1610
      %v1695 = vpack.c.bf16 %v1613, %v1612
      %v1696 = vpack.c.bf16 %v1615, %v1614
      %v1697 = vpack.c.bf16 %v1617, %v1616
      %v1698 = vpack.c.bf16 %v1619, %v1618
      %v1699 = vpack.c.bf16 %v1621, %v1620
      %v1700 = vpack.c.bf16 %v1623, %v1622
      %v1701 = vpack.c.bf16 %v1625, %v1624
      %v1702 = vpack.c.bf16 %v1627, %v1626
      %v1703 = vpack.c.bf16 %v1629, %v1628
      %v1704 = vpack.c.bf16 %v1631, %v1630
      %v1705 = vpack.c.bf16 %v1633, %v1632
      %v1706 = vpack.c.bf16 %v1635, %v1634
      %v1707 = vpack.c.bf16 %v1637, %v1636
      %v1708 = vpack.c.bf16 %v1639, %v1638
      %v1709 = vpack.c.bf16 %v1641, %v1640
      %v1710 = vpack.c.bf16 %v1643, %v1642
      %v1711 = vpack.c.bf16 %v1645, %v1644
      %v1712 = vpack.c.bf16 %v1647, %v1646
      %v1713 = vpack.c.bf16 %v1649, %v1648
      %v1778 = vunpack.c.l.b16 %v1650
      %v1779 = vunpack.c.h.b16 %v1650
      %v1780 = vunpack.c.l.b16 %v1651
      %v1781 = vunpack.c.h.b16 %v1651
      %v1782 = vunpack.c.l.b16 %v1652
      %v1783 = vunpack.c.h.b16 %v1652
      %v1784 = vunpack.c.l.b16 %v1653
      %v1785 = vunpack.c.h.b16 %v1653
      %v1786 = vunpack.c.l.b16 %v1654
      %v1787 = vunpack.c.h.b16 %v1654
      %v1788 = vunpack.c.l.b16 %v1655
      %v1789 = vunpack.c.h.b16 %v1655
      %v1790 = vunpack.c.l.b16 %v1656
      %v1791 = vunpack.c.h.b16 %v1656
      %v1792 = vunpack.c.l.b16 %v1657
      %v1793 = vunpack.c.h.b16 %v1657
      %v1794 = vunpack.c.l.b16 %v1658
      %v1795 = vunpack.c.h.b16 %v1658
      %v1796 = vunpack.c.l.b16 %v1659
      %v1797 = vunpack.c.h.b16 %v1659
      %v1798 = vunpack.c.l.b16 %v1660
      %v1799 = vunpack.c.h.b16 %v1660
      %v1800 = vunpack.c.l.b16 %v1661
      %v1801 = vunpack.c.h.b16 %v1661
      %v1802 = vunpack.c.l.b16 %v1662
      %v1803 = vunpack.c.h.b16 %v1662
      %v1804 = vunpack.c.l.b16 %v1663
      %v1805 = vunpack.c.h.b16 %v1663
      %v1806 = vunpack.c.l.b16 %v1664
      %v1807 = vunpack.c.h.b16 %v1664
      %v1808 = vunpack.c.l.b16 %v1665
      %v1809 = vunpack.c.h.b16 %v1665
      %v1810 = vunpack.c.l.b16 %v1666
      %v1811 = vunpack.c.h.b16 %v1666
      %v1812 = vunpack.c.l.b16 %v1667
      %v1813 = vunpack.c.h.b16 %v1667
      %v1814 = vunpack.c.l.b16 %v1668
      %v1815 = vunpack.c.h.b16 %v1668
      %v1816 = vunpack.c.l.b16 %v1669
      %v1817 = vunpack.c.h.b16 %v1669
      %v1818 = vunpack.c.l.b16 %v1670
      %v1819 = vunpack.c.h.b16 %v1670
      %v1820 = vunpack.c.l.b16 %v1671
      %v1821 = vunpack.c.h.b16 %v1671
      %v1822 = vunpack.c.l.b16 %v1672
      %v1823 = vunpack.c.h.b16 %v1672
      %v1824 = vunpack.c.l.b16 %v1673
      %v1825 = vunpack.c.h.b16 %v1673
      %v1826 = vunpack.c.l.b16 %v1674
      %v1827 = vunpack.c.h.b16 %v1674
      %v1828 = vunpack.c.l.b16 %v1675
      %v1829 = vunpack.c.h.b16 %v1675
      %v1830 = vunpack.c.l.b16 %v1676
      %v1831 = vunpack.c.h.b16 %v1676
      %v1832 = vunpack.c.l.b16 %v1677
      %v1833 = vunpack.c.h.b16 %v1677
      %v1834 = vunpack.c.l.b16 %v1678
      %v1835 = vunpack.c.h.b16 %v1678
      %v1836 = vunpack.c.l.b16 %v1679
      %v1837 = vunpack.c.h.b16 %v1679
      %v1838 = vunpack.c.l.b16 %v1680
      %v1839 = vunpack.c.h.b16 %v1680
      %v1840 = vunpack.c.l.b16 %v1681
      %v1841 = vunpack.c.h.b16 %v1681
      %v1842 = vunpack.c.l.b16 %v1682
      %v1843 = vunpack.c.h.b16 %v1682
      %v1844 = vunpack.c.l.b16 %v1683
      %v1845 = vunpack.c.h.b16 %v1683
      %v1846 = vunpack.c.l.b16 %v1684
      %v1847 = vunpack.c.h.b16 %v1684
      %v1848 = vunpack.c.l.b16 %v1685
      %v1849 = vunpack.c.h.b16 %v1685
      %v1850 = vunpack.c.l.b16 %v1686
      %v1851 = vunpack.c.h.b16 %v1686
      %v1852 = vunpack.c.l.b16 %v1687
      %v1853 = vunpack.c.h.b16 %v1687
      %v1854 = vunpack.c.l.b16 %v1688
      %v1855 = vunpack.c.h.b16 %v1688
      %v1856 = vunpack.c.l.b16 %v1689
      %v1857 = vunpack.c.h.b16 %v1689
      %v1858 = vunpack.c.l.b16 %v1690
      %v1859 = vunpack.c.h.b16 %v1690
      %v1860 = vunpack.c.l.b16 %v1691
      %v1861 = vunpack.c.h.b16 %v1691
      %v1862 = vunpack.c.l.b16 %v1692
      %v1863 = vunpack.c.h.b16 %v1692
      %v1864 = vunpack.c.l.b16 %v1693
      %v1865 = vunpack.c.h.b16 %v1693
      %v1866 = vunpack.c.l.b16 %v1694
      %v1867 = vunpack.c.h.b16 %v1694
      %v1868 = vunpack.c.l.b16 %v1695
      %v1869 = vunpack.c.h.b16 %v1695
      %v1870 = vunpack.c.l.b16 %v1696
      %v1871 = vunpack.c.h.b16 %v1696
      %v1872 = vunpack.c.l.b16 %v1697
      %v1873 = vunpack.c.h.b16 %v1697
      %v1874 = vunpack.c.l.b16 %v1698
      %v1875 = vunpack.c.h.b16 %v1698
      %v1876 = vunpack.c.l.b16 %v1699
      %v1877 = vunpack.c.h.b16 %v1699
      %v1878 = vunpack.c.l.b16 %v1700
      %v1879 = vunpack.c.h.b16 %v1700
      %v1880 = vunpack.c.l.b16 %v1701
      %v1881 = vunpack.c.h.b16 %v1701
      %v1882 = vunpack.c.l.b16 %v1702
      %v1883 = vunpack.c.h.b16 %v1702
      %v1884 = vunpack.c.l.b16 %v1703
      %v1885 = vunpack.c.h.b16 %v1703
      %v1886 = vunpack.c.l.b16 %v1704
      %v1887 = vunpack.c.h.b16 %v1704
      %v1888 = vunpack.c.l.b16 %v1705
      %v1889 = vunpack.c.h.b16 %v1705
      %v1890 = vunpack.c.l.b16 %v1706
      %v1891 = vunpack.c.h.b16 %v1706
      %v1892 = vunpack.c.l.b16 %v1707
      %v1893 = vunpack.c.h.b16 %v1707
      %v1894 = vunpack.c.l.b16 %v1708
      %v1895 = vunpack.c.h.b16 %v1708
      %v1896 = vunpack.c.l.b16 %v1709
      %v1897 = vunpack.c.h.b16 %v1709
      %v1898 = vunpack.c.l.b16 %v1710
      %v1899 = vunpack.c.h.b16 %v1710
      %v1900 = vunpack.c.l.b16 %v1711
      %v1901 = vunpack.c.h.b16 %v1711
      %v1902 = vunpack.c.l.b16 %v1712
      %v1903 = vunpack.c.h.b16 %v1712
      %v1904 = vunpack.c.l.b16 %v1713
      %v1905 = vunpack.c.h.b16 %v1713
      %v1906 = vpack.c.b16 %v1778, %v1778
      %v1907 = vpack.c.b16 %v1779, %v1779
      %v1908 = vpack.c.b16 %v1780, %v1780
      %v1909 = vpack.c.b16 %v1781, %v1781
      %v1910 = vpack.c.b16 %v1782, %v1782
      %v1911 = vpack.c.b16 %v1783, %v1783
      %v1912 = vpack.c.b16 %v1784, %v1784
      %v1913 = vpack.c.b16 %v1785, %v1785
      %v1914 = vpack.c.b16 %v1786, %v1786
      %v1915 = vpack.c.b16 %v1787, %v1787
      %v1916 = vpack.c.b16 %v1788, %v1788
      %v1917 = vpack.c.b16 %v1789, %v1789
      %v1918 = vpack.c.b16 %v1790, %v1790
      %v1919 = vpack.c.b16 %v1791, %v1791
      %v1920 = vpack.c.b16 %v1792, %v1792
      %v1921 = vpack.c.b16 %v1793, %v1793
      %v1922 = vpack.c.b16 %v1794, %v1794
      %v1923 = vpack.c.b16 %v1795, %v1795
      %v1924 = vpack.c.b16 %v1796, %v1796
      %v1925 = vpack.c.b16 %v1797, %v1797
      %v1926 = vpack.c.b16 %v1798, %v1798
      %v1927 = vpack.c.b16 %v1799, %v1799
      %v1928 = vpack.c.b16 %v1800, %v1800
      %v1929 = vpack.c.b16 %v1801, %v1801
      %v1930 = vpack.c.b16 %v1802, %v1802
      %v1931 = vpack.c.b16 %v1803, %v1803
      %v1932 = vpack.c.b16 %v1804, %v1804
      %v1933 = vpack.c.b16 %v1805, %v1805
      %v1934 = vpack.c.b16 %v1806, %v1806
      %v1935 = vpack.c.b16 %v1807, %v1807
      %v1936 = vpack.c.b16 %v1808, %v1808
      %v1937 = vpack.c.b16 %v1809, %v1809
      %v1938 = vpack.c.b16 %v1810, %v1810
      %v1939 = vpack.c.b16 %v1811, %v1811
      %v1940 = vpack.c.b16 %v1812, %v1812
      %v1941 = vpack.c.b16 %v1813, %v1813
      %v1942 = vpack.c.b16 %v1814, %v1814
      %v1943 = vpack.c.b16 %v1815, %v1815
      %v1944 = vpack.c.b16 %v1816, %v1816
      %v1945 = vpack.c.b16 %v1817, %v1817
      %v1946 = vpack.c.b16 %v1818, %v1818
      %v1947 = vpack.c.b16 %v1819, %v1819
      %v1948 = vpack.c.b16 %v1820, %v1820
      %v1949 = vpack.c.b16 %v1821, %v1821
      %v1950 = vpack.c.b16 %v1822, %v1822
      %v1951 = vpack.c.b16 %v1823, %v1823
      %v1952 = vpack.c.b16 %v1824, %v1824
      %v1953 = vpack.c.b16 %v1825, %v1825
      %v1954 = vpack.c.b16 %v1826, %v1826
      %v1955 = vpack.c.b16 %v1827, %v1827
      %v1956 = vpack.c.b16 %v1828, %v1828
      %v1957 = vpack.c.b16 %v1829, %v1829
      %v1958 = vpack.c.b16 %v1830, %v1830
      %v1959 = vpack.c.b16 %v1831, %v1831
      %v1960 = vpack.c.b16 %v1832, %v1832
      %v1961 = vpack.c.b16 %v1833, %v1833
      %v1962 = vpack.c.b16 %v1834, %v1834
      %v1963 = vpack.c.b16 %v1835, %v1835
      %v1964 = vpack.c.b16 %v1836, %v1836
      %v1965 = vpack.c.b16 %v1837, %v1837
      %v1966 = vpack.c.b16 %v1838, %v1838
      %v1967 = vpack.c.b16 %v1839, %v1839
      %v1968 = vpack.c.b16 %v1840, %v1840
      %v1969 = vpack.c.b16 %v1841, %v1841
      %v1970 = vpack.c.b16 %v1842, %v1842
      %v1971 = vpack.c.b16 %v1843, %v1843
      %v1972 = vpack.c.b16 %v1844, %v1844
      %v1973 = vpack.c.b16 %v1845, %v1845
      %v1974 = vpack.c.b16 %v1846, %v1846
      %v1975 = vpack.c.b16 %v1847, %v1847
      %v1976 = vpack.c.b16 %v1848, %v1848
      %v1977 = vpack.c.b16 %v1849, %v1849
      %v1978 = vpack.c.b16 %v1850, %v1850
      %v1979 = vpack.c.b16 %v1851, %v1851
      %v1980 = vpack.c.b16 %v1852, %v1852
      %v1981 = vpack.c.b16 %v1853, %v1853
      %v1982 = vpack.c.b16 %v1854, %v1854
      %v1983 = vpack.c.b16 %v1855, %v1855
      %v1984 = vpack.c.b16 %v1856, %v1856
      %v1985 = vpack.c.b16 %v1857, %v1857
      %v1986 = vpack.c.b16 %v1858, %v1858
      %v1987 = vpack.c.b16 %v1859, %v1859
      %v1988 = vpack.c.b16 %v1860, %v1860
      %v1989 = vpack.c.b16 %v1861, %v1861
      %v1990 = vpack.c.b16 %v1862, %v1862
      %v1991 = vpack.c.b16 %v1863, %v1863
      %v1992 = vpack.c.b16 %v1864, %v1864
      %v1993 = vpack.c.b16 %v1865, %v1865
      %v1994 = vpack.c.b16 %v1866, %v1866
      %v1995 = vpack.c.b16 %v1867, %v1867
      %v1996 = vpack.c.b16 %v1868, %v1868
      %v1997 = vpack.c.b16 %v1869, %v1869
      %v1998 = vpack.c.b16 %v1870, %v1870
      %v1999 = vpack.c.b16 %v1871, %v1871
      %v2000 = vpack.c.b16 %v1872, %v1872
      %v2001 = vpack.c.b16 %v1873, %v1873
      %v2002 = vpack.c.b16 %v1874, %v1874
      %v2003 = vpack.c.b16 %v1875, %v1875
      %v2004 = vpack.c.b16 %v1876, %v1876
      %v2005 = vpack.c.b16 %v1877, %v1877
      %v2006 = vpack.c.b16 %v1878, %v1878
      %v2007 = vpack.c.b16 %v1879, %v1879
      %v2008 = vpack.c.b16 %v1880, %v1880
      %v2009 = vpack.c.b16 %v1881, %v1881
      %v2010 = vpack.c.b16 %v1882, %v1882
      %v2011 = vpack.c.b16 %v1883, %v1883
      %v2012 = vpack.c.b16 %v1884, %v1884
      %v2013 = vpack.c.b16 %v1885, %v1885
      %v2014 = vpack.c.b16 %v1886, %v1886
      %v2015 = vpack.c.b16 %v1887, %v1887
      %v2016 = vpack.c.b16 %v1888, %v1888
      %v2017 = vpack.c.b16 %v1889, %v1889
      %v2018 = vpack.c.b16 %v1890, %v1890
      %v2019 = vpack.c.b16 %v1891, %v1891
      %v2020 = vpack.c.b16 %v1892, %v1892
      %v2021 = vpack.c.b16 %v1893, %v1893
      %v2022 = vpack.c.b16 %v1894, %v1894
      %v2023 = vpack.c.b16 %v1895, %v1895
      %v2024 = vpack.c.b16 %v1896, %v1896
      %v2025 = vpack.c.b16 %v1897, %v1897
      %v2026 = vpack.c.b16 %v1898, %v1898
      %v2027 = vpack.c.b16 %v1899, %v1899
      %v2028 = vpack.c.b16 %v1900, %v1900
      %v2029 = vpack.c.b16 %v1901, %v1901
      %v2030 = vpack.c.b16 %v1902, %v1902
      %v2031 = vpack.c.b16 %v1903, %v1903
      %v2032 = vpack.c.b16 %v1904, %v1904
      %v2033 = vpack.c.b16 %v1905, %v1905
      %vm2162 = vcmask 60416
      %2163 = vst.msk [vmem:[%s143] sm:$0xf] %vm2162, %v1906
      %2164 = vst.msk [vmem:[%s143 + $0x4] sm:$0xf] %vm2162, %v1907
      %2165 = vst.msk [vmem:[%s143 + $0x8] sm:$0xf] %vm2162, %v1908
      %2166 = vst.msk [vmem:[%s143 + $0xc] sm:$0xf] %vm2162, %v1909
      %2167 = vst.msk [vmem:[%s143 + $0x10] sm:$0xf] %vm2162, %v1910
      %2168 = vst.msk [vmem:[%s143 + $0x14] sm:$0xf] %vm2162, %v1911
      %2169 = vst.msk [vmem:[%s143 + $0x18] sm:$0xf] %vm2162, %v1912
      %2170 = vst.msk [vmem:[%s143 + $0x1c] sm:$0xf] %vm2162, %v1913
      %2171 = vst.msk [vmem:[%s143 + $0x20] sm:$0xf] %vm2162, %v1914
      %2172 = vst.msk [vmem:[%s143 + $0x24] sm:$0xf] %vm2162, %v1915
      %2173 = vst.msk [vmem:[%s143 + $0x28] sm:$0xf] %vm2162, %v1916
      %2174 = vst.msk [vmem:[%s143 + $0x2c] sm:$0xf] %vm2162, %v1917
      %2175 = vst.msk [vmem:[%s143 + $0x30] sm:$0xf] %vm2162, %v1918
      %2176 = vst.msk [vmem:[%s143 + $0x34] sm:$0xf] %vm2162, %v1919
      %2177 = vst.msk [vmem:[%s143 + $0x38] sm:$0xf] %vm2162, %v1920
      %2178 = vst.msk [vmem:[%s143 + $0x3c] sm:$0xf] %vm2162, %v1921
      %2179 = vst.msk [vmem:[%s143 + $0x40] sm:$0xf] %vm2162, %v1922
      %2180 = vst.msk [vmem:[%s143 + $0x44] sm:$0xf] %vm2162, %v1923
      %2181 = vst.msk [vmem:[%s143 + $0x48] sm:$0xf] %vm2162, %v1924
      %2182 = vst.msk [vmem:[%s143 + $0x4c] sm:$0xf] %vm2162, %v1925
      %2183 = vst.msk [vmem:[%s143 + $0x50] sm:$0xf] %vm2162, %v1926
      %2184 = vst.msk [vmem:[%s143 + $0x54] sm:$0xf] %vm2162, %v1927
      %2185 = vst.msk [vmem:[%s143 + $0x58] sm:$0xf] %vm2162, %v1928
      %2186 = vst.msk [vmem:[%s143 + $0x5c] sm:$0xf] %vm2162, %v1929
      %2187 = vst.msk [vmem:[%s143 + $0x60] sm:$0xf] %vm2162, %v1930
      %2188 = vst.msk [vmem:[%s143 + $0x64] sm:$0xf] %vm2162, %v1931
      %2189 = vst.msk [vmem:[%s143 + $0x68] sm:$0xf] %vm2162, %v1932
      %2190 = vst.msk [vmem:[%s143 + $0x6c] sm:$0xf] %vm2162, %v1933
      %2191 = vst.msk [vmem:[%s143 + $0x70] sm:$0xf] %vm2162, %v1934
      %2192 = vst.msk [vmem:[%s143 + $0x74] sm:$0xf] %vm2162, %v1935
      %2193 = vst.msk [vmem:[%s143 + $0x78] sm:$0xf] %vm2162, %v1936
      %2194 = vst.msk [vmem:[%s143 + $0x7c] sm:$0xf] %vm2162, %v1937
      %2195 = vst.msk [vmem:[%s143 + $0x80] sm:$0xf] %vm2162, %v1938
      %2196 = vst.msk [vmem:[%s143 + $0x84] sm:$0xf] %vm2162, %v1939
      %2197 = vst.msk [vmem:[%s143 + $0x88] sm:$0xf] %vm2162, %v1940
      %2198 = vst.msk [vmem:[%s143 + $0x8c] sm:$0xf] %vm2162, %v1941
      %2199 = vst.msk [vmem:[%s143 + $0x90] sm:$0xf] %vm2162, %v1942
      %2200 = vst.msk [vmem:[%s143 + $0x94] sm:$0xf] %vm2162, %v1943
      %2201 = vst.msk [vmem:[%s143 + $0x98] sm:$0xf] %vm2162, %v1944
      %2202 = vst.msk [vmem:[%s143 + $0x9c] sm:$0xf] %vm2162, %v1945
      %2203 = vst.msk [vmem:[%s143 + $0xa0] sm:$0xf] %vm2162, %v1946
      %2204 = vst.msk [vmem:[%s143 + $0xa4] sm:$0xf] %vm2162, %v1947
      %2205 = vst.msk [vmem:[%s143 + $0xa8] sm:$0xf] %vm2162, %v1948
      %2206 = vst.msk [vmem:[%s143 + $0xac] sm:$0xf] %vm2162, %v1949
      %2207 = vst.msk [vmem:[%s143 + $0xb0] sm:$0xf] %vm2162, %v1950
      %2208 = vst.msk [vmem:[%s143 + $0xb4] sm:$0xf] %vm2162, %v1951
      %2209 = vst.msk [vmem:[%s143 + $0xb8] sm:$0xf] %vm2162, %v1952
      %2210 = vst.msk [vmem:[%s143 + $0xbc] sm:$0xf] %vm2162, %v1953
      %2211 = vst.msk [vmem:[%s143 + $0xc0] sm:$0xf] %vm2162, %v1954
      %2212 = vst.msk [vmem:[%s143 + $0xc4] sm:$0xf] %vm2162, %v1955
      %2213 = vst.msk [vmem:[%s143 + $0xc8] sm:$0xf] %vm2162, %v1956
      %2214 = vst.msk [vmem:[%s143 + $0xcc] sm:$0xf] %vm2162, %v1957
      %2215 = vst.msk [vmem:[%s143 + $0xd0] sm:$0xf] %vm2162, %v1958
      %2216 = vst.msk [vmem:[%s143 + $0xd4] sm:$0xf] %vm2162, %v1959
      %2217 = vst.msk [vmem:[%s143 + $0xd8] sm:$0xf] %vm2162, %v1960
      %2218 = vst.msk [vmem:[%s143 + $0xdc] sm:$0xf] %vm2162, %v1961
      %2219 = vst.msk [vmem:[%s143 + $0xe0] sm:$0xf] %vm2162, %v1962
      %2220 = vst.msk [vmem:[%s143 + $0xe4] sm:$0xf] %vm2162, %v1963
      %2221 = vst.msk [vmem:[%s143 + $0xe8] sm:$0xf] %vm2162, %v1964
      %2222 = vst.msk [vmem:[%s143 + $0xec] sm:$0xf] %vm2162, %v1965
      %2223 = vst.msk [vmem:[%s143 + $0xf0] sm:$0xf] %vm2162, %v1966
      %2224 = vst.msk [vmem:[%s143 + $0xf4] sm:$0xf] %vm2162, %v1967
      %2225 = vst.msk [vmem:[%s143 + $0xf8] sm:$0xf] %vm2162, %v1968
      %2226 = vst.msk [vmem:[%s143 + $0xfc] sm:$0xf] %vm2162, %v1969
      %2227 = vst.msk [vmem:[%s143 + $0x100] sm:$0xf] %vm2162, %v1970
      %2228 = vst.msk [vmem:[%s143 + $0x104] sm:$0xf] %vm2162, %v1971
      %2229 = vst.msk [vmem:[%s143 + $0x108] sm:$0xf] %vm2162, %v1972
      %2230 = vst.msk [vmem:[%s143 + $0x10c] sm:$0xf] %vm2162, %v1973
      %2231 = vst.msk [vmem:[%s143 + $0x110] sm:$0xf] %vm2162, %v1974
      %2232 = vst.msk [vmem:[%s143 + $0x114] sm:$0xf] %vm2162, %v1975
      %2233 = vst.msk [vmem:[%s143 + $0x118] sm:$0xf] %vm2162, %v1976
      %2234 = vst.msk [vmem:[%s143 + $0x11c] sm:$0xf] %vm2162, %v1977
      %2235 = vst.msk [vmem:[%s143 + $0x120] sm:$0xf] %vm2162, %v1978
      %2236 = vst.msk [vmem:[%s143 + $0x124] sm:$0xf] %vm2162, %v1979
      %2237 = vst.msk [vmem:[%s143 + $0x128] sm:$0xf] %vm2162, %v1980
      %2238 = vst.msk [vmem:[%s143 + $0x12c] sm:$0xf] %vm2162, %v1981
      %2239 = vst.msk [vmem:[%s143 + $0x130] sm:$0xf] %vm2162, %v1982
      %2240 = vst.msk [vmem:[%s143 + $0x134] sm:$0xf] %vm2162, %v1983
      %2241 = vst.msk [vmem:[%s143 + $0x138] sm:$0xf] %vm2162, %v1984
      %2242 = vst.msk [vmem:[%s143 + $0x13c] sm:$0xf] %vm2162, %v1985
      %2243 = vst.msk [vmem:[%s143 + $0x140] sm:$0xf] %vm2162, %v1986
      %2244 = vst.msk [vmem:[%s143 + $0x144] sm:$0xf] %vm2162, %v1987
      %2245 = vst.msk [vmem:[%s143 + $0x148] sm:$0xf] %vm2162, %v1988
      %2246 = vst.msk [vmem:[%s143 + $0x14c] sm:$0xf] %vm2162, %v1989
      %2247 = vst.msk [vmem:[%s143 + $0x150] sm:$0xf] %vm2162, %v1990
      %2248 = vst.msk [vmem:[%s143 + $0x154] sm:$0xf] %vm2162, %v1991
      %2249 = vst.msk [vmem:[%s143 + $0x158] sm:$0xf] %vm2162, %v1992
      %2250 = vst.msk [vmem:[%s143 + $0x15c] sm:$0xf] %vm2162, %v1993
      %2251 = vst.msk [vmem:[%s143 + $0x160] sm:$0xf] %vm2162, %v1994
      %2252 = vst.msk [vmem:[%s143 + $0x164] sm:$0xf] %vm2162, %v1995
      %2253 = vst.msk [vmem:[%s143 + $0x168] sm:$0xf] %vm2162, %v1996
      %2254 = vst.msk [vmem:[%s143 + $0x16c] sm:$0xf] %vm2162, %v1997
      %2255 = vst.msk [vmem:[%s143 + $0x170] sm:$0xf] %vm2162, %v1998
      %2256 = vst.msk [vmem:[%s143 + $0x174] sm:$0xf] %vm2162, %v1999
      %2257 = vst.msk [vmem:[%s143 + $0x178] sm:$0xf] %vm2162, %v2000
      %2258 = vst.msk [vmem:[%s143 + $0x17c] sm:$0xf] %vm2162, %v2001
      %2259 = vst.msk [vmem:[%s143 + $0x180] sm:$0xf] %vm2162, %v2002
      %2260 = vst.msk [vmem:[%s143 + $0x184] sm:$0xf] %vm2162, %v2003
      %2261 = vst.msk [vmem:[%s143 + $0x188] sm:$0xf] %vm2162, %v2004
      %2262 = vst.msk [vmem:[%s143 + $0x18c] sm:$0xf] %vm2162, %v2005
      %2263 = vst.msk [vmem:[%s143 + $0x190] sm:$0xf] %vm2162, %v2006
      %2264 = vst.msk [vmem:[%s143 + $0x194] sm:$0xf] %vm2162, %v2007
      %2265 = vst.msk [vmem:[%s143 + $0x198] sm:$0xf] %vm2162, %v2008
      %2266 = vst.msk [vmem:[%s143 + $0x19c] sm:$0xf] %vm2162, %v2009
      %2267 = vst.msk [vmem:[%s143 + $0x1a0] sm:$0xf] %vm2162, %v2010
      %2268 = vst.msk [vmem:[%s143 + $0x1a4] sm:$0xf] %vm2162, %v2011
      %2269 = vst.msk [vmem:[%s143 + $0x1a8] sm:$0xf] %vm2162, %v2012
      %2270 = vst.msk [vmem:[%s143 + $0x1ac] sm:$0xf] %vm2162, %v2013
      %2271 = vst.msk [vmem:[%s143 + $0x1b0] sm:$0xf] %vm2162, %v2014
      %2272 = vst.msk [vmem:[%s143 + $0x1b4] sm:$0xf] %vm2162, %v2015
      %2273 = vst.msk [vmem:[%s143 + $0x1b8] sm:$0xf] %vm2162, %v2016
      %2274 = vst.msk [vmem:[%s143 + $0x1bc] sm:$0xf] %vm2162, %v2017
      %2275 = vst.msk [vmem:[%s143 + $0x1c0] sm:$0xf] %vm2162, %v2018
      %2276 = vst.msk [vmem:[%s143 + $0x1c4] sm:$0xf] %vm2162, %v2019
      %2277 = vst.msk [vmem:[%s143 + $0x1c8] sm:$0xf] %vm2162, %v2020
      %2278 = vst.msk [vmem:[%s143 + $0x1cc] sm:$0xf] %vm2162, %v2021
      %2279 = vst.msk [vmem:[%s143 + $0x1d0] sm:$0xf] %vm2162, %v2022
      %2280 = vst.msk [vmem:[%s143 + $0x1d4] sm:$0xf] %vm2162, %v2023
      %2281 = vst.msk [vmem:[%s143 + $0x1d8] sm:$0xf] %vm2162, %v2024
      %2282 = vst.msk [vmem:[%s143 + $0x1dc] sm:$0xf] %vm2162, %v2025
      %2283 = vst.msk [vmem:[%s143 + $0x1e0] sm:$0xf] %vm2162, %v2026
      %2284 = vst.msk [vmem:[%s143 + $0x1e4] sm:$0xf] %vm2162, %v2027
      %2285 = vst.msk [vmem:[%s143 + $0x1e8] sm:$0xf] %vm2162, %v2028
      %2286 = vst.msk [vmem:[%s143 + $0x1ec] sm:$0xf] %vm2162, %v2029
      %2287 = vst.msk [vmem:[%s143 + $0x1f0] sm:$0xf] %vm2162, %v2030
      %2288 = vst.msk [vmem:[%s143 + $0x1f4] sm:$0xf] %vm2162, %v2031
      %2289 = vst.msk [vmem:[%s143 + $0x1f8] sm:$0xf] %vm2162, %v2032
      %2290 = vst.msk [vmem:[%s143 + $0x1fc] sm:$0xf] %vm2162, %v2033
      %p2291 = scmp.lt.s32.totalorder %s13, 1
      %s2292 = scalar_select %p2291, %s13, 1
      %s2293 = smul.addr %s2292, 128
      %s2294 = smul.addr %s2293, 4
      %s2295 = scalar_lea.vmem %s2, %s2294
      // Predicated region
      $region29: #{_lambda_.4} parent=27 // pred_check
        %p2296 = pneg %p78
      $region30: #{_lambda_.4} parent=27 // pred_check_branch
        %2298 = sbr.rel (%p2296) target = $region32
      $region31: #{_lambda_.4} parent=27 // pred_region
        _
      $region32: #{_lambda_.4} parent=27 // pred_fallthru
        _
    $region28: #{_lambda_.4} parent=5 // pred_fallthru
      _
    %p2299 = scmp.le.s32.totalorder 2, %s8
    // Predicated region
    $region33: #{_lambda_.4} parent=5 // pred_check
      %p2300 = pneg %p2299
    $region34: #{_lambda_.4} parent=5 // pred_check_branch
      %2302 = sbr.rel (%p2300) target = $region36
    $region35: #{_lambda_.4} parent=5 // pred_region
      %s2303 = ssub.s32 %s8, 2
      // Predicated region
      $region37: #{_lambda_.4} parent=35 // pred_check
        %p2304 = pneg %p84
      $region38: #{_lambda_.4} parent=35 // pred_check_branch
        %2306 = sbr.rel (%p2304) target = $region40
      $region39: #{_lambda_.4} parent=35 // pred_region
        %p2307 = scmp.lt.s32.totalorder %s14, 1
        %s2308 = scalar_select %p2307, %s14, 1
        %s2309 = smul.addr %s2308, 128
        %s2310 = smul.addr %s2309, 4
        %s2311 = scalar_lea.vmem %s2, %s2310
      $region40: #{_lambda_.4} parent=35 // pred_fallthru
        _
    $region36: #{_lambda_.4} parent=5 // pred_fallthru
      _
  $region6: #{_lambda_.4} parent=0 // loop_footer
    %s12 = sadd.s32 1, %s8
  $region7: #{_lambda_.4} parent=0 // loop_footer_branch
    %7 = sbr.rel target = $region3
  $region8: #{_lambda_.4} parent=0 // loop_exit
    _

// kernel: _lambda_.5
$region0: #{_lambda_.5}
  #allocation0 [shape = 'u32[]', space=smem, size = 0x4, offset = 0x4, fixed_abs, tag = 'smem constant byte address 0x4 - core index']
  #allocation1 [shape = 'u32[144,128]{1,0:T(1,128)}', space=vmem, size = 0x12000, scoped, tag = 'internal scratch']
  %s0 = inlined_call_operand.vmem [shape: bf16[2,256,128], index: 0, kind: input, shape index: {}]
  %s1 = inlined_call_operand.vmem [shape: bf16[128,16], index: 1, kind: input, shape index: {}]
  %s2 = inlined_call_operand.vmem [shape: f32[16,16], index: 2, kind: input, shape index: {}]
  %s3 = inlined_call_operand.vmem [shape: f32[16,16], index: 3, kind: input, shape index: {}]
  %s4 = inlined_call_operand.vmem [shape: f32[1,16], index: 4, kind: input, shape index: {}]
  %s5 = inlined_call_operand.vmem [shape: f32[1,16], index: 5, kind: input, shape index: {}]
  %s6 = inlined_call_operand.vmem [shape: bf16[2,256,16], index: 6, kind: output, shape index: {}]
  %s7 = sld [smem:[#allocation0]]
  $region57: #{_lambda_.5} parent=0
    _
  %s9 = ssub.s32 1, %s7
  %s10 = scalar_select 0, %s9, %s7
  loop: start=0, step=1, limit=4
  $region2: #{_lambda_.5} parent=0 // loop_pre_header
    _
  $region3: #{_lambda_.5} parent=0 // loop_header
    %s12 = sphi 0, %s16
    %p13 = scmp.ge.s32.totalorder %s12, 4
    %s22 = sphi 0, %s24
    %s25 = sphi 0, %s22
    %s26 = sphi 0, %s25
    %s42 = sphi 0, %s26
    %s46 = sphi 0, %s46
    %s48 = sphi 0, %s46
    %s49 = sphi 0, %s48
    %s63 = sphi 0, %s49
    %s67 = sphi 0, %s67
    %s69 = sphi 0, %s67
    %s70 = sphi 0, %s69
    %s84 = sphi 0, %s70
    %s88 = sphi 0, %s88
    %s90 = sphi 0, %s88
    %s91 = sphi 0, %s90
    %s105 = sphi 0, %s91
    %s109 = sphi 0, %s109
    %s111 = sphi 0, %s109
    %s112 = sphi 0, %s111
    %s126 = sphi 0, %s112
    %s130 = sphi 0, %s130
    %s132 = sphi 0, %s130
    %s133 = sphi 0, %s132
    %s147 = sphi 0, %s133
    %s153 = sphi 0, %s155
    %s156 = sphi 0, %s153
    %s157 = sphi 0, %s156
    %s173 = sphi 0, %s157
  $region4: #{_lambda_.5} parent=0 // loop_header_branch
    %15 = sbr.rel (%p13) target = $region8
  $region5: #{_lambda_.5} parent=0 // loop_body
    %s17 = ssub.s32 %s12, 1
    %s18 = ssub.s32 %s12, 2
    %s19 = sadd.s32 %s12, 1
    %s20 = ssub.s32 %s12, %s19
    %p21 = scmp.eq.s32.totalorder %s20, 0
    %s23 = sadd.s32 %s22, 1
    %s24 = scalar_select %p21, %s22, %s23
    %p27 = pneg %p21
    %p28 = scmp.eq.s32.totalorder %s12, 1
    %p29 = por %p27, %p28
    %p30 = scmp.ne.s32.totalorder %s22, %s25
    %p31 = scmp.eq.s32.totalorder %s12, 0
    %p32 = por %p30, %p31
    %p33 = scmp.ne.s32.totalorder %s22, %s25
    %p34 = scmp.eq.s32.totalorder %s17, 1
    %p35 = por %p33, %p34
    %p36 = scmp.ne.s32.totalorder %s25, %s26
    %p37 = scmp.eq.s32.totalorder %s17, 0
    %p38 = por %p36, %p37
    %p39 = scmp.ne.s32.totalorder %s25, %s26
    %p40 = scmp.eq.s32.totalorder %s18, 1
    %p41 = por %p39, %p40
    %p43 = scmp.ne.s32.totalorder %s26, %s42
    %p44 = scmp.eq.s32.totalorder %s18, 0
    %p45 = por %p43, %p44
    %s47 = sadd.s32 %s46, 1
    %p50 = scmp.eq.s32.totalorder %s12, 1
    %p51 = scmp.ne.s32.totalorder %s46, %s48
    %p52 = scmp.eq.s32.totalorder %s12, 0
    %p53 = por %p51, %p52
    %p54 = scmp.ne.s32.totalorder %s46, %s48
    %p55 = scmp.eq.s32.totalorder %s17, 1
    %p56 = por %p54, %p55
    %p57 = scmp.ne.s32.totalorder %s48, %s49
    %p58 = scmp.eq.s32.totalorder %s17, 0
    %p59 = por %p57, %p58
    %p60 = scmp.ne.s32.totalorder %s48, %s49
    %p61 = scmp.eq.s32.totalorder %s18, 1
    %p62 = por %p60, %p61
    %p64 = scmp.ne.s32.totalorder %s49, %s63
    %p65 = scmp.eq.s32.totalorder %s18, 0
    %p66 = por %p64, %p65
    %s68 = sadd.s32 %s67, 1
    %p71 = scmp.eq.s32.totalorder %s12, 1
    %p72 = scmp.ne.s32.totalorder %s67, %s69
    %p73 = scmp.eq.s32.totalorder %s12, 0
    %p74 = por %p72, %p73
    %p75 = scmp.ne.s32.totalorder %s67, %s69
    %p76 = scmp.eq.s32.totalorder %s17, 1
    %p77 = por %p75, %p76
    %p78 = scmp.ne.s32.totalorder %s69, %s70
    %p79 = scmp.eq.s32.totalorder %s17, 0
    %p80 = por %p78, %p79
    %p81 = scmp.ne.s32.totalorder %s69, %s70
    %p82 = scmp.eq.s32.totalorder %s18, 1
    %p83 = por %p81, %p82
    %p85 = scmp.ne.s32.totalorder %s70, %s84
    %p86 = scmp.eq.s32.totalorder %s18, 0
    %p87 = por %p85, %p86
    %s89 = sadd.s32 %s88, 1
    %p92 = scmp.eq.s32.totalorder %s12, 1
    %p93 = scmp.ne.s32.totalorder %s88, %s90
    %p94 = scmp.eq.s32.totalorder %s12, 0
    %p95 = por %p93, %p94
    %p96 = scmp.ne.s32.totalorder %s88, %s90
    %p97 = scmp.eq.s32.totalorder %s17, 1
    %p98 = por %p96, %p97
    %p99 = scmp.ne.s32.totalorder %s90, %s91
    %p100 = scmp.eq.s32.totalorder %s17, 0
    %p101 = por %p99, %p100
    %p102 = scmp.ne.s32.totalorder %s90, %s91
    %p103 = scmp.eq.s32.totalorder %s18, 1
    %p104 = por %p102, %p103
    %p106 = scmp.ne.s32.totalorder %s91, %s105
    %p107 = scmp.eq.s32.totalorder %s18, 0
    %p108 = por %p106, %p107
    %s110 = sadd.s32 %s109, 1
    %p113 = scmp.eq.s32.totalorder %s12, 1
    %p114 = scmp.ne.s32.totalorder %s109, %s111
    %p115 = scmp.eq.s32.totalorder %s12, 0
    %p116 = por %p114, %p115
    %p117 = scmp.ne.s32.totalorder %s109, %s111
    %p118 = scmp.eq.s32.totalorder %s17, 1
    %p119 = por %p117, %p118
    %p120 = scmp.ne.s32.totalorder %s111, %s112
    %p121 = scmp.eq.s32.totalorder %s17, 0
    %p122 = por %p120, %p121
    %p123 = scmp.ne.s32.totalorder %s111, %s112
    %p124 = scmp.eq.s32.totalorder %s18, 1
    %p125 = por %p123, %p124
    %p127 = scmp.ne.s32.totalorder %s112, %s126
    %p128 = scmp.eq.s32.totalorder %s18, 0
    %p129 = por %p127, %p128
    %s131 = sadd.s32 %s130, 1
    %p134 = scmp.eq.s32.totalorder %s12, 1
    %p135 = scmp.ne.s32.totalorder %s130, %s132
    %p136 = scmp.eq.s32.totalorder %s12, 0
    %p137 = por %p135, %p136
    %p138 = scmp.ne.s32.totalorder %s130, %s132
    %p139 = scmp.eq.s32.totalorder %s17, 1
    %p140 = por %p138, %p139
    %p141 = scmp.ne.s32.totalorder %s132, %s133
    %p142 = scmp.eq.s32.totalorder %s17, 0
    %p143 = por %p141, %p142
    %p144 = scmp.ne.s32.totalorder %s132, %s133
    %p145 = scmp.eq.s32.totalorder %s18, 1
    %p146 = por %p144, %p145
    %p148 = scmp.ne.s32.totalorder %s133, %s147
    %p149 = scmp.eq.s32.totalorder %s18, 0
    %p150 = por %p148, %p149
    %s151 = ssub.s32 %s12, %s19
    %p152 = scmp.eq.s32.totalorder %s151, 0
    %s154 = sadd.s32 %s153, 1
    %s155 = scalar_select %p152, %s153, %s154
    %p158 = pneg %p152
    %p159 = scmp.eq.s32.totalorder %s12, 1
    %p160 = por %p158, %p159
    %p161 = scmp.ne.s32.totalorder %s153, %s156
    %p162 = scmp.eq.s32.totalorder %s12, 0
    %p163 = por %p161, %p162
    %p164 = scmp.ne.s32.totalorder %s153, %s156
    %p165 = scmp.eq.s32.totalorder %s17, 1
    %p166 = por %p164, %p165
    %p167 = scmp.ne.s32.totalorder %s156, %s157
    %p168 = scmp.eq.s32.totalorder %s17, 0
    %p169 = por %p167, %p168
    %p170 = scmp.ne.s32.totalorder %s156, %s157
    %p171 = scmp.eq.s32.totalorder %s18, 1
    %p172 = por %p170, %p171
    %p174 = scmp.ne.s32.totalorder %s157, %s173
    %p175 = scmp.eq.s32.totalorder %s18, 0
    %p176 = por %p174, %p175
    %p177 = scmp.le.s32.totalorder 1, %s12
    %p178 = scmp.lt.s32.totalorder %s12, 3
    %p179 = pnand %p177, %p178
    %p180 = pneg %p179
    // Predicated region
    $region9: #{_lambda_.5} parent=5 // pred_check
      _
    $region10: #{_lambda_.5} parent=5 // pred_check_branch
      %182 = sbr.rel (%p179) target = $region12
    $region11: #{_lambda_.5} parent=5 // pred_region
      %s183 = ssub.s32 %s12, 1
      // Predicated region
      $region13: #{_lambda_.5} parent=11 // pred_check
        %p184 = pneg %p59
      $region14: #{_lambda_.5} parent=11 // pred_check_branch
        %186 = sbr.rel (%p184) target = $region16
      $region15: #{_lambda_.5} parent=11 // pred_region
        _
      $region16: #{_lambda_.5} parent=11 // pred_fallthru
        _
      // Predicated region
      $region17: #{_lambda_.5} parent=11 // pred_check
        %p187 = pneg %p80
      $region18: #{_lambda_.5} parent=11 // pred_check_branch
        %189 = sbr.rel (%p187) target = $region20
      $region19: #{_lambda_.5} parent=11 // pred_region
        _
      $region20: #{_lambda_.5} parent=11 // pred_fallthru
        _
      // Predicated region
      $region21: #{_lambda_.5} parent=11 // pred_check
        %p190 = pneg %p101
      $region22: #{_lambda_.5} parent=11 // pred_check_branch
        %192 = sbr.rel (%p190) target = $region24
      $region23: #{_lambda_.5} parent=11 // pred_region
        _
      $region24: #{_lambda_.5} parent=11 // pred_fallthru
        _
      // Predicated region
      $region25: #{_lambda_.5} parent=11 // pred_check
        %p193 = pneg %p122
      $region26: #{_lambda_.5} parent=11 // pred_check_branch
        %195 = sbr.rel (%p193) target = $region28
      $region27: #{_lambda_.5} parent=11 // pred_region
        _
      $region28: #{_lambda_.5} parent=11 // pred_fallthru
        _
      // Predicated region
      $region29: #{_lambda_.5} parent=11 // pred_check
        %p196 = pneg %p143
      $region30: #{_lambda_.5} parent=11 // pred_check_branch
        %198 = sbr.rel (%p196) target = $region32
      $region31: #{_lambda_.5} parent=11 // pred_region
        _
      $region32: #{_lambda_.5} parent=11 // pred_fallthru
        _
    $region12: #{_lambda_.5} parent=5 // pred_fallthru
      _
    %p199 = scmp.lt.s32.totalorder %s12, 2
    // Predicated region
    $region33: #{_lambda_.5} parent=5 // pred_check
      %p200 = pneg %p199
    $region34: #{_lambda_.5} parent=5 // pred_check_branch
      %202 = sbr.rel (%p200) target = $region36
    $region35: #{_lambda_.5} parent=5 // pred_region
      // Predicated region
      $region37: #{_lambda_.5} parent=35 // pred_check
        %p203 = pneg %p32
      $region38: #{_lambda_.5} parent=35 // pred_check_branch
        %205 = sbr.rel (%p203) target = $region40
      $region39: #{_lambda_.5} parent=35 // pred_region
        %p206 = scmp.lt.s32.totalorder %s12, 1
        %s207 = scalar_select %p206, %s12, 1
        %s208 = smul.addr %s207, 32
        %s209 = smul.addr %s208, 4
        %s210 = scalar_lea.vmem %s0, %s209
      $region40: #{_lambda_.5} parent=35 // pred_fallthru
        _
    $region36: #{_lambda_.5} parent=5 // pred_fallthru
      _
    %p211 = scmp.le.s32.totalorder 1, %s12
    %p212 = scmp.lt.s32.totalorder %s12, 3
    %p213 = pnand %p211, %p212
    %p214 = pneg %p213
    // Predicated region
    $region41: #{_lambda_.5} parent=5 // pred_check
      _
    $region42: #{_lambda_.5} parent=5 // pred_check_branch
      %216 = sbr.rel (%p213) target = $region44
    $region43: #{_lambda_.5} parent=5 // pred_region
      %s217 = ssub.s32 %s12, 1
      %p218 = scmp.lt.s32.totalorder %s17, 1
      %s219 = scalar_select %p218, %s17, 1
      %s220 = smul.addr %s219, 32
      %s221 = smul.addr %s220, 4
      %s222 = scalar_lea.vmem %s0, %s221
      %p223 = pneg %p38
      %p224 = pneg %p35
      %p225 = pneg %p59
      %p226 = pneg %p56
      %p227 = pneg %p80
      %p228 = pneg %p77
      %p229 = pneg %p101
      %p230 = pneg %p98
      %p231 = pneg %p122
      %p232 = pneg %p119
      %p233 = pneg %p143
      %p234 = pneg %p140
      %p235 = pneg %p169
      %p236 = pneg %p166
      %p237 = scmp.lt.s32.totalorder %s17, 1
      %s238 = scalar_select %p237, %s17, 1
      %s239 = smul.addr %s238, 32
      %s240 = smul.addr %s239, 4
      %s241 = scalar_lea.vmem %s6, %s240
      %p242 = scmp.lt.s32.totalorder %s17, 1
      %s243 = scalar_select %p242, %s17, 1
      %s244 = smul.addr %s243, 32
      %s245 = smul.addr %s244, 4
      %s246 = scalar_lea.vmem %s0, %s245
      %p247 = scmp.lt.s32.totalorder %s17, 1
      %s248 = scalar_select %p247, %s17, 1
      %s249 = smul.addr %s248, 32
      %s250 = smul.addr %s249, 4
      %s251 = scalar_lea.vmem %s6, %s250
      %v253 = vld [vmem:[%s246] sm:$0xf]
      %v254 = vld [vmem:[%s246 + $0x4] sm:$0xf]
      %v255 = vld [vmem:[%s246 + $0x8] sm:$0xf]
      %v256 = vld [vmem:[%s246 + $0xc] sm:$0xf]
      %v257 = vld [vmem:[%s246 + $0x10] sm:$0xf]
      %v258 = vld [vmem:[%s246 + $0x14] sm:$0xf]
      %v259 = vld [vmem:[%s246 + $0x18] sm:$0xf]
      %v260 = vld [vmem:[%s246 + $0x1c] sm:$0xf]
      %v261 = vld [vmem:[%s246 + $0x20] sm:$0xf]
      %v262 = vld [vmem:[%s246 + $0x24] sm:$0xf]
      %v263 = vld [vmem:[%s246 + $0x28] sm:$0xf]
      %v264 = vld [vmem:[%s246 + $0x2c] sm:$0xf]
      %v265 = vld [vmem:[%s246 + $0x30] sm:$0xf]
      %v266 = vld [vmem:[%s246 + $0x34] sm:$0xf]
      %v267 = vld [vmem:[%s246 + $0x38] sm:$0xf]
      %v268 = vld [vmem:[%s246 + $0x3c] sm:$0xf]
      %v269 = vld [vmem:[%s246 + $0x40] sm:$0xf]
      %v270 = vld [vmem:[%s246 + $0x44] sm:$0xf]
      %v271 = vld [vmem:[%s246 + $0x48] sm:$0xf]
      %v272 = vld [vmem:[%s246 + $0x4c] sm:$0xf]
      %v273 = vld [vmem:[%s246 + $0x50] sm:$0xf]
      %v274 = vld [vmem:[%s246 + $0x54] sm:$0xf]
      %v275 = vld [vmem:[%s246 + $0x58] sm:$0xf]
      %v276 = vld [vmem:[%s246 + $0x5c] sm:$0xf]
      %v277 = vld [vmem:[%s246 + $0x60] sm:$0xf]
      %v278 = vld [vmem:[%s246 + $0x64] sm:$0xf]
      %v279 = vld [vmem:[%s246 + $0x68] sm:$0xf]
      %v280 = vld [vmem:[%s246 + $0x6c] sm:$0xf]
      %v281 = vld [vmem:[%s246 + $0x70] sm:$0xf]
      %v282 = vld [vmem:[%s246 + $0x74] sm:$0xf]
      %v283 = vld [vmem:[%s246 + $0x78] sm:$0xf]
      %v284 = vld [vmem:[%s246 + $0x7c] sm:$0xf]
      %v285 = vld [vmem:[%s1] sm:$0xf]
      %v286 = vld [vmem:[%s1 + $0x4] sm:$0xf]
      %v287 = vld [vmem:[%s1 + $0x8] sm:$0xf]
      %v288 = vld [vmem:[%s1 + $0xc] sm:$0xf]
      %v289 = vld [vmem:[%s1 + $0x10] sm:$0xf]
      %v290 = vld [vmem:[%s1 + $0x14] sm:$0xf]
      %v291 = vld [vmem:[%s1 + $0x18] sm:$0xf]
      %v292 = vld [vmem:[%s1 + $0x1c] sm:$0xf]
      %v293 = vld [vmem:[%s1 + $0x20] sm:$0xf]
      %v294 = vld [vmem:[%s1 + $0x24] sm:$0xf]
      %v295 = vld [vmem:[%s1 + $0x28] sm:$0xf]
      %v296 = vld [vmem:[%s1 + $0x2c] sm:$0xf]
      %v297 = vld [vmem:[%s1 + $0x30] sm:$0xf]
      %v298 = vld [vmem:[%s1 + $0x34] sm:$0xf]
      %v299 = vld [vmem:[%s1 + $0x38] sm:$0xf]
      %v300 = vld [vmem:[%s1 + $0x3c] sm:$0xf]
      %v333 = vunpack.c.l.b16 %v253
      %v334 = vunpack.c.l.b16 %v254
      %v335 = vunpack.c.l.b16 %v255
      %v336 = vunpack.c.l.b16 %v256
      %v337 = vunpack.c.l.b16 %v257
      %v338 = vunpack.c.l.b16 %v258
      %v339 = vunpack.c.l.b16 %v259
      %v340 = vunpack.c.l.b16 %v260
      %v341 = vunpack.c.l.b16 %v261
      %v342 = vunpack.c.l.b16 %v262
      %v343 = vunpack.c.l.b16 %v263
      %v344 = vunpack.c.l.b16 %v264
      %v345 = vunpack.c.l.b16 %v265
      %v346 = vunpack.c.l.b16 %v266
      %v347 = vunpack.c.l.b16 %v267
      %v348 = vunpack.c.l.b16 %v268
      %v349 = vunpack.c.l.b16 %v269
      %v350 = vunpack.c.l.b16 %v270
      %v351 = vunpack.c.l.b16 %v271
      %v352 = vunpack.c.l.b16 %v272
      %v353 = vunpack.c.l.b16 %v273
      %v354 = vunpack.c.l.b16 %v274
      %v355 = vunpack.c.l.b16 %v275
      %v356 = vunpack.c.l.b16 %v276
      %v357 = vunpack.c.l.b16 %v277
      %v358 = vunpack.c.l.b16 %v278
      %v359 = vunpack.c.l.b16 %v279
      %v360 = vunpack.c.l.b16 %v280
      %v361 = vunpack.c.l.b16 %v281
      %v362 = vunpack.c.l.b16 %v282
      %v363 = vunpack.c.l.b16 %v283
      %v364 = vunpack.c.l.b16 %v284
      %v365 = vpack.c.b16 %v334, %v333
      %v366 = vpack.c.b16 %v336, %v335
      %v367 = vpack.c.b16 %v338, %v337
      %v368 = vpack.c.b16 %v340, %v339
      %v369 = vpack.c.b16 %v342, %v341
      %v370 = vpack.c.b16 %v344, %v343
      %v371 = vpack.c.b16 %v346, %v345
      %v372 = vpack.c.b16 %v348, %v347
      %v373 = vpack.c.b16 %v350, %v349
      %v374 = vpack.c.b16 %v352, %v351
      %v375 = vpack.c.b16 %v354, %v353
      %v376 = vpack.c.b16 %v356, %v355
      %v377 = vpack.c.b16 %v358, %v357
      %v378 = vpack.c.b16 %v360, %v359
      %v379 = vpack.c.b16 %v362, %v361
      %v380 = vpack.c.b16 %v364, %v363
      %v413 = vunpack.c.l.b16 %v285
      %v414 = vunpack.c.l.b16 %v286
      %v415 = vunpack.c.l.b16 %v287
      %v416 = vunpack.c.l.b16 %v288
      %v417 = vunpack.c.l.b16 %v289
      %v418 = vunpack.c.l.b16 %v290
      %v419 = vunpack.c.l.b16 %v291
      %v420 = vunpack.c.l.b16 %v292
      %v421 = vunpack.c.l.b16 %v293
      %v422 = vunpack.c.l.b16 %v294
      %v423 = vunpack.c.l.b16 %v295
      %v424 = vunpack.c.l.b16 %v296
      %v425 = vunpack.c.l.b16 %v297
      %v426 = vunpack.c.l.b16 %v298
      %v427 = vunpack.c.l.b16 %v299
      %v428 = vunpack.c.l.b16 %v300
      %v429 = vpack.c.b16 %v414, %v413
      %v430 = vpack.c.b16 %v416, %v415
      %v431 = vpack.c.b16 %v418, %v417
      %v432 = vpack.c.b16 %v420, %v419
      %v433 = vpack.c.b16 %v422, %v421
      %v434 = vpack.c.b16 %v424, %v423
      %v435 = vpack.c.b16 %v426, %v425
      %v436 = vpack.c.b16 %v428, %v427
      %445 = vmatprep.subr.bf16.mxu0 0
      %446 = vmatpush1.bf16.msra.mxu0 %v429
      %447 = vmatprep.subr.bf16.mxu0 0
      %448 = vmatpush1.bf16.msra.mxu0 %v430
      %449 = vmatprep.subr.bf16.mxu0 0
      %450 = vmatpush1.bf16.msra.mxu0 %v431
      %451 = vmatprep.subr.bf16.mxu0 0
      %452 = vmatpush1.bf16.msra.mxu0 %v432
      %453 = vmatprep.subr.bf16.mxu0 0
      %454 = vmatpush1.bf16.msra.mxu0 %v433
      %455 = vmatprep.subr.bf16.mxu0 0
      %456 = vmatpush1.bf16.msra.mxu0 %v434
      %457 = vmatprep.subr.bf16.mxu0 0
      %458 = vmatpush1.bf16.msra.mxu0 %v435
      %459 = vmatprep.subr.bf16.mxu0 0
      %460 = vmatpush1.bf16.msra.mxu0 %v436
      %461 = vmatprep.subr.bf16.mxu0 0
      %462 = vmatpush1.bf16.msra.mxu0 0
      %463 = vmatprep.subr.bf16.mxu0 0
      %464 = vmatpush1.bf16.msra.mxu0 0
      %465 = vmatprep.subr.bf16.mxu0 0
      %466 = vmatpush1.bf16.msra.mxu0 0
      %467 = vmatprep.subr.bf16.mxu0 0
      %468 = vmatpush1.bf16.msra.mxu0 0
      %469 = vmatprep.subr.bf16.mxu0 0
      %470 = vmatpush1.bf16.msra.mxu0 0
      %471 = vmatprep.subr.bf16.mxu0 0
      %472 = vmatpush1.bf16.msra.mxu0 0
      %473 = vmatprep.subr.bf16.mxu0 0
      %474 = vmatpush1.bf16.msra.mxu0 0
      %475 = vmatprep.subr.bf16.mxu0 0
      %476 = vmatpush1.bf16.msra.mxu0 0
      %477 = vmatprep.mubr.bf16.mxu0 0
      %478 = vmatmul.mubr.bf16.gmra.mrb[0].mxu0 %v365
      %v479 = vpop.f32.mrb[0].mxu0
      %v480 = vadd.f32 0.0, %v479
      %v481 = vpop.f32.mrb[0].mxu0
      %v482 = vpop.f32.mrb[0].mxu0
      %v483 = vadd.f32 0.0, %v482
      %v484 = vpop.f32.mrb[0].mxu0
      %485 = vmatprep.mubr.bf16.mxu0 0
      %486 = vmatmul.mubr.bf16.gmra.mrb[0].mxu0 %v366
      %v487 = vpop.f32.mrb[0].mxu0
      %v488 = vadd.f32 0.0, %v487
      %v489 = vpop.f32.mrb[0].mxu0
      %v490 = vpop.f32.mrb[0].mxu0
      %v491 = vadd.f32 0.0, %v490
      %v492 = vpop.f32.mrb[0].mxu0
      %493 = vmatprep.mubr.bf16.mxu0 0
      %494 = vmatmul.mubr.bf16.gmra.mrb[0].mxu0 %v367
      %v495 = vpop.f32.mrb[0].mxu0
      %v496 = vadd.f32 0.0, %v495
      %v497 = vpop.f32.mrb[0].mxu0
      %v498 = vpop.f32.mrb[0].mxu0
      %v499 = vadd.f32 0.0, %v498
      %v500 = vpop.f32.mrb[0].mxu0
      %501 = vmatprep.mubr.bf16.mxu0 0
      %502 = vmatmul.mubr.bf16.gmra.mrb[0].mxu0 %v368
      %v503 = vpop.f32.mrb[0].mxu0
      %v504 = vadd.f32 0.0, %v503
      %v505 = vpop.f32.mrb[0].mxu0
      %v506 = vpop.f32.mrb[0].mxu0
      %v507 = vadd.f32 0.0, %v506
      %v508 = vpop.f32.mrb[0].mxu0
      %509 = vmatprep.mubr.bf16.mxu0 0
      %510 = vmatmul.mubr.bf16.gmra.mrb[0].mxu0 %v369
      %v511 = vpop.f32.mrb[0].mxu0
      %v512 = vadd.f32 0.0, %v511
      %v513 = vpop.f32.mrb[0].mxu0
      %v514 = vpop.f32.mrb[0].mxu0
      %v515 = vadd.f32 0.0, %v514
      %v516 = vpop.f32.mrb[0].mxu0
      %517 = vmatprep.mubr.bf16.mxu0 0
      %518 = vmatmul.mubr.bf16.gmra.mrb[0].mxu0 %v370
      %v519 = vpop.f32.mrb[0].mxu0
      %v520 = vadd.f32 0.0, %v519
      %v521 = vpop.f32.mrb[0].mxu0
      %v522 = vpop.f32.mrb[0].mxu0
      %v523 = vadd.f32 0.0, %v522
      %v524 = vpop.f32.mrb[0].mxu0
      %525 = vmatprep.mubr.bf16.mxu0 0
      %526 = vmatmul.mubr.bf16.gmra.mrb[0].mxu0 %v371
      %v527 = vpop.f32.mrb[0].mxu0
      %v528 = vadd.f32 0.0, %v527
      %v529 = vpop.f32.mrb[0].mxu0
      %v530 = vpop.f32.mrb[0].mxu0
      %v531 = vadd.f32 0.0, %v530
      %v532 = vpop.f32.mrb[0].mxu0
      %533 = vmatprep.mubr.bf16.mxu0 0
      %534 = vmatmul.mubr.bf16.gmra.mrb[0].mxu0 %v372
      %v535 = vpop.f32.mrb[0].mxu0
      %v536 = vadd.f32 0.0, %v535
      %v537 = vpop.f32.mrb[0].mxu0
      %v538 = vpop.f32.mrb[0].mxu0
      %v539 = vadd.f32 0.0, %v538
      %v540 = vpop.f32.mrb[0].mxu0
      %541 = vmatprep.mubr.bf16.mxu0 0
      %542 = vmatmul.mubr.bf16.gmra.mrb[0].mxu0 %v373
      %v543 = vpop.f32.mrb[0].mxu0
      %v544 = vadd.f32 0.0, %v543
      %v545 = vpop.f32.mrb[0].mxu0
      %v546 = vpop.f32.mrb[0].mxu0
      %v547 = vadd.f32 0.0, %v546
      %v548 = vpop.f32.mrb[0].mxu0
      %549 = vmatprep.mubr.bf16.mxu0 0
      %550 = vmatmul.mubr.bf16.gmra.mrb[0].mxu0 %v374
      %v551 = vpop.f32.mrb[0].mxu0
      %v552 = vadd.f32 0.0, %v551
      %v553 = vpop.f32.mrb[0].mxu0
      %v554 = vpop.f32.mrb[0].mxu0
      %v555 = vadd.f32 0.0, %v554
      %v556 = vpop.f32.mrb[0].mxu0
      %557 = vmatprep.mubr.bf16.mxu0 0
      %558 = vmatmul.mubr.bf16.gmra.mrb[0].mxu0 %v375
      %v559 = vpop.f32.mrb[0].mxu0
      %v560 = vadd.f32 0.0, %v559
      %v561 = vpop.f32.mrb[0].mxu0
      %v562 = vpop.f32.mrb[0].mxu0
      %v563 = vadd.f32 0.0, %v562
      %v564 = vpop.f32.mrb[0].mxu0
      %565 = vmatprep.mubr.bf16.mxu0 0
      %566 = vmatmul.mubr.bf16.gmra.mrb[0].mxu0 %v376
      %v567 = vpop.f32.mrb[0].mxu0
      %v568 = vadd.f32 0.0, %v567
      %v569 = vpop.f32.mrb[0].mxu0
      %v570 = vpop.f32.mrb[0].mxu0
      %v571 = vadd.f32 0.0, %v570
      %v572 = vpop.f32.mrb[0].mxu0
      %573 = vmatprep.mubr.bf16.mxu0 0
      %574 = vmatmul.mubr.bf16.gmra.mrb[0].mxu0 %v377
      %v575 = vpop.f32.mrb[0].mxu0
      %v576 = vadd.f32 0.0, %v575
      %v577 = vpop.f32.mrb[0].mxu0
      %v578 = vpop.f32.mrb[0].mxu0
      %v579 = vadd.f32 0.0, %v578
      %v580 = vpop.f32.mrb[0].mxu0
      %581 = vmatprep.mubr.bf16.mxu0 0
      %582 = vmatmul.mubr.bf16.gmra.mrb[0].mxu0 %v378
      %v583 = vpop.f32.mrb[0].mxu0
      %v584 = vadd.f32 0.0, %v583
      %v585 = vpop.f32.mrb[0].mxu0
      %v586 = vpop.f32.mrb[0].mxu0
      %v587 = vadd.f32 0.0, %v586
      %v588 = vpop.f32.mrb[0].mxu0
      %589 = vmatprep.mubr.bf16.mxu0 0
      %590 = vmatmul.mubr.bf16.gmra.mrb[0].mxu0 %v379
      %v591 = vpop.f32.mrb[0].mxu0
      %v592 = vadd.f32 0.0, %v591
      %v593 = vpop.f32.mrb[0].mxu0
      %v594 = vpop.f32.mrb[0].mxu0
      %v595 = vadd.f32 0.0, %v594
      %v596 = vpop.f32.mrb[0].mxu0
      %597 = vmatprep.mubr.bf16.mxu0 0
      %598 = vmatmul.mubr.bf16.gmra.mrb[0].mxu0 %v380
      %v599 = vpop.f32.mrb[0].mxu0
      %v600 = vadd.f32 0.0, %v599
      %v601 = vpop.f32.mrb[0].mxu0
      %v602 = vpop.f32.mrb[0].mxu0
      %v603 = vadd.f32 0.0, %v602
      %v604 = vpop.f32.mrb[0].mxu0
      %605 = vdwg.mxu0
      %v606 = vld [vmem:[%s4] sm:$0x1]
      %v607 = vld [vmem:[%s5] sm:$0x1]
      %vm608 = vcmask 130048
      %v609 = vsel %vm608, %v480, 0.0
      %v610 = vsel %vm608, %v483, 0.0
      %v611 = vadd.f32 %v609, %v610
      %v612 = vsel %vm608, %v488, 0.0
      %v613 = vadd.f32 %v611, %v612
      %v614 = vsel %vm608, %v491, 0.0
      %v615 = vadd.f32 %v613, %v614
      %v616 = vsel %vm608, %v496, 0.0
      %v617 = vadd.f32 %v615, %v616
      %v618 = vsel %vm608, %v499, 0.0
      %v619 = vadd.f32 %v617, %v618
      %v620 = vsel %vm608, %v504, 0.0
      %v621 = vadd.f32 %v619, %v620
      %v622 = vsel %vm608, %v507, 0.0
      %v623 = vadd.f32 %v621, %v622
      %v624 = vsel %vm608, %v512, 0.0
      %v625 = vadd.f32 %v623, %v624
      %v626 = vsel %vm608, %v515, 0.0
      %v627 = vadd.f32 %v625, %v626
      %v628 = vsel %vm608, %v520, 0.0
      %v629 = vadd.f32 %v627, %v628
      %v630 = vsel %vm608, %v523, 0.0
      %v631 = vadd.f32 %v629, %v630
      %v632 = vsel %vm608, %v528, 0.0
      %v633 = vadd.f32 %v631, %v632
      %v634 = vsel %vm608, %v531, 0.0
      %v635 = vadd.f32 %v633, %v634
      %v636 = vsel %vm608, %v536, 0.0
      %v637 = vadd.f32 %v635, %v636
      %v638 = vsel %vm608, %v539, 0.0
      %v639 = vadd.f32 %v637, %v638
      %v640 = vsel %vm608, %v544, 0.0
      %v641 = vadd.f32 %v639, %v640
      %v642 = vsel %vm608, %v547, 0.0
      %v643 = vadd.f32 %v641, %v642
      %v644 = vsel %vm608, %v552, 0.0
      %v645 = vadd.f32 %v643, %v644
      %v646 = vsel %vm608, %v555, 0.0
      %v647 = vadd.f32 %v645, %v646
      %v648 = vsel %vm608, %v560, 0.0
      %v649 = vadd.f32 %v647, %v648
      %v650 = vsel %vm608, %v563, 0.0
      %v651 = vadd.f32 %v649, %v650
      %v652 = vsel %vm608, %v568, 0.0
      %v653 = vadd.f32 %v651, %v652
      %v654 = vsel %vm608, %v571, 0.0
      %v655 = vadd.f32 %v653, %v654
      %v656 = vsel %vm608, %v576, 0.0
      %v657 = vadd.f32 %v655, %v656
      %v658 = vsel %vm608, %v579, 0.0
      %v659 = vadd.f32 %v657, %v658
      %v660 = vsel %vm608, %v584, 0.0
      %v661 = vadd.f32 %v659, %v660
      %v662 = vsel %vm608, %v587, 0.0
      %v663 = vadd.f32 %v661, %v662
      %v664 = vsel %vm608, %v592, 0.0
      %v665 = vadd.f32 %v663, %v664
      %v666 = vsel %vm608, %v595, 0.0
      %v667 = vadd.f32 %v665, %v666
      %v668 = vsel %vm608, %v600, 0.0
      %v669 = vadd.f32 %v667, %v668
      %v670 = vsel %vm608, %v603, 0.0
      %v671 = vadd.f32 %v669, %v670
      %v672 = vrot.slane %v671, 4
      %v673 = vadd.f32 %v671, %v672
      %v674 = vrot.slane %v673, 2
      %v675 = vadd.f32 %v673, %v674
      %v676 = vrot.slane %v675, 1
      %v677 = vadd.f32 %v675, %v676
      %v678 = vmul.f32 %v677, 0.00390625
      %v679 = vsub.f32 %v480, %v678
      %v680 = vsub.f32 %v483, %v678
      %v681 = vsub.f32 %v488, %v678
      %v682 = vsub.f32 %v491, %v678
      %v683 = vsub.f32 %v496, %v678
      %v684 = vsub.f32 %v499, %v678
      %v685 = vsub.f32 %v504, %v678
      %v686 = vsub.f32 %v507, %v678
      %v687 = vsub.f32 %v512, %v678
      %v688 = vsub.f32 %v515, %v678
      %v689 = vsub.f32 %v520, %v678
      %v690 = vsub.f32 %v523, %v678
      %v691 = vsub.f32 %v528, %v678
      %v692 = vsub.f32 %v531, %v678
      %v693 = vsub.f32 %v536, %v678
      %v694 = vsub.f32 %v539, %v678
      %v695 = vsub.f32 %v544, %v678
      %v696 = vsub.f32 %v547, %v678
      %v697 = vsub.f32 %v552, %v678
      %v698 = vsub.f32 %v555, %v678
      %v699 = vsub.f32 %v560, %v678
      %v700 = vsub.f32 %v563, %v678
      %v701 = vsub.f32 %v568, %v678
      %v702 = vsub.f32 %v571, %v678
      %v703 = vsub.f32 %v576, %v678
      %v704 = vsub.f32 %v579, %v678
      %v705 = vsub.f32 %v584, %v678
      %v706 = vsub.f32 %v587, %v678
      %v707 = vsub.f32 %v592, %v678
      %v708 = vsub.f32 %v595, %v678
      %v709 = vsub.f32 %v600, %v678
      %v710 = vsub.f32 %v603, %v678
      %v711 = vmul.f32 %v679, %v679
      %v712 = vmul.f32 %v680, %v680
      %v713 = vmul.f32 %v681, %v681
      %v714 = vmul.f32 %v682, %v682
      %v715 = vmul.f32 %v683, %v683
      %v716 = vmul.f32 %v684, %v684
      %v717 = vmul.f32 %v685, %v685
      %v718 = vmul.f32 %v686, %v686
      %v719 = vmul.f32 %v687, %v687
      %v720 = vmul.f32 %v688, %v688
      %v721 = vmul.f32 %v689, %v689
      %v722 = vmul.f32 %v690, %v690
      %v723 = vmul.f32 %v691, %v691
      %v724 = vmul.f32 %v692, %v692
      %v725 = vmul.f32 %v693, %v693
      %v726 = vmul.f32 %v694, %v694
      %v727 = vmul.f32 %v695, %v695
      %v728 = vmul.f32 %v696, %v696
      %v729 = vmul.f32 %v697, %v697
      %v730 = vmul.f32 %v698, %v698
      %v731 = vmul.f32 %v699, %v699
      %v732 = vmul.f32 %v700, %v700
      %v733 = vmul.f32 %v701, %v701
      %v734 = vmul.f32 %v702, %v702
      %v735 = vmul.f32 %v703, %v703
      %v736 = vmul.f32 %v704, %v704
      %v737 = vmul.f32 %v705, %v705
      %v738 = vmul.f32 %v706, %v706
      %v739 = vmul.f32 %v707, %v707
      %v740 = vmul.f32 %v708, %v708
      %v741 = vmul.f32 %v709, %v709
      %v742 = vmul.f32 %v710, %v710
      %v743 = vsel %vm608, %v711, 0.0
      %v744 = vsel %vm608, %v712, 0.0
      %v745 = vadd.f32 %v743, %v744
      %v746 = vsel %vm608, %v713, 0.0
      %v747 = vadd.f32 %v745, %v746
      %v748 = vsel %vm608, %v714, 0.0
      %v749 = vadd.f32 %v747, %v748
      %v750 = vsel %vm608, %v715, 0.0
      %v751 = vadd.f32 %v749, %v750
      %v752 = vsel %vm608, %v716, 0.0
      %v753 = vadd.f32 %v751, %v752
      %v754 = vsel %vm608, %v717, 0.0
      %v755 = vadd.f32 %v753, %v754
      %v756 = vsel %vm608, %v718, 0.0
      %v757 = vadd.f32 %v755, %v756
      %v758 = vsel %vm608, %v719, 0.0
      %v759 = vadd.f32 %v757, %v758
      %v760 = vsel %vm608, %v720, 0.0
      %v761 = vadd.f32 %v759, %v760
      %v762 = vsel %vm608, %v721, 0.0
      %v763 = vadd.f32 %v761, %v762
      %v764 = vsel %vm608, %v722, 0.0
      %v765 = vadd.f32 %v763, %v764
      %v766 = vsel %vm608, %v723, 0.0
      %v767 = vadd.f32 %v765, %v766
      %v768 = vsel %vm608, %v724, 0.0
      %v769 = vadd.f32 %v767, %v768
      %v770 = vsel %vm608, %v725, 0.0
      %v771 = vadd.f32 %v769, %v770
      %v772 = vsel %vm608, %v726, 0.0
      %v773 = vadd.f32 %v771, %v772
      %v774 = vsel %vm608, %v727, 0.0
      %v775 = vadd.f32 %v773, %v774
      %v776 = vsel %vm608, %v728, 0.0
      %v777 = vadd.f32 %v775, %v776
      %v778 = vsel %vm608, %v729, 0.0
      %v779 = vadd.f32 %v777, %v778
      %v780 = vsel %vm608, %v730, 0.0
      %v781 = vadd.f32 %v779, %v780
      %v782 = vsel %vm608, %v731, 0.0
      %v783 = vadd.f32 %v781, %v782
      %v784 = vsel %vm608, %v732, 0.0
      %v785 = vadd.f32 %v783, %v784
      %v786 = vsel %vm608, %v733, 0.0
      %v787 = vadd.f32 %v785, %v786
      %v788 = vsel %vm608, %v734, 0.0
      %v789 = vadd.f32 %v787, %v788
      %v790 = vsel %vm608, %v735, 0.0
      %v791 = vadd.f32 %v789, %v790
      %v792 = vsel %vm608, %v736, 0.0
      %v793 = vadd.f32 %v791, %v792
      %v794 = vsel %vm608, %v737, 0.0
      %v795 = vadd.f32 %v793, %v794
      %v796 = vsel %vm608, %v738, 0.0
      %v797 = vadd.f32 %v795, %v796
      %v798 = vsel %vm608, %v739, 0.0
      %v799 = vadd.f32 %v797, %v798
      %v800 = vsel %vm608, %v740, 0.0
      %v801 = vadd.f32 %v799, %v800
      %v802 = vsel %vm608, %v741, 0.0
      %v803 = vadd.f32 %v801, %v802
      %v804 = vsel %vm608, %v742, 0.0
      %v805 = vadd.f32 %v803, %v804
      %v806 = vrot.slane %v805, 4
      %v807 = vadd.f32 %v805, %v806
      %v808 = vrot.slane %v807, 2
      %v809 = vadd.f32 %v807, %v808
      %v810 = vrot.slane %v809, 1
      %v811 = vadd.f32 %v809, %v810
      %v812 = vmul.f32 %v811, 0.00390625
      %v813 = vadd.f32 %v812, 1e-05
      %v814 = vrsqrt.pop %v813
      %v815 = vmul.f32 %v679, %v814
      %v816 = vmul.f32 %v680, %v814
      %v817 = vmul.f32 %v681, %v814
      %v818 = vmul.f32 %v682, %v814
      %v819 = vmul.f32 %v683, %v814
      %v820 = vmul.f32 %v684, %v814
      %v821 = vmul.f32 %v685, %v814
      %v822 = vmul.f32 %v686, %v814
      %v823 = vmul.f32 %v687, %v814
      %v824 = vmul.f32 %v688, %v814
      %v825 = vmul.f32 %v689, %v814
      %v826 = vmul.f32 %v690, %v814
      %v827 = vmul.f32 %v691, %v814
      %v828 = vmul.f32 %v692, %v814
      %v829 = vmul.f32 %v693, %v814
      %v830 = vmul.f32 %v694, %v814
      %v831 = vmul.f32 %v695, %v814
      %v832 = vmul.f32 %v696, %v814
      %v833 = vmul.f32 %v697, %v814
      %v834 = vmul.f32 %v698, %v814
      %v835 = vmul.f32 %v699, %v814
      %v836 = vmul.f32 %v700, %v814
      %v837 = vmul.f32 %v701, %v814
      %v838 = vmul.f32 %v702, %v814
      %v839 = vmul.f32 %v703, %v814
      %v840 = vmul.f32 %v704, %v814
      %v841 = vmul.f32 %v705, %v814
      %v842 = vmul.f32 %v706, %v814
      %v843 = vmul.f32 %v707, %v814
      %v844 = vmul.f32 %v708, %v814
      %v845 = vmul.f32 %v709, %v814
      %v846 = vmul.f32 %v710, %v814
      %v848 = vlaneseq
      %v849 = vshrl.u32 %v848, 7
      %v850 = vsub.s32 0, %v849
      %v851 = vrot.slane %v606, %v850
      %v853 = vmul.f32 %v815, %v851
      %v854 = vmul.f32 %v816, %v851
      %v855 = vmul.f32 %v817, %v851
      %v856 = vmul.f32 %v818, %v851
      %v857 = vmul.f32 %v819, %v851
      %v858 = vmul.f32 %v820, %v851
      %v859 = vmul.f32 %v821, %v851
      %v860 = vmul.f32 %v822, %v851
      %v861 = vmul.f32 %v823, %v851
      %v862 = vmul.f32 %v824, %v851
      %v863 = vmul.f32 %v825, %v851
      %v864 = vmul.f32 %v826, %v851
      %v865 = vmul.f32 %v827, %v851
      %v866 = vmul.f32 %v828, %v851
      %v867 = vmul.f32 %v829, %v851
      %v868 = vmul.f32 %v830, %v851
      %v869 = vmul.f32 %v831, %v851
      %v870 = vmul.f32 %v832, %v851
      %v871 = vmul.f32 %v833, %v851
      %v872 = vmul.f32 %v834, %v851
      %v873 = vmul.f32 %v835, %v851
      %v874 = vmul.f32 %v836, %v851
      %v875 = vmul.f32 %v837, %v851
      %v876 = vmul.f32 %v838, %v851
      %v877 = vmul.f32 %v839, %v851
      %v878 = vmul.f32 %v840, %v851
      %v879 = vmul.f32 %v841, %v851
      %v880 = vmul.f32 %v842, %v851
      %v881 = vmul.f32 %v843, %v851
      %v882 = vmul.f32 %v844, %v851
      %v883 = vmul.f32 %v845, %v851
      %v884 = vmul.f32 %v846, %v851
      %v886 = vlaneseq
      %v887 = vshrl.u32 %v886, 7
      %v888 = vsub.s32 0, %v887
      %v889 = vrot.slane %v607, %v888
      %v891 = vadd.f32 %v853, %v889
      %v892 = vadd.f32 %v854, %v889
      %v893 = vadd.f32 %v855, %v889
      %v894 = vadd.f32 %v856, %v889
      %v895 = vadd.f32 %v857, %v889
      %v896 = vadd.f32 %v858, %v889
      %v897 = vadd.f32 %v859, %v889
      %v898 = vadd.f32 %v860, %v889
      %v899 = vadd.f32 %v861, %v889
      %v900 = vadd.f32 %v862, %v889
      %v901 = vadd.f32 %v863, %v889
      %v902 = vadd.f32 %v864, %v889
      %v903 = vadd.f32 %v865, %v889
      %v904 = vadd.f32 %v866, %v889
      %v905 = vadd.f32 %v867, %v889
      %v906 = vadd.f32 %v868, %v889
      %v907 = vadd.f32 %v869, %v889
      %v908 = vadd.f32 %v870, %v889
      %v909 = vadd.f32 %v871, %v889
      %v910 = vadd.f32 %v872, %v889
      %v911 = vadd.f32 %v873, %v889
      %v912 = vadd.f32 %v874, %v889
      %v913 = vadd.f32 %v875, %v889
      %v914 = vadd.f32 %v876, %v889
      %v915 = vadd.f32 %v877, %v889
      %v916 = vadd.f32 %v878, %v889
      %v917 = vadd.f32 %v879, %v889
      %v918 = vadd.f32 %v880, %v889
      %v919 = vadd.f32 %v881, %v889
      %v920 = vadd.f32 %v882, %v889
      %v921 = vadd.f32 %v883, %v889
      %v922 = vadd.f32 %v884, %v889
      %vm923 = vcmp.gt.f32.partialorder %v891, 0.0
      %vm924 = vcmp.gt.f32.partialorder %v892, 0.0
      %vm925 = vcmp.gt.f32.partialorder %v893, 0.0
      %vm926 = vcmp.gt.f32.partialorder %v894, 0.0
      %vm927 = vcmp.gt.f32.partialorder %v895, 0.0
      %vm928 = vcmp.gt.f32.partialorder %v896, 0.0
      %vm929 = vcmp.gt.f32.partialorder %v897, 0.0
      %vm930 = vcmp.gt.f32.partialorder %v898, 0.0
      %vm931 = vcmp.gt.f32.partialorder %v899, 0.0
      %vm932 = vcmp.gt.f32.partialorder %v900, 0.0
      %vm933 = vcmp.gt.f32.partialorder %v901, 0.0
      %vm934 = vcmp.gt.f32.partialorder %v902, 0.0
      %vm935 = vcmp.gt.f32.partialorder %v903, 0.0
      %vm936 = vcmp.gt.f32.partialorder %v904, 0.0
      %vm937 = vcmp.gt.f32.partialorder %v905, 0.0
      %vm938 = vcmp.gt.f32.partialorder %v906, 0.0
      %vm939 = vcmp.gt.f32.partialorder %v907, 0.0
      %vm940 = vcmp.gt.f32.partialorder %v908, 0.0
      %vm941 = vcmp.gt.f32.partialorder %v909, 0.0
      %vm942 = vcmp.gt.f32.partialorder %v910, 0.0
      %vm943 = vcmp.gt.f32.partialorder %v911, 0.0
      %vm944 = vcmp.gt.f32.partialorder %v912, 0.0
      %vm945 = vcmp.gt.f32.partialorder %v913, 0.0
      %vm946 = vcmp.gt.f32.partialorder %v914, 0.0
      %vm947 = vcmp.gt.f32.partialorder %v915, 0.0
      %vm948 = vcmp.gt.f32.partialorder %v916, 0.0
      %vm949 = vcmp.gt.f32.partialorder %v917, 0.0
      %vm950 = vcmp.gt.f32.partialorder %v918, 0.0
      %vm951 = vcmp.gt.f32.partialorder %v919, 0.0
      %vm952 = vcmp.gt.f32.partialorder %v920, 0.0
      %vm953 = vcmp.gt.f32.partialorder %v921, 0.0
      %vm954 = vcmp.gt.f32.partialorder %v922, 0.0
      %v955 = vmul.f32 %v891, 0.2
      %v956 = vmul.f32 %v892, 0.2
      %v957 = vmul.f32 %v893, 0.2
      %v958 = vmul.f32 %v894, 0.2
      %v959 = vmul.f32 %v895, 0.2
      %v960 = vmul.f32 %v896, 0.2
      %v961 = vmul.f32 %v897, 0.2
      %v962 = vmul.f32 %v898, 0.2
      %v963 = vmul.f32 %v899, 0.2
      %v964 = vmul.f32 %v900, 0.2
      %v965 = vmul.f32 %v901, 0.2
      %v966 = vmul.f32 %v902, 0.2
      %v967 = vmul.f32 %v903, 0.2
      %v968 = vmul.f32 %v904, 0.2
      %v969 = vmul.f32 %v905, 0.2
      %v970 = vmul.f32 %v906, 0.2
      %v971 = vmul.f32 %v907, 0.2
      %v972 = vmul.f32 %v908, 0.2
      %v973 = vmul.f32 %v909, 0.2
      %v974 = vmul.f32 %v910, 0.2
      %v975 = vmul.f32 %v911, 0.2
      %v976 = vmul.f32 %v912, 0.2
      %v977 = vmul.f32 %v913, 0.2
      %v978 = vmul.f32 %v914, 0.2
      %v979 = vmul.f32 %v915, 0.2
      %v980 = vmul.f32 %v916, 0.2
      %v981 = vmul.f32 %v917, 0.2
      %v982 = vmul.f32 %v918, 0.2
      %v983 = vmul.f32 %v919, 0.2
      %v984 = vmul.f32 %v920, 0.2
      %v985 = vmul.f32 %v921, 0.2
      %v986 = vmul.f32 %v922, 0.2
      %v987 = vsel %vm923, %v891, %v955
      %v988 = vsel %vm924, %v892, %v956
      %v989 = vsel %vm925, %v893, %v957
      %v990 = vsel %vm926, %v894, %v958
      %v991 = vsel %vm927, %v895, %v959
      %v992 = vsel %vm928, %v896, %v960
      %v993 = vsel %vm929, %v897, %v961
      %v994 = vsel %vm930, %v898, %v962
      %v995 = vsel %vm931, %v899, %v963
      %v996 = vsel %vm932, %v900, %v964
      %v997 = vsel %vm933, %v901, %v965
      %v998 = vsel %vm934, %v902, %v966
      %v999 = vsel %vm935, %v903, %v967
      %v1000 = vsel %vm936, %v904, %v968
      %v1001 = vsel %vm937, %v905, %v969
      %v1002 = vsel %vm938, %v906, %v970
      %v1003 = vsel %vm939, %v907, %v971
      %v1004 = vsel %vm940, %v908, %v972
      %v1005 = vsel %vm941, %v909, %v973
      %v1006 = vsel %vm942, %v910, %v974
      %v1007 = vsel %vm943, %v911, %v975
      %v1008 = vsel %vm944, %v912, %v976
      %v1009 = vsel %vm945, %v913, %v977
      %v1010 = vsel %vm946, %v914, %v978
      %v1011 = vsel %vm947, %v915, %v979
      %v1012 = vsel %vm948, %v916, %v980
      %v1013 = vsel %vm949, %v917, %v981
      %v1014 = vsel %vm950, %v918, %v982
      %v1015 = vsel %vm951, %v919, %v983
      %v1016 = vsel %vm952, %v920, %v984
      %v1017 = vsel %vm953, %v921, %v985
      %v1018 = vsel %vm954, %v922, %v986
      %v1019 = vpack.c.bf16 %v988, %v987
      %v1020 = vpack.c.bf16 %v990, %v989
      %v1021 = vpack.c.bf16 %v992, %v991
      %v1022 = vpack.c.bf16 %v994, %v993
      %v1023 = vpack.c.bf16 %v996, %v995
      %v1024 = vpack.c.bf16 %v998, %v997
      %v1025 = vpack.c.bf16 %v1000, %v999
      %v1026 = vpack.c.bf16 %v1002, %v1001
      %v1027 = vpack.c.bf16 %v1004, %v1003
      %v1028 = vpack.c.bf16 %v1006, %v1005
      %v1029 = vpack.c.bf16 %v1008, %v1007
      %v1030 = vpack.c.bf16 %v1010, %v1009
      %v1031 = vpack.c.bf16 %v1012, %v1011
      %v1032 = vpack.c.bf16 %v1014, %v1013
      %v1033 = vpack.c.bf16 %v1016, %v1015
      %v1034 = vpack.c.bf16 %v1018, %v1017
      %v1051 = vunpack.c.l.b16 %v1019
      %v1052 = vunpack.c.h.b16 %v1019
      %v1053 = vunpack.c.l.b16 %v1020
      %v1054 = vunpack.c.h.b16 %v1020
      %v1055 = vunpack.c.l.b16 %v1021
      %v1056 = vunpack.c.h.b16 %v1021
      %v1057 = vunpack.c.l.b16 %v1022
      %v1058 = vunpack.c.h.b16 %v1022
      %v1059 = vunpack.c.l.b16 %v1023
      %v1060 = vunpack.c.h.b16 %v1023
      %v1061 = vunpack.c.l.b16 %v1024
      %v1062 = vunpack.c.h.b16 %v1024
      %v1063 = vunpack.c.l.b16 %v1025
      %v1064 = vunpack.c.h.b16 %v1025
      %v1065 = vunpack.c.l.b16 %v1026
      %v1066 = vunpack.c.h.b16 %v1026
      %v1067 = vunpack.c.l.b16 %v1027
      %v1068 = vunpack.c.h.b16 %v1027
      %v1069 = vunpack.c.l.b16 %v1028
      %v1070 = vunpack.c.h.b16 %v1028
      %v1071 = vunpack.c.l.b16 %v1029
      %v1072 = vunpack.c.h.b16 %v1029
      %v1073 = vunpack.c.l.b16 %v1030
      %v1074 = vunpack.c.h.b16 %v1030
      %v1075 = vunpack.c.l.b16 %v1031
      %v1076 = vunpack.c.h.b16 %v1031
      %v1077 = vunpack.c.l.b16 %v1032
      %v1078 = vunpack.c.h.b16 %v1032
      %v1079 = vunpack.c.l.b16 %v1033
      %v1080 = vunpack.c.h.b16 %v1033
      %v1081 = vunpack.c.l.b16 %v1034
      %v1082 = vunpack.c.h.b16 %v1034
      %v1083 = vpack.c.b16 %v1051, %v1051
      %v1084 = vpack.c.b16 %v1052, %v1052
      %v1085 = vpack.c.b16 %v1053, %v1053
      %v1086 = vpack.c.b16 %v1054, %v1054
      %v1087 = vpack.c.b16 %v1055, %v1055
      %v1088 = vpack.c.b16 %v1056, %v1056
      %v1089 = vpack.c.b16 %v1057, %v1057
      %v1090 = vpack.c.b16 %v1058, %v1058
      %v1091 = vpack.c.b16 %v1059, %v1059
      %v1092 = vpack.c.b16 %v1060, %v1060
      %v1093 = vpack.c.b16 %v1061, %v1061
      %v1094 = vpack.c.b16 %v1062, %v1062
      %v1095 = vpack.c.b16 %v1063, %v1063
      %v1096 = vpack.c.b16 %v1064, %v1064
      %v1097 = vpack.c.b16 %v1065, %v1065
      %v1098 = vpack.c.b16 %v1066, %v1066
      %v1099 = vpack.c.b16 %v1067, %v1067
      %v1100 = vpack.c.b16 %v1068, %v1068
      %v1101 = vpack.c.b16 %v1069, %v1069
      %v1102 = vpack.c.b16 %v1070, %v1070
      %v1103 = vpack.c.b16 %v1071, %v1071
      %v1104 = vpack.c.b16 %v1072, %v1072
      %v1105 = vpack.c.b16 %v1073, %v1073
      %v1106 = vpack.c.b16 %v1074, %v1074
      %v1107 = vpack.c.b16 %v1075, %v1075
      %v1108 = vpack.c.b16 %v1076, %v1076
      %v1109 = vpack.c.b16 %v1077, %v1077
      %v1110 = vpack.c.b16 %v1078, %v1078
      %v1111 = vpack.c.b16 %v1079, %v1079
      %v1112 = vpack.c.b16 %v1080, %v1080
      %v1113 = vpack.c.b16 %v1081, %v1081
      %v1114 = vpack.c.b16 %v1082, %v1082
      %vm1147 = vcmask 125952
      %1148 = vst.msk [vmem:[%s251] sm:$0xf] %vm1147, %v1083
      %1149 = vst.msk [vmem:[%s251 + $0x4] sm:$0xf] %vm1147, %v1084
      %1150 = vst.msk [vmem:[%s251 + $0x8] sm:$0xf] %vm1147, %v1085
      %1151 = vst.msk [vmem:[%s251 + $0xc] sm:$0xf] %vm1147, %v1086
      %1152 = vst.msk [vmem:[%s251 + $0x10] sm:$0xf] %vm1147, %v1087
      %1153 = vst.msk [vmem:[%s251 + $0x14] sm:$0xf] %vm1147, %v1088
      %1154 = vst.msk [vmem:[%s251 + $0x18] sm:$0xf] %vm1147, %v1089
      %1155 = vst.msk [vmem:[%s251 + $0x1c] sm:$0xf] %vm1147, %v1090
      %1156 = vst.msk [vmem:[%s251 + $0x20] sm:$0xf] %vm1147, %v1091
      %1157 = vst.msk [vmem:[%s251 + $0x24] sm:$0xf] %vm1147, %v1092
      %1158 = vst.msk [vmem:[%s251 + $0x28] sm:$0xf] %vm1147, %v1093
      %1159 = vst.msk [vmem:[%s251 + $0x2c] sm:$0xf] %vm1147, %v1094
      %1160 = vst.msk [vmem:[%s251 + $0x30] sm:$0xf] %vm1147, %v1095
      %1161 = vst.msk [vmem:[%s251 + $0x34] sm:$0xf] %vm1147, %v1096
      %1162 = vst.msk [vmem:[%s251 + $0x38] sm:$0xf] %vm1147, %v1097
      %1163 = vst.msk [vmem:[%s251 + $0x3c] sm:$0xf] %vm1147, %v1098
      %1164 = vst.msk [vmem:[%s251 + $0x40] sm:$0xf] %vm1147, %v1099
      %1165 = vst.msk [vmem:[%s251 + $0x44] sm:$0xf] %vm1147, %v1100
      %1166 = vst.msk [vmem:[%s251 + $0x48] sm:$0xf] %vm1147, %v1101
      %1167 = vst.msk [vmem:[%s251 + $0x4c] sm:$0xf] %vm1147, %v1102
      %1168 = vst.msk [vmem:[%s251 + $0x50] sm:$0xf] %vm1147, %v1103
      %1169 = vst.msk [vmem:[%s251 + $0x54] sm:$0xf] %vm1147, %v1104
      %1170 = vst.msk [vmem:[%s251 + $0x58] sm:$0xf] %vm1147, %v1105
      %1171 = vst.msk [vmem:[%s251 + $0x5c] sm:$0xf] %vm1147, %v1106
      %1172 = vst.msk [vmem:[%s251 + $0x60] sm:$0xf] %vm1147, %v1107
      %1173 = vst.msk [vmem:[%s251 + $0x64] sm:$0xf] %vm1147, %v1108
      %1174 = vst.msk [vmem:[%s251 + $0x68] sm:$0xf] %vm1147, %v1109
      %1175 = vst.msk [vmem:[%s251 + $0x6c] sm:$0xf] %vm1147, %v1110
      %1176 = vst.msk [vmem:[%s251 + $0x70] sm:$0xf] %vm1147, %v1111
      %1177 = vst.msk [vmem:[%s251 + $0x74] sm:$0xf] %vm1147, %v1112
      %1178 = vst.msk [vmem:[%s251 + $0x78] sm:$0xf] %vm1147, %v1113
      %1179 = vst.msk [vmem:[%s251 + $0x7c] sm:$0xf] %vm1147, %v1114
      %p1180 = scmp.lt.s32.totalorder %s17, 1
      %s1181 = scalar_select %p1180, %s17, 1
      %s1182 = smul.addr %s1181, 32
      %s1183 = smul.addr %s1182, 4
      %s1184 = scalar_lea.vmem %s6, %s1183
      // Predicated region
      $region45: #{_lambda_.5} parent=43 // pred_check
        %p1185 = pneg %p166
      $region46: #{_lambda_.5} parent=43 // pred_check_branch
        %1187 = sbr.rel (%p1185) target = $region48
      $region47: #{_lambda_.5} parent=43 // pred_region
        _
      $region48: #{_lambda_.5} parent=43 // pred_fallthru
        _
    $region44: #{_lambda_.5} parent=5 // pred_fallthru
      _
    %p1188 = scmp.le.s32.totalorder 2, %s12
    // Predicated region
    $region49: #{_lambda_.5} parent=5 // pred_check
      %p1189 = pneg %p1188
    $region50: #{_lambda_.5} parent=5 // pred_check_branch
      %1191 = sbr.rel (%p1189) target = $region52
    $region51: #{_lambda_.5} parent=5 // pred_region
      %s1192 = ssub.s32 %s12, 2
      // Predicated region
      $region53: #{_lambda_.5} parent=51 // pred_check
        %p1193 = pneg %p172
      $region54: #{_lambda_.5} parent=51 // pred_check_branch
        %1195 = sbr.rel (%p1193) target = $region56
      $region55: #{_lambda_.5} parent=51 // pred_region
        %p1196 = scmp.lt.s32.totalorder %s18, 1
        %s1197 = scalar_select %p1196, %s18, 1
        %s1198 = smul.addr %s1197, 32
        %s1199 = smul.addr %s1198, 4
        %s1200 = scalar_lea.vmem %s6, %s1199
      $region56: #{_lambda_.5} parent=51 // pred_fallthru
        _
    $region52: #{_lambda_.5} parent=5 // pred_fallthru
      _
  $region6: #{_lambda_.5} parent=0 // loop_footer
    %s16 = sadd.s32 1, %s12
  $region7: #{_lambda_.5} parent=0 // loop_footer_branch
    %11 = sbr.rel target = $region3
  $region8: #{_lambda_.5} parent=0 // loop_exit
    _

// kernel: _lambda_.6
$region0: #{_lambda_.6}
  #allocation0 [shape = 'u32[]', space=smem, size = 0x4, offset = 0x4, fixed_abs, tag = 'smem constant byte address 0x4 - core index']
  #allocation1 [shape = 'u32[144,128]{1,0:T(1,128)}', space=vmem, size = 0x12000, scoped, tag = 'internal scratch']
  %s0 = inlined_call_operand.vmem [shape: bf16[2,64,256], index: 0, kind: input, shape index: {}]
  %s1 = inlined_call_operand.vmem [shape: bf16[256,32], index: 1, kind: input, shape index: {}]
  %s2 = inlined_call_operand.vmem [shape: f32[32,32], index: 2, kind: input, shape index: {}]
  %s3 = inlined_call_operand.vmem [shape: f32[32,32], index: 3, kind: input, shape index: {}]
  %s4 = inlined_call_operand.vmem [shape: f32[1,32], index: 4, kind: input, shape index: {}]
  %s5 = inlined_call_operand.vmem [shape: f32[1,32], index: 5, kind: input, shape index: {}]
  %s6 = inlined_call_operand.vmem [shape: bf16[2,64,32], index: 6, kind: output, shape index: {}]
  %s7 = sld [smem:[#allocation0]]
  $region34: #{_lambda_.6} parent=0
    _
  %s9 = ssub.s32 1, %s7
  %s10 = scalar_select 0, %s9, %s7
  // Predicated region
  $region2: #{_lambda_.6} parent=0 // pred_check
    _
  $region3: #{_lambda_.6} parent=0 // pred_check_branch
    %12 = sbr.rel (0) target = $region5
  $region4: #{_lambda_.6} parent=0 // pred_region
    _
  $region5: #{_lambda_.6} parent=0 // pred_fallthru
    _
  // Predicated region
  $region6: #{_lambda_.6} parent=0 // pred_check
    _
  $region7: #{_lambda_.6} parent=0 // pred_check_branch
    %14 = sbr.rel (0) target = $region9
  $region8: #{_lambda_.6} parent=0 // pred_region
    _
  $region9: #{_lambda_.6} parent=0 // pred_fallthru
    _
  // Predicated region
  $region10: #{_lambda_.6} parent=0 // pred_check
    _
  $region11: #{_lambda_.6} parent=0 // pred_check_branch
    %16 = sbr.rel (0) target = $region13
  $region12: #{_lambda_.6} parent=0 // pred_region
    _
  $region13: #{_lambda_.6} parent=0 // pred_fallthru
    _
  // Predicated region
  $region14: #{_lambda_.6} parent=0 // pred_check
    _
  $region15: #{_lambda_.6} parent=0 // pred_check_branch
    %18 = sbr.rel (0) target = $region17
  $region16: #{_lambda_.6} parent=0 // pred_region
    _
  $region17: #{_lambda_.6} parent=0 // pred_fallthru
    _
  // Predicated region
  $region18: #{_lambda_.6} parent=0 // pred_check
    _
  $region19: #{_lambda_.6} parent=0 // pred_check_branch
    %20 = sbr.rel (0) target = $region21
  $region20: #{_lambda_.6} parent=0 // pred_region
    _
  $region21: #{_lambda_.6} parent=0 // pred_fallthru
    _
  // Predicated region
  $region22: #{_lambda_.6} parent=0 // pred_check
    _
  $region23: #{_lambda_.6} parent=0 // pred_check_branch
    %22 = sbr.rel (0) target = $region25
  $region24: #{_lambda_.6} parent=0 // pred_region
    _
  $region25: #{_lambda_.6} parent=0 // pred_fallthru
    _
  %v24 = vld [vmem:[%s0] sm:$0xff]
  %v25 = vld [vmem:[%s0 + $0x8] sm:$0xff]
  %v26 = vld [vmem:[%s0 + $0x10] sm:$0xff]
  %v27 = vld [vmem:[%s0 + $0x18] sm:$0xff]
  %v28 = vld [vmem:[%s0 + $0x20] sm:$0xff]
  %v29 = vld [vmem:[%s0 + $0x28] sm:$0xff]
  %v30 = vld [vmem:[%s0 + $0x30] sm:$0xff]
  %v31 = vld [vmem:[%s0 + $0x38] sm:$0xff]
  %v32 = vld [vmem:[%s0 + $0x40] sm:$0xff]
  %v33 = vld [vmem:[%s0 + $0x48] sm:$0xff]
  %v34 = vld [vmem:[%s0 + $0x50] sm:$0xff]
  %v35 = vld [vmem:[%s0 + $0x58] sm:$0xff]
  %v36 = vld [vmem:[%s0 + $0x60] sm:$0xff]
  %v37 = vld [vmem:[%s0 + $0x68] sm:$0xff]
  %v38 = vld [vmem:[%s0 + $0x70] sm:$0xff]
  %v39 = vld [vmem:[%s0 + $0x78] sm:$0xff]
  %v40 = vld [vmem:[%s1] sm:$0xf]
  %v41 = vld [vmem:[%s1 + $0x4] sm:$0xf]
  %v42 = vld [vmem:[%s1 + $0x8] sm:$0xf]
  %v43 = vld [vmem:[%s1 + $0xc] sm:$0xf]
  %v44 = vld [vmem:[%s1 + $0x10] sm:$0xf]
  %v45 = vld [vmem:[%s1 + $0x14] sm:$0xf]
  %v46 = vld [vmem:[%s1 + $0x18] sm:$0xf]
  %v47 = vld [vmem:[%s1 + $0x1c] sm:$0xf]
  %v48 = vld [vmem:[%s1 + $0x20] sm:$0xf]
  %v49 = vld [vmem:[%s1 + $0x24] sm:$0xf]
  %v50 = vld [vmem:[%s1 + $0x28] sm:$0xf]
  %v51 = vld [vmem:[%s1 + $0x2c] sm:$0xf]
  %v52 = vld [vmem:[%s1 + $0x30] sm:$0xf]
  %v53 = vld [vmem:[%s1 + $0x34] sm:$0xf]
  %v54 = vld [vmem:[%s1 + $0x38] sm:$0xf]
  %v55 = vld [vmem:[%s1 + $0x3c] sm:$0xf]
  %v56 = vld [vmem:[%s1 + $0x40] sm:$0xf]
  %v57 = vld [vmem:[%s1 + $0x44] sm:$0xf]
  %v58 = vld [vmem:[%s1 + $0x48] sm:$0xf]
  %v59 = vld [vmem:[%s1 + $0x4c] sm:$0xf]
  %v60 = vld [vmem:[%s1 + $0x50] sm:$0xf]
  %v61 = vld [vmem:[%s1 + $0x54] sm:$0xf]
  %v62 = vld [vmem:[%s1 + $0x58] sm:$0xf]
  %v63 = vld [vmem:[%s1 + $0x5c] sm:$0xf]
  %v64 = vld [vmem:[%s1 + $0x60] sm:$0xf]
  %v65 = vld [vmem:[%s1 + $0x64] sm:$0xf]
  %v66 = vld [vmem:[%s1 + $0x68] sm:$0xf]
  %v67 = vld [vmem:[%s1 + $0x6c] sm:$0xf]
  %v68 = vld [vmem:[%s1 + $0x70] sm:$0xf]
  %v69 = vld [vmem:[%s1 + $0x74] sm:$0xf]
  %v70 = vld [vmem:[%s1 + $0x78] sm:$0xf]
  %v71 = vld [vmem:[%s1 + $0x7c] sm:$0xf]
  %v88 = vunpack.c.l.b16 %v24
  %v89 = vunpack.c.h.b16 %v24
  %v90 = vunpack.c.l.b16 %v25
  %v91 = vunpack.c.h.b16 %v25
  %v92 = vunpack.c.l.b16 %v26
  %v93 = vunpack.c.h.b16 %v26
  %v94 = vunpack.c.l.b16 %v27
  %v95 = vunpack.c.h.b16 %v27
  %v96 = vunpack.c.l.b16 %v28
  %v97 = vunpack.c.h.b16 %v28
  %v98 = vunpack.c.l.b16 %v29
  %v99 = vunpack.c.h.b16 %v29
  %v100 = vunpack.c.l.b16 %v30
  %v101 = vunpack.c.h.b16 %v30
  %v102 = vunpack.c.l.b16 %v31
  %v103 = vunpack.c.h.b16 %v31
  %v104 = vunpack.c.l.b16 %v32
  %v105 = vunpack.c.h.b16 %v32
  %v106 = vunpack.c.l.b16 %v33
  %v107 = vunpack.c.h.b16 %v33
  %v108 = vunpack.c.l.b16 %v34
  %v109 = vunpack.c.h.b16 %v34
  %v110 = vunpack.c.l.b16 %v35
  %v111 = vunpack.c.h.b16 %v35
  %v112 = vunpack.c.l.b16 %v36
  %v113 = vunpack.c.h.b16 %v36
  %v114 = vunpack.c.l.b16 %v37
  %v115 = vunpack.c.h.b16 %v37
  %v116 = vunpack.c.l.b16 %v38
  %v117 = vunpack.c.h.b16 %v38
  %v118 = vunpack.c.l.b16 %v39
  %v119 = vunpack.c.h.b16 %v39
  %v120 = vpack.c.b16 %v90, %v88
  %v121 = vpack.c.b16 %v91, %v89
  %v122 = vpack.c.b16 %v94, %v92
  %v123 = vpack.c.b16 %v95, %v93
  %v124 = vpack.c.b16 %v98, %v96
  %v125 = vpack.c.b16 %v99, %v97
  %v126 = vpack.c.b16 %v102, %v100
  %v127 = vpack.c.b16 %v103, %v101
  %v128 = vpack.c.b16 %v106, %v104
  %v129 = vpack.c.b16 %v107, %v105
  %v130 = vpack.c.b16 %v110, %v108
  %v131 = vpack.c.b16 %v111, %v109
  %v132 = vpack.c.b16 %v114, %v112
  %v133 = vpack.c.b16 %v115, %v113
  %v134 = vpack.c.b16 %v118, %v116
  %v135 = vpack.c.b16 %v119, %v117
  %v184 = vunpack.c.l.b16 %v40
  %v185 = vunpack.c.l.b16 %v41
  %v186 = vunpack.c.l.b16 %v42
  %v187 = vunpack.c.l.b16 %v43
  %v188 = vunpack.c.l.b16 %v44
  %v189 = vunpack.c.l.b16 %v45
  %v190 = vunpack.c.l.b16 %v46
  %v191 = vunpack.c.l.b16 %v47
  %v192 = vunpack.c.l.b16 %v48
  %v193 = vunpack.c.l.b16 %v49
  %v194 = vunpack.c.l.b16 %v50
  %v195 = vunpack.c.l.b16 %v51
  %v196 = vunpack.c.l.b16 %v52
  %v197 = vunpack.c.l.b16 %v53
  %v198 = vunpack.c.l.b16 %v54
  %v199 = vunpack.c.l.b16 %v55
  %v200 = vunpack.c.l.b16 %v56
  %v201 = vunpack.c.l.b16 %v57
  %v202 = vunpack.c.l.b16 %v58
  %v203 = vunpack.c.l.b16 %v59
  %v204 = vunpack.c.l.b16 %v60
  %v205 = vunpack.c.l.b16 %v61
  %v206 = vunpack.c.l.b16 %v62
  %v207 = vunpack.c.l.b16 %v63
  %v208 = vunpack.c.l.b16 %v64
  %v209 = vunpack.c.l.b16 %v65
  %v210 = vunpack.c.l.b16 %v66
  %v211 = vunpack.c.l.b16 %v67
  %v212 = vunpack.c.l.b16 %v68
  %v213 = vunpack.c.l.b16 %v69
  %v214 = vunpack.c.l.b16 %v70
  %v215 = vunpack.c.l.b16 %v71
  %v216 = vpack.c.b16 %v185, %v184
  %v217 = vpack.c.b16 %v187, %v186
  %v218 = vpack.c.b16 %v189, %v188
  %v219 = vpack.c.b16 %v191, %v190
  %v220 = vpack.c.b16 %v193, %v192
  %v221 = vpack.c.b16 %v195, %v194
  %v222 = vpack.c.b16 %v197, %v196
  %v223 = vpack.c.b16 %v199, %v198
  %v224 = vpack.c.b16 %v201, %v200
  %v225 = vpack.c.b16 %v203, %v202
  %v226 = vpack.c.b16 %v205, %v204
  %v227 = vpack.c.b16 %v207, %v206
  %v228 = vpack.c.b16 %v209, %v208
  %v229 = vpack.c.b16 %v211, %v210
  %v230 = vpack.c.b16 %v213, %v212
  %v231 = vpack.c.b16 %v215, %v214
  %248 = vmatprep.subr.bf16.mxu0 0
  %249 = vmatpush1.bf16.msra.mxu0 %v216
  %250 = vmatprep.subr.bf16.mxu0 0
  %251 = vmatpush1.bf16.msra.mxu0 %v217
  %252 = vmatprep.subr.bf16.mxu0 0
  %253 = vmatpush1.bf16.msra.mxu0 %v218
  %254 = vmatprep.subr.bf16.mxu0 0
  %255 = vmatpush1.bf16.msra.mxu0 %v219
  %256 = vmatprep.subr.bf16.mxu0 0
  %257 = vmatpush1.bf16.msra.mxu0 %v220
  %258 = vmatprep.subr.bf16.mxu0 0
  %259 = vmatpush1.bf16.msra.mxu0 %v221
  %260 = vmatprep.subr.bf16.mxu0 0
  %261 = vmatpush1.bf16.msra.mxu0 %v222
  %262 = vmatprep.subr.bf16.mxu0 0
  %263 = vmatpush1.bf16.msra.mxu0 %v223
  %264 = vmatprep.subr.bf16.mxu0 0
  %265 = vmatpush1.bf16.msra.mxu0 %v224
  %266 = vmatprep.subr.bf16.mxu0 0
  %267 = vmatpush1.bf16.msra.mxu0 %v225
  %268 = vmatprep.subr.bf16.mxu0 0
  %269 = vmatpush1.bf16.msra.mxu0 %v226
  %270 = vmatprep.subr.bf16.mxu0 0
  %271 = vmatpush1.bf16.msra.mxu0 %v227
  %272 = vmatprep.subr.bf16.mxu0 0
  %273 = vmatpush1.bf16.msra.mxu0 %v228
  %274 = vmatprep.subr.bf16.mxu0 0
  %275 = vmatpush1.bf16.msra.mxu0 %v229
  %276 = vmatprep.subr.bf16.mxu0 0
  %277 = vmatpush1.bf16.msra.mxu0 %v230
  %278 = vmatprep.subr.bf16.mxu0 0
  %279 = vmatpush1.bf16.msra.mxu0 %v231
  %280 = vmatprep.mubr.bf16.mxu0 %v121
  %281 = vmatmul.mubr.bf16.gmra.mrb[0].mxu0 %v120
  %v282 = vpop.f32.mrb[0].mxu0
  %v283 = vadd.f32 0.0, %v282
  %v284 = vpop.f32.mrb[0].mxu0
  %v285 = vpop.f32.mrb[0].mxu0
  %v286 = vadd.f32 0.0, %v285
  %v287 = vpop.f32.mrb[0].mxu0
  %288 = vmatprep.mubr.bf16.mxu0 %v123
  %289 = vmatmul.mubr.bf16.gmra.mrb[0].mxu0 %v122
  %v290 = vpop.f32.mrb[0].mxu0
  %v291 = vadd.f32 0.0, %v290
  %v292 = vpop.f32.mrb[0].mxu0
  %v293 = vpop.f32.mrb[0].mxu0
  %v294 = vadd.f32 0.0, %v293
  %v295 = vpop.f32.mrb[0].mxu0
  %296 = vmatprep.mubr.bf16.mxu0 %v125
  %297 = vmatmul.mubr.bf16.gmra.mrb[0].mxu0 %v124
  %v298 = vpop.f32.mrb[0].mxu0
  %v299 = vadd.f32 0.0, %v298
  %v300 = vpop.f32.mrb[0].mxu0
  %v301 = vpop.f32.mrb[0].mxu0
  %v302 = vadd.f32 0.0, %v301
  %v303 = vpop.f32.mrb[0].mxu0
  %304 = vmatprep.mubr.bf16.mxu0 %v127
  %305 = vmatmul.mubr.bf16.gmra.mrb[0].mxu0 %v126
  %v306 = vpop.f32.mrb[0].mxu0
  %v307 = vadd.f32 0.0, %v306
  %v308 = vpop.f32.mrb[0].mxu0
  %v309 = vpop.f32.mrb[0].mxu0
  %v310 = vadd.f32 0.0, %v309
  %v311 = vpop.f32.mrb[0].mxu0
  %312 = vmatprep.mubr.bf16.mxu0 %v129
  %313 = vmatmul.mubr.bf16.gmra.mrb[0].mxu0 %v128
  %v314 = vpop.f32.mrb[0].mxu0
  %v315 = vadd.f32 0.0, %v314
  %v316 = vpop.f32.mrb[0].mxu0
  %v317 = vpop.f32.mrb[0].mxu0
  %v318 = vadd.f32 0.0, %v317
  %v319 = vpop.f32.mrb[0].mxu0
  %320 = vmatprep.mubr.bf16.mxu0 %v131
  %321 = vmatmul.mubr.bf16.gmra.mrb[0].mxu0 %v130
  %v322 = vpop.f32.mrb[0].mxu0
  %v323 = vadd.f32 0.0, %v322
  %v324 = vpop.f32.mrb[0].mxu0
  %v325 = vpop.f32.mrb[0].mxu0
  %v326 = vadd.f32 0.0, %v325
  %v327 = vpop.f32.mrb[0].mxu0
  %328 = vmatprep.mubr.bf16.mxu0 %v133
  %329 = vmatmul.mubr.bf16.gmra.mrb[0].mxu0 %v132
  %v330 = vpop.f32.mrb[0].mxu0
  %v331 = vadd.f32 0.0, %v330
  %v332 = vpop.f32.mrb[0].mxu0
  %v333 = vpop.f32.mrb[0].mxu0
  %v334 = vadd.f32 0.0, %v333
  %v335 = vpop.f32.mrb[0].mxu0
  %336 = vmatprep.mubr.bf16.mxu0 %v135
  %337 = vmatmul.mubr.bf16.gmra.mrb[0].mxu0 %v134
  %v338 = vpop.f32.mrb[0].mxu0
  %v339 = vadd.f32 0.0, %v338
  %v340 = vpop.f32.mrb[0].mxu0
  %v341 = vpop.f32.mrb[0].mxu0
  %v342 = vadd.f32 0.0, %v341
  %v343 = vpop.f32.mrb[0].mxu0
  %344 = vdwg.mxu0
  %v345 = vld [vmem:[%s4] sm:$0x1]
  %v346 = vld [vmem:[%s5] sm:$0x1]
  %vm347 = vcmask 261120
  %v348 = vsel %vm347, %v283, 0.0
  %v349 = vsel %vm347, %v286, 0.0
  %v350 = vadd.f32 %v348, %v349
  %v351 = vsel %vm347, %v291, 0.0
  %v352 = vadd.f32 %v350, %v351
  %v353 = vsel %vm347, %v294, 0.0
  %v354 = vadd.f32 %v352, %v353
  %v355 = vsel %vm347, %v299, 0.0
  %v356 = vadd.f32 %v354, %v355
  %v357 = vsel %vm347, %v302, 0.0
  %v358 = vadd.f32 %v356, %v357
  %v359 = vsel %vm347, %v307, 0.0
  %v360 = vadd.f32 %v358, %v359
  %v361 = vsel %vm347, %v310, 0.0
  %v362 = vadd.f32 %v360, %v361
  %v363 = vrot.slane %v362, 4
  %v364 = vadd.f32 %v362, %v363
  %v365 = vrot.slane %v364, 2
  %v366 = vadd.f32 %v364, %v365
  %v367 = vrot.slane %v366, 1
  %v368 = vadd.f32 %v366, %v367
  %v369 = vsel %vm347, %v315, 0.0
  %v370 = vsel %vm347, %v318, 0.0
  %v371 = vadd.f32 %v369, %v370
  %v372 = vsel %vm347, %v323, 0.0
  %v373 = vadd.f32 %v371, %v372
  %v374 = vsel %vm347, %v326, 0.0
  %v375 = vadd.f32 %v373, %v374
  %v376 = vsel %vm347, %v331, 0.0
  %v377 = vadd.f32 %v375, %v376
  %v378 = vsel %vm347, %v334, 0.0
  %v379 = vadd.f32 %v377, %v378
  %v380 = vsel %vm347, %v339, 0.0
  %v381 = vadd.f32 %v379, %v380
  %v382 = vsel %vm347, %v342, 0.0
  %v383 = vadd.f32 %v381, %v382
  %v384 = vrot.slane %v383, 4
  %v385 = vadd.f32 %v383, %v384
  %v386 = vrot.slane %v385, 2
  %v387 = vadd.f32 %v385, %v386
  %v388 = vrot.slane %v387, 1
  %v389 = vadd.f32 %v387, %v388
  %v390 = vmul.f32 %v368, 0.015625
  %v391 = vmul.f32 %v389, 0.015625
  %v392 = vsub.f32 %v283, %v390
  %v393 = vsub.f32 %v286, %v390
  %v394 = vsub.f32 %v291, %v390
  %v395 = vsub.f32 %v294, %v390
  %v396 = vsub.f32 %v299, %v390
  %v397 = vsub.f32 %v302, %v390
  %v398 = vsub.f32 %v307, %v390
  %v399 = vsub.f32 %v310, %v390
  %v400 = vsub.f32 %v315, %v391
  %v401 = vsub.f32 %v318, %v391
  %v402 = vsub.f32 %v323, %v391
  %v403 = vsub.f32 %v326, %v391
  %v404 = vsub.f32 %v331, %v391
  %v405 = vsub.f32 %v334, %v391
  %v406 = vsub.f32 %v339, %v391
  %v407 = vsub.f32 %v342, %v391
  %v408 = vmul.f32 %v392, %v392
  %v409 = vmul.f32 %v393, %v393
  %v410 = vmul.f32 %v394, %v394
  %v411 = vmul.f32 %v395, %v395
  %v412 = vmul.f32 %v396, %v396
  %v413 = vmul.f32 %v397, %v397
  %v414 = vmul.f32 %v398, %v398
  %v415 = vmul.f32 %v399, %v399
  %v416 = vmul.f32 %v400, %v400
  %v417 = vmul.f32 %v401, %v401
  %v418 = vmul.f32 %v402, %v402
  %v419 = vmul.f32 %v403, %v403
  %v420 = vmul.f32 %v404, %v404
  %v421 = vmul.f32 %v405, %v405
  %v422 = vmul.f32 %v406, %v406
  %v423 = vmul.f32 %v407, %v407
  %v424 = vsel %vm347, %v408, 0.0
  %v425 = vsel %vm347, %v409, 0.0
  %v426 = vadd.f32 %v424, %v425
  %v427 = vsel %vm347, %v410, 0.0
  %v428 = vadd.f32 %v426, %v427
  %v429 = vsel %vm347, %v411, 0.0
  %v430 = vadd.f32 %v428, %v429
  %v431 = vsel %vm347, %v412, 0.0
  %v432 = vadd.f32 %v430, %v431
  %v433 = vsel %vm347, %v413, 0.0
  %v434 = vadd.f32 %v432, %v433
  %v435 = vsel %vm347, %v414, 0.0
  %v436 = vadd.f32 %v434, %v435
  %v437 = vsel %vm347, %v415, 0.0
  %v438 = vadd.f32 %v436, %v437
  %v439 = vrot.slane %v438, 4
  %v440 = vadd.f32 %v438, %v439
  %v441 = vrot.slane %v440, 2
  %v442 = vadd.f32 %v440, %v441
  %v443 = vrot.slane %v442, 1
  %v444 = vadd.f32 %v442, %v443
  %v445 = vsel %vm347, %v416, 0.0
  %v446 = vsel %vm347, %v417, 0.0
  %v447 = vadd.f32 %v445, %v446
  %v448 = vsel %vm347, %v418, 0.0
  %v449 = vadd.f32 %v447, %v448
  %v450 = vsel %vm347, %v419, 0.0
  %v451 = vadd.f32 %v449, %v450
  %v452 = vsel %vm347, %v420, 0.0
  %v453 = vadd.f32 %v451, %v452
  %v454 = vsel %vm347, %v421, 0.0
  %v455 = vadd.f32 %v453, %v454
  %v456 = vsel %vm347, %v422, 0.0
  %v457 = vadd.f32 %v455, %v456
  %v458 = vsel %vm347, %v423, 0.0
  %v459 = vadd.f32 %v457, %v458
  %v460 = vrot.slane %v459, 4
  %v461 = vadd.f32 %v459, %v460
  %v462 = vrot.slane %v461, 2
  %v463 = vadd.f32 %v461, %v462
  %v464 = vrot.slane %v463, 1
  %v465 = vadd.f32 %v463, %v464
  %v466 = vmul.f32 %v444, 0.015625
  %v467 = vmul.f32 %v465, 0.015625
  %v468 = vadd.f32 %v466, 1e-05
  %v469 = vadd.f32 %v467, 1e-05
  %v470 = vrsqrt.pop %v468
  %v471 = vrsqrt.pop %v469
  %v472 = vmul.f32 %v392, %v470
  %v473 = vmul.f32 %v393, %v470
  %v474 = vmul.f32 %v394, %v470
  %v475 = vmul.f32 %v395, %v470
  %v476 = vmul.f32 %v396, %v470
  %v477 = vmul.f32 %v397, %v470
  %v478 = vmul.f32 %v398, %v470
  %v479 = vmul.f32 %v399, %v470
  %v480 = vmul.f32 %v400, %v471
  %v481 = vmul.f32 %v401, %v471
  %v482 = vmul.f32 %v402, %v471
  %v483 = vmul.f32 %v403, %v471
  %v484 = vmul.f32 %v404, %v471
  %v485 = vmul.f32 %v405, %v471
  %v486 = vmul.f32 %v406, %v471
  %v487 = vmul.f32 %v407, %v471
  %v489 = vlaneseq
  %v490 = vshrl.u32 %v489, 7
  %v491 = vsub.s32 0, %v490
  %v492 = vrot.slane %v345, %v491
  %v494 = vmul.f32 %v472, %v492
  %v495 = vmul.f32 %v473, %v492
  %v496 = vmul.f32 %v474, %v492
  %v497 = vmul.f32 %v475, %v492
  %v498 = vmul.f32 %v476, %v492
  %v499 = vmul.f32 %v477, %v492
  %v500 = vmul.f32 %v478, %v492
  %v501 = vmul.f32 %v479, %v492
  %v502 = vmul.f32 %v480, %v492
  %v503 = vmul.f32 %v481, %v492
  %v504 = vmul.f32 %v482, %v492
  %v505 = vmul.f32 %v483, %v492
  %v506 = vmul.f32 %v484, %v492
  %v507 = vmul.f32 %v485, %v492
  %v508 = vmul.f32 %v486, %v492
  %v509 = vmul.f32 %v487, %v492
  %v511 = vlaneseq
  %v512 = vshrl.u32 %v511, 7
  %v513 = vsub.s32 0, %v512
  %v514 = vrot.slane %v346, %v513
  %v516 = vadd.f32 %v494, %v514
  %v517 = vadd.f32 %v495, %v514
  %v518 = vadd.f32 %v496, %v514
  %v519 = vadd.f32 %v497, %v514
  %v520 = vadd.f32 %v498, %v514
  %v521 = vadd.f32 %v499, %v514
  %v522 = vadd.f32 %v500, %v514
  %v523 = vadd.f32 %v501, %v514
  %v524 = vadd.f32 %v502, %v514
  %v525 = vadd.f32 %v503, %v514
  %v526 = vadd.f32 %v504, %v514
  %v527 = vadd.f32 %v505, %v514
  %v528 = vadd.f32 %v506, %v514
  %v529 = vadd.f32 %v507, %v514
  %v530 = vadd.f32 %v508, %v514
  %v531 = vadd.f32 %v509, %v514
  %vm532 = vcmp.gt.f32.partialorder %v516, 0.0
  %vm533 = vcmp.gt.f32.partialorder %v517, 0.0
  %vm534 = vcmp.gt.f32.partialorder %v518, 0.0
  %vm535 = vcmp.gt.f32.partialorder %v519, 0.0
  %vm536 = vcmp.gt.f32.partialorder %v520, 0.0
  %vm537 = vcmp.gt.f32.partialorder %v521, 0.0
  %vm538 = vcmp.gt.f32.partialorder %v522, 0.0
  %vm539 = vcmp.gt.f32.partialorder %v523, 0.0
  %vm540 = vcmp.gt.f32.partialorder %v524, 0.0
  %vm541 = vcmp.gt.f32.partialorder %v525, 0.0
  %vm542 = vcmp.gt.f32.partialorder %v526, 0.0
  %vm543 = vcmp.gt.f32.partialorder %v527, 0.0
  %vm544 = vcmp.gt.f32.partialorder %v528, 0.0
  %vm545 = vcmp.gt.f32.partialorder %v529, 0.0
  %vm546 = vcmp.gt.f32.partialorder %v530, 0.0
  %vm547 = vcmp.gt.f32.partialorder %v531, 0.0
  %v548 = vmul.f32 %v516, 0.2
  %v549 = vmul.f32 %v517, 0.2
  %v550 = vmul.f32 %v518, 0.2
  %v551 = vmul.f32 %v519, 0.2
  %v552 = vmul.f32 %v520, 0.2
  %v553 = vmul.f32 %v521, 0.2
  %v554 = vmul.f32 %v522, 0.2
  %v555 = vmul.f32 %v523, 0.2
  %v556 = vmul.f32 %v524, 0.2
  %v557 = vmul.f32 %v525, 0.2
  %v558 = vmul.f32 %v526, 0.2
  %v559 = vmul.f32 %v527, 0.2
  %v560 = vmul.f32 %v528, 0.2
  %v561 = vmul.f32 %v529, 0.2
  %v562 = vmul.f32 %v530, 0.2
  %v563 = vmul.f32 %v531, 0.2
  %v564 = vsel %vm532, %v516, %v548
  %v565 = vsel %vm533, %v517, %v549
  %v566 = vsel %vm534, %v518, %v550
  %v567 = vsel %vm535, %v519, %v551
  %v568 = vsel %vm536, %v520, %v552
  %v569 = vsel %vm537, %v521, %v553
  %v570 = vsel %vm538, %v522, %v554
  %v571 = vsel %vm539, %v523, %v555
  %v572 = vsel %vm540, %v524, %v556
  %v573 = vsel %vm541, %v525, %v557
  %v574 = vsel %vm542, %v526, %v558
  %v575 = vsel %vm543, %v527, %v559
  %v576 = vsel %vm544, %v528, %v560
  %v577 = vsel %vm545, %v529, %v561
  %v578 = vsel %vm546, %v530, %v562
  %v579 = vsel %vm547, %v531, %v563
  %v580 = vpack.c.bf16 %v565, %v564
  %v581 = vpack.c.bf16 %v567, %v566
  %v582 = vpack.c.bf16 %v569, %v568
  %v583 = vpack.c.bf16 %v571, %v570
  %v584 = vpack.c.bf16 %v573, %v572
  %v585 = vpack.c.bf16 %v575, %v574
  %v586 = vpack.c.bf16 %v577, %v576
  %v587 = vpack.c.bf16 %v579, %v578
  %v596 = vunpack.c.l.b16 %v580
  %v597 = vunpack.c.h.b16 %v580
  %v598 = vunpack.c.l.b16 %v581
  %v599 = vunpack.c.h.b16 %v581
  %v600 = vunpack.c.l.b16 %v582
  %v601 = vunpack.c.h.b16 %v582
  %v602 = vunpack.c.l.b16 %v583
  %v603 = vunpack.c.h.b16 %v583
  %v604 = vunpack.c.l.b16 %v584
  %v605 = vunpack.c.h.b16 %v584
  %v606 = vunpack.c.l.b16 %v585
  %v607 = vunpack.c.h.b16 %v585
  %v608 = vunpack.c.l.b16 %v586
  %v609 = vunpack.c.h.b16 %v586
  %v610 = vunpack.c.l.b16 %v587
  %v611 = vunpack.c.h.b16 %v587
  %v612 = vpack.c.b16 %v596, %v596
  %v613 = vpack.c.b16 %v597, %v597
  %v614 = vpack.c.b16 %v598, %v598
  %v615 = vpack.c.b16 %v599, %v599
  %v616 = vpack.c.b16 %v600, %v600
  %v617 = vpack.c.b16 %v601, %v601
  %v618 = vpack.c.b16 %v602, %v602
  %v619 = vpack.c.b16 %v603, %v603
  %v620 = vpack.c.b16 %v604, %v604
  %v621 = vpack.c.b16 %v605, %v605
  %v622 = vpack.c.b16 %v606, %v606
  %v623 = vpack.c.b16 %v607, %v607
  %v624 = vpack.c.b16 %v608, %v608
  %v625 = vpack.c.b16 %v609, %v609
  %v626 = vpack.c.b16 %v610, %v610
  %v627 = vpack.c.b16 %v611, %v611
  %vm644 = vcmask 257024
  %645 = vst.msk [vmem:[%s6] sm:$0xf] %vm644, %v612
  %646 = vst.msk [vmem:[%s6 + $0x4] sm:$0xf] %vm644, %v613
  %647 = vst.msk [vmem:[%s6 + $0x8] sm:$0xf] %vm644, %v614
  %648 = vst.msk [vmem:[%s6 + $0xc] sm:$0xf] %vm644, %v615
  %649 = vst.msk [vmem:[%s6 + $0x10] sm:$0xf] %vm644, %v616
  %650 = vst.msk [vmem:[%s6 + $0x14] sm:$0xf] %vm644, %v617
  %651 = vst.msk [vmem:[%s6 + $0x18] sm:$0xf] %vm644, %v618
  %652 = vst.msk [vmem:[%s6 + $0x1c] sm:$0xf] %vm644, %v619
  %653 = vst.msk [vmem:[%s6 + $0x20] sm:$0xf] %vm644, %v620
  %654 = vst.msk [vmem:[%s6 + $0x24] sm:$0xf] %vm644, %v621
  %655 = vst.msk [vmem:[%s6 + $0x28] sm:$0xf] %vm644, %v622
  %656 = vst.msk [vmem:[%s6 + $0x2c] sm:$0xf] %vm644, %v623
  %657 = vst.msk [vmem:[%s6 + $0x30] sm:$0xf] %vm644, %v624
  %658 = vst.msk [vmem:[%s6 + $0x34] sm:$0xf] %vm644, %v625
  %659 = vst.msk [vmem:[%s6 + $0x38] sm:$0xf] %vm644, %v626
  %660 = vst.msk [vmem:[%s6 + $0x3c] sm:$0xf] %vm644, %v627
  // Predicated region
  $region26: #{_lambda_.6} parent=0 // pred_check
    _
  $region27: #{_lambda_.6} parent=0 // pred_check_branch
    %662 = sbr.rel (0) target = $region29
  $region28: #{_lambda_.6} parent=0 // pred_region
    _
  $region29: #{_lambda_.6} parent=0 // pred_fallthru
    _
  // Predicated region
  $region30: #{_lambda_.6} parent=0 // pred_check
    _
  $region31: #{_lambda_.6} parent=0 // pred_check_branch
    %664 = sbr.rel (0) target = $region33
  $region32: #{_lambda_.6} parent=0 // pred_region
    _
  $region33: #{_lambda_.6} parent=0 // pred_fallthru
    _

// kernel: _lambda_.7
$region0: #{_lambda_.7}
  #allocation0 [shape = 'u32[]', space=smem, size = 0x4, offset = 0x4, fixed_abs, tag = 'smem constant byte address 0x4 - core index']
  #allocation1 [shape = 'u32[144,128]{1,0:T(1,128)}', space=vmem, size = 0x12000, scoped, tag = 'internal scratch']
  %s0 = inlined_call_operand.vmem [shape: bf16[2,16,512], index: 0, kind: input, shape index: {}]
  %s1 = inlined_call_operand.vmem [shape: bf16[512,64], index: 1, kind: input, shape index: {}]
  %s2 = inlined_call_operand.vmem [shape: f32[64,32], index: 2, kind: input, shape index: {}]
  %s3 = inlined_call_operand.vmem [shape: f32[32,64], index: 3, kind: input, shape index: {}]
  %s4 = inlined_call_operand.vmem [shape: f32[1,64], index: 4, kind: input, shape index: {}]
  %s5 = inlined_call_operand.vmem [shape: f32[1,64], index: 5, kind: input, shape index: {}]
  %s6 = inlined_call_operand.vmem [shape: f32[16,64], index: 6, kind: input, shape index: {}]
  %s7 = inlined_call_operand.vmem [shape: f32[2,1,1], index: 7, kind: output, shape index: {}]
  %s8 = sld [smem:[#allocation0]]
  $region38: #{_lambda_.7} parent=0
    _
  %s10 = ssub.s32 1, %s8
  %s11 = scalar_select 0, %s10, %s8
  // Predicated region
  $region2: #{_lambda_.7} parent=0 // pred_check
    _
  $region3: #{_lambda_.7} parent=0 // pred_check_branch
    %13 = sbr.rel (0) target = $region5
  $region4: #{_lambda_.7} parent=0 // pred_region
    _
  $region5: #{_lambda_.7} parent=0 // pred_fallthru
    _
  // Predicated region
  $region6: #{_lambda_.7} parent=0 // pred_check
    _
  $region7: #{_lambda_.7} parent=0 // pred_check_branch
    %15 = sbr.rel (0) target = $region9
  $region8: #{_lambda_.7} parent=0 // pred_region
    _
  $region9: #{_lambda_.7} parent=0 // pred_fallthru
    _
  // Predicated region
  $region10: #{_lambda_.7} parent=0 // pred_check
    _
  $region11: #{_lambda_.7} parent=0 // pred_check_branch
    %17 = sbr.rel (0) target = $region13
  $region12: #{_lambda_.7} parent=0 // pred_region
    _
  $region13: #{_lambda_.7} parent=0 // pred_fallthru
    _
  // Predicated region
  $region14: #{_lambda_.7} parent=0 // pred_check
    _
  $region15: #{_lambda_.7} parent=0 // pred_check_branch
    %19 = sbr.rel (0) target = $region17
  $region16: #{_lambda_.7} parent=0 // pred_region
    _
  $region17: #{_lambda_.7} parent=0 // pred_fallthru
    _
  // Predicated region
  $region18: #{_lambda_.7} parent=0 // pred_check
    _
  $region19: #{_lambda_.7} parent=0 // pred_check_branch
    %21 = sbr.rel (0) target = $region21
  $region20: #{_lambda_.7} parent=0 // pred_region
    _
  $region21: #{_lambda_.7} parent=0 // pred_fallthru
    _
  // Predicated region
  $region22: #{_lambda_.7} parent=0 // pred_check
    _
  $region23: #{_lambda_.7} parent=0 // pred_check_branch
    %23 = sbr.rel (0) target = $region25
  $region24: #{_lambda_.7} parent=0 // pred_region
    _
  $region25: #{_lambda_.7} parent=0 // pred_fallthru
    _
  // Predicated region
  $region26: #{_lambda_.7} parent=0 // pred_check
    _
  $region27: #{_lambda_.7} parent=0 // pred_check_branch
    %25 = sbr.rel (0) target = $region29
  $region28: #{_lambda_.7} parent=0 // pred_region
    _
  $region29: #{_lambda_.7} parent=0 // pred_fallthru
    _
  %v27 = vld [vmem:[%s0] sm:$0xff]
  %v28 = vld [vmem:[%s0 + $0x8] sm:$0xff]
  %v29 = vld [vmem:[%s0 + $0x10] sm:$0xff]
  %v30 = vld [vmem:[%s0 + $0x18] sm:$0xff]
  %v31 = vld [vmem:[%s0 + $0x20] sm:$0xff]
  %v32 = vld [vmem:[%s0 + $0x28] sm:$0xff]
  %v33 = vld [vmem:[%s0 + $0x30] sm:$0xff]
  %v34 = vld [vmem:[%s0 + $0x38] sm:$0xff]
  %v35 = vld [vmem:[%s1] sm:$0xf]
  %v36 = vld [vmem:[%s1 + $0x4] sm:$0xf]
  %v37 = vld [vmem:[%s1 + $0x8] sm:$0xf]
  %v38 = vld [vmem:[%s1 + $0xc] sm:$0xf]
  %v39 = vld [vmem:[%s1 + $0x10] sm:$0xf]
  %v40 = vld [vmem:[%s1 + $0x14] sm:$0xf]
  %v41 = vld [vmem:[%s1 + $0x18] sm:$0xf]
  %v42 = vld [vmem:[%s1 + $0x1c] sm:$0xf]
  %v43 = vld [vmem:[%s1 + $0x20] sm:$0xf]
  %v44 = vld [vmem:[%s1 + $0x24] sm:$0xf]
  %v45 = vld [vmem:[%s1 + $0x28] sm:$0xf]
  %v46 = vld [vmem:[%s1 + $0x2c] sm:$0xf]
  %v47 = vld [vmem:[%s1 + $0x30] sm:$0xf]
  %v48 = vld [vmem:[%s1 + $0x34] sm:$0xf]
  %v49 = vld [vmem:[%s1 + $0x38] sm:$0xf]
  %v50 = vld [vmem:[%s1 + $0x3c] sm:$0xf]
  %v51 = vld [vmem:[%s1 + $0x40] sm:$0xf]
  %v52 = vld [vmem:[%s1 + $0x44] sm:$0xf]
  %v53 = vld [vmem:[%s1 + $0x48] sm:$0xf]
  %v54 = vld [vmem:[%s1 + $0x4c] sm:$0xf]
  %v55 = vld [vmem:[%s1 + $0x50] sm:$0xf]
  %v56 = vld [vmem:[%s1 + $0x54] sm:$0xf]
  %v57 = vld [vmem:[%s1 + $0x58] sm:$0xf]
  %v58 = vld [vmem:[%s1 + $0x5c] sm:$0xf]
  %v59 = vld [vmem:[%s1 + $0x60] sm:$0xf]
  %v60 = vld [vmem:[%s1 + $0x64] sm:$0xf]
  %v61 = vld [vmem:[%s1 + $0x68] sm:$0xf]
  %v62 = vld [vmem:[%s1 + $0x6c] sm:$0xf]
  %v63 = vld [vmem:[%s1 + $0x70] sm:$0xf]
  %v64 = vld [vmem:[%s1 + $0x74] sm:$0xf]
  %v65 = vld [vmem:[%s1 + $0x78] sm:$0xf]
  %v66 = vld [vmem:[%s1 + $0x7c] sm:$0xf]
  %v67 = vld [vmem:[%s1 + $0x80] sm:$0xf]
  %v68 = vld [vmem:[%s1 + $0x84] sm:$0xf]
  %v69 = vld [vmem:[%s1 + $0x88] sm:$0xf]
  %v70 = vld [vmem:[%s1 + $0x8c] sm:$0xf]
  %v71 = vld [vmem:[%s1 + $0x90] sm:$0xf]
  %v72 = vld [vmem:[%s1 + $0x94] sm:$0xf]
  %v73 = vld [vmem:[%s1 + $0x98] sm:$0xf]
  %v74 = vld [vmem:[%s1 + $0x9c] sm:$0xf]
  %v75 = vld [vmem:[%s1 + $0xa0] sm:$0xf]
  %v76 = vld [vmem:[%s1 + $0xa4] sm:$0xf]
  %v77 = vld [vmem:[%s1 + $0xa8] sm:$0xf]
  %v78 = vld [vmem:[%s1 + $0xac] sm:$0xf]
  %v79 = vld [vmem:[%s1 + $0xb0] sm:$0xf]
  %v80 = vld [vmem:[%s1 + $0xb4] sm:$0xf]
  %v81 = vld [vmem:[%s1 + $0xb8] sm:$0xf]
  %v82 = vld [vmem:[%s1 + $0xbc] sm:$0xf]
  %v83 = vld [vmem:[%s1 + $0xc0] sm:$0xf]
  %v84 = vld [vmem:[%s1 + $0xc4] sm:$0xf]
  %v85 = vld [vmem:[%s1 + $0xc8] sm:$0xf]
  %v86 = vld [vmem:[%s1 + $0xcc] sm:$0xf]
  %v87 = vld [vmem:[%s1 + $0xd0] sm:$0xf]
  %v88 = vld [vmem:[%s1 + $0xd4] sm:$0xf]
  %v89 = vld [vmem:[%s1 + $0xd8] sm:$0xf]
  %v90 = vld [vmem:[%s1 + $0xdc] sm:$0xf]
  %v91 = vld [vmem:[%s1 + $0xe0] sm:$0xf]
  %v92 = vld [vmem:[%s1 + $0xe4] sm:$0xf]
  %v93 = vld [vmem:[%s1 + $0xe8] sm:$0xf]
  %v94 = vld [vmem:[%s1 + $0xec] sm:$0xf]
  %v95 = vld [vmem:[%s1 + $0xf0] sm:$0xf]
  %v96 = vld [vmem:[%s1 + $0xf4] sm:$0xf]
  %v97 = vld [vmem:[%s1 + $0xf8] sm:$0xf]
  %v98 = vld [vmem:[%s1 + $0xfc] sm:$0xf]
  %v107 = vunpack.c.l.b16 %v27
  %v108 = vunpack.c.h.b16 %v27
  %v109 = vunpack.c.l.b16 %v28
  %v110 = vunpack.c.h.b16 %v28
  %v111 = vunpack.c.l.b16 %v29
  %v112 = vunpack.c.h.b16 %v29
  %v113 = vunpack.c.l.b16 %v30
  %v114 = vunpack.c.h.b16 %v30
  %v115 = vunpack.c.l.b16 %v31
  %v116 = vunpack.c.h.b16 %v31
  %v117 = vunpack.c.l.b16 %v32
  %v118 = vunpack.c.h.b16 %v32
  %v119 = vunpack.c.l.b16 %v33
  %v120 = vunpack.c.h.b16 %v33
  %v121 = vunpack.c.l.b16 %v34
  %v122 = vunpack.c.h.b16 %v34
  %v123 = vpack.c.b16 %v111, %v107
  %v124 = vpack.c.b16 %v112, %v108
  %v125 = vpack.c.b16 %v113, %v109
  %v126 = vpack.c.b16 %v114, %v110
  %v127 = vpack.c.b16 %v119, %v115
  %v128 = vpack.c.b16 %v120, %v116
  %v129 = vpack.c.b16 %v121, %v117
  %v130 = vpack.c.b16 %v122, %v118
  %v203 = vunpack.c.l.b16 %v35
  %v204 = vunpack.c.l.b16 %v36
  %v205 = vunpack.c.l.b16 %v37
  %v206 = vunpack.c.l.b16 %v38
  %v207 = vunpack.c.l.b16 %v39
  %v208 = vunpack.c.l.b16 %v40
  %v209 = vunpack.c.l.b16 %v41
  %v210 = vunpack.c.l.b16 %v42
  %v211 = vunpack.c.l.b16 %v43
  %v212 = vunpack.c.l.b16 %v44
  %v213 = vunpack.c.l.b16 %v45
  %v214 = vunpack.c.l.b16 %v46
  %v215 = vunpack.c.l.b16 %v47
  %v216 = vunpack.c.l.b16 %v48
  %v217 = vunpack.c.l.b16 %v49
  %v218 = vunpack.c.l.b16 %v50
  %v219 = vunpack.c.l.b16 %v51
  %v220 = vunpack.c.l.b16 %v52
  %v221 = vunpack.c.l.b16 %v53
  %v222 = vunpack.c.l.b16 %v54
  %v223 = vunpack.c.l.b16 %v55
  %v224 = vunpack.c.l.b16 %v56
  %v225 = vunpack.c.l.b16 %v57
  %v226 = vunpack.c.l.b16 %v58
  %v227 = vunpack.c.l.b16 %v59
  %v228 = vunpack.c.l.b16 %v60
  %v229 = vunpack.c.l.b16 %v61
  %v230 = vunpack.c.l.b16 %v62
  %v231 = vunpack.c.l.b16 %v63
  %v232 = vunpack.c.l.b16 %v64
  %v233 = vunpack.c.l.b16 %v65
  %v234 = vunpack.c.l.b16 %v66
  %v235 = vunpack.c.l.b16 %v67
  %v236 = vunpack.c.l.b16 %v68
  %v237 = vunpack.c.l.b16 %v69
  %v238 = vunpack.c.l.b16 %v70
  %v239 = vunpack.c.l.b16 %v71
  %v240 = vunpack.c.l.b16 %v72
  %v241 = vunpack.c.l.b16 %v73
  %v242 = vunpack.c.l.b16 %v74
  %v243 = vunpack.c.l.b16 %v75
  %v244 = vunpack.c.l.b16 %v76
  %v245 = vunpack.c.l.b16 %v77
  %v246 = vunpack.c.l.b16 %v78
  %v247 = vunpack.c.l.b16 %v79
  %v248 = vunpack.c.l.b16 %v80
  %v249 = vunpack.c.l.b16 %v81
  %v250 = vunpack.c.l.b16 %v82
  %v251 = vunpack.c.l.b16 %v83
  %v252 = vunpack.c.l.b16 %v84
  %v253 = vunpack.c.l.b16 %v85
  %v254 = vunpack.c.l.b16 %v86
  %v255 = vunpack.c.l.b16 %v87
  %v256 = vunpack.c.l.b16 %v88
  %v257 = vunpack.c.l.b16 %v89
  %v258 = vunpack.c.l.b16 %v90
  %v259 = vunpack.c.l.b16 %v91
  %v260 = vunpack.c.l.b16 %v92
  %v261 = vunpack.c.l.b16 %v93
  %v262 = vunpack.c.l.b16 %v94
  %v263 = vunpack.c.l.b16 %v95
  %v264 = vunpack.c.l.b16 %v96
  %v265 = vunpack.c.l.b16 %v97
  %v266 = vunpack.c.l.b16 %v98
  %v267 = vpack.c.b16 %v204, %v203
  %v268 = vpack.c.b16 %v206, %v205
  %v269 = vpack.c.b16 %v208, %v207
  %v270 = vpack.c.b16 %v210, %v209
  %v271 = vpack.c.b16 %v212, %v211
  %v272 = vpack.c.b16 %v214, %v213
  %v273 = vpack.c.b16 %v216, %v215
  %v274 = vpack.c.b16 %v218, %v217
  %v275 = vpack.c.b16 %v220, %v219
  %v276 = vpack.c.b16 %v222, %v221
  %v277 = vpack.c.b16 %v224, %v223
  %v278 = vpack.c.b16 %v226, %v225
  %v279 = vpack.c.b16 %v228, %v227
  %v280 = vpack.c.b16 %v230, %v229
  %v281 = vpack.c.b16 %v232, %v231
  %v282 = vpack.c.b16 %v234, %v233
  %v283 = vpack.c.b16 %v236, %v235
  %v284 = vpack.c.b16 %v238, %v237
  %v285 = vpack.c.b16 %v240, %v239
  %v286 = vpack.c.b16 %v242, %v241
  %v287 = vpack.c.b16 %v244, %v243
  %v288 = vpack.c.b16 %v246, %v245
  %v289 = vpack.c.b16 %v248, %v247
  %v290 = vpack.c.b16 %v250, %v249
  %v291 = vpack.c.b16 %v252, %v251
  %v292 = vpack.c.b16 %v254, %v253
  %v293 = vpack.c.b16 %v256, %v255
  %v294 = vpack.c.b16 %v258, %v257
  %v295 = vpack.c.b16 %v260, %v259
  %v296 = vpack.c.b16 %v262, %v261
  %v297 = vpack.c.b16 %v264, %v263
  %v298 = vpack.c.b16 %v266, %v265
  %331 = vmatprep.subr.bf16.mxu0 0
  %332 = vmatpush1.bf16.msra.mxu0 %v267
  %333 = vmatprep.subr.bf16.mxu0 0
  %334 = vmatpush1.bf16.msra.mxu0 %v268
  %335 = vmatprep.subr.bf16.mxu0 0
  %336 = vmatpush1.bf16.msra.mxu0 %v269
  %337 = vmatprep.subr.bf16.mxu0 0
  %338 = vmatpush1.bf16.msra.mxu0 %v270
  %339 = vmatprep.subr.bf16.mxu0 0
  %340 = vmatpush1.bf16.msra.mxu0 %v271
  %341 = vmatprep.subr.bf16.mxu0 0
  %342 = vmatpush1.bf16.msra.mxu0 %v272
  %343 = vmatprep.subr.bf16.mxu0 0
  %344 = vmatpush1.bf16.msra.mxu0 %v273
  %345 = vmatprep.subr.bf16.mxu0 0
  %346 = vmatpush1.bf16.msra.mxu0 %v274
  %347 = vmatprep.subr.bf16.mxu0 0
  %348 = vmatpush1.bf16.msra.mxu0 %v275
  %349 = vmatprep.subr.bf16.mxu0 0
  %350 = vmatpush1.bf16.msra.mxu0 %v276
  %351 = vmatprep.subr.bf16.mxu0 0
  %352 = vmatpush1.bf16.msra.mxu0 %v277
  %353 = vmatprep.subr.bf16.mxu0 0
  %354 = vmatpush1.bf16.msra.mxu0 %v278
  %355 = vmatprep.subr.bf16.mxu0 0
  %356 = vmatpush1.bf16.msra.mxu0 %v279
  %357 = vmatprep.subr.bf16.mxu0 0
  %358 = vmatpush1.bf16.msra.mxu0 %v280
  %359 = vmatprep.subr.bf16.mxu0 0
  %360 = vmatpush1.bf16.msra.mxu0 %v281
  %361 = vmatprep.subr.bf16.mxu0 0
  %362 = vmatpush1.bf16.msra.mxu0 %v282
  %363 = vmatprep.mubr.bf16.mxu0 %v124
  %364 = vmatmul.mubr.bf16.gmra.mrb[0].mxu0 %v123
  %v365 = vpop.f32.mrb[0].mxu0
  %v366 = vadd.f32 0.0, %v365
  %v367 = vpop.f32.mrb[0].mxu0
  %v368 = vpop.f32.mrb[0].mxu0
  %v369 = vadd.f32 0.0, %v368
  %v370 = vpop.f32.mrb[0].mxu0
  %371 = vmatprep.mubr.bf16.mxu0 %v128
  %372 = vmatmul.mubr.bf16.gmra.mrb[0].mxu0 %v127
  %v373 = vpop.f32.mrb[0].mxu0
  %v374 = vadd.f32 0.0, %v373
  %v375 = vpop.f32.mrb[0].mxu0
  %v376 = vpop.f32.mrb[0].mxu0
  %v377 = vadd.f32 0.0, %v376
  %v378 = vpop.f32.mrb[0].mxu0
  %379 = vdwg.mxu0
  %380 = vmatprep.subr.bf16.mxu0 0
  %381 = vmatpush1.bf16.msra.mxu0 %v283
  %382 = vmatprep.subr.bf16.mxu0 0
  %383 = vmatpush1.bf16.msra.mxu0 %v284
  %384 = vmatprep.subr.bf16.mxu0 0
  %385 = vmatpush1.bf16.msra.mxu0 %v285
  %386 = vmatprep.subr.bf16.mxu0 0
  %387 = vmatpush1.bf16.msra.mxu0 %v286
  %388 = vmatprep.subr.bf16.mxu0 0
  %389 = vmatpush1.bf16.msra.mxu0 %v287
  %390 = vmatprep.subr.bf16.mxu0 0
  %391 = vmatpush1.bf16.msra.mxu0 %v288
  %392 = vmatprep.subr.bf16.mxu0 0
  %393 = vmatpush1.bf16.msra.mxu0 %v289
  %394 = vmatprep.subr.bf16.mxu0 0
  %395 = vmatpush1.bf16.msra.mxu0 %v290
  %396 = vmatprep.subr.bf16.mxu0 0
  %397 = vmatpush1.bf16.msra.mxu0 %v291
  %398 = vmatprep.subr.bf16.mxu0 0
  %399 = vmatpush1.bf16.msra.mxu0 %v292
  %400 = vmatprep.subr.bf16.mxu0 0
  %401 = vmatpush1.bf16.msra.mxu0 %v293
  %402 = vmatprep.subr.bf16.mxu0 0
  %403 = vmatpush1.bf16.msra.mxu0 %v294
  %404 = vmatprep.subr.bf16.mxu0 0
  %405 = vmatpush1.bf16.msra.mxu0 %v295
  %406 = vmatprep.subr.bf16.mxu0 0
  %407 = vmatpush1.bf16.msra.mxu0 %v296
  %408 = vmatprep.subr.bf16.mxu0 0
  %409 = vmatpush1.bf16.msra.mxu0 %v297
  %410 = vmatprep.subr.bf16.mxu0 0
  %411 = vmatpush1.bf16.msra.mxu0 %v298
  %412 = vmatprep.mubr.bf16.mxu0 %v126
  %413 = vmatmul.mubr.bf16.gmra.mrb[0].mxu0 %v125
  %v414 = vpop.f32.mrb[0].mxu0
  %v415 = vadd.f32 %v366, %v414
  %v416 = vpop.f32.mrb[0].mxu0
  %v417 = vpop.f32.mrb[0].mxu0
  %v418 = vadd.f32 %v369, %v417
  %v419 = vpop.f32.mrb[0].mxu0
  %420 = vmatprep.mubr.bf16.mxu0 %v130
  %421 = vmatmul.mubr.bf16.gmra.mrb[0].mxu0 %v129
  %v422 = vpop.f32.mrb[0].mxu0
  %v423 = vadd.f32 %v374, %v422
  %v424 = vpop.f32.mrb[0].mxu0
  %v425 = vpop.f32.mrb[0].mxu0
  %v426 = vadd.f32 %v377, %v425
  %v427 = vpop.f32.mrb[0].mxu0
  %428 = vdwg.mxu0
  %v429 = vld [vmem:[%s4] sm:$0x1]
  %v430 = vld [vmem:[%s5] sm:$0x1]
  %vm431 = vcmask 523264
  %v432 = vsel %vm431, %v415, 0.0
  %v433 = vsel %vm431, %v418, 0.0
  %v434 = vadd.f32 %v432, %v433
  %v435 = vrot.slane %v434, 4
  %v436 = vadd.f32 %v434, %v435
  %v437 = vrot.slane %v436, 2
  %v438 = vadd.f32 %v436, %v437
  %v439 = vrot.slane %v438, 1
  %v440 = vadd.f32 %v438, %v439
  %v441 = vsel %vm431, %v423, 0.0
  %v442 = vsel %vm431, %v426, 0.0
  %v443 = vadd.f32 %v441, %v442
  %v444 = vrot.slane %v443, 4
  %v445 = vadd.f32 %v443, %v444
  %v446 = vrot.slane %v445, 2
  %v447 = vadd.f32 %v445, %v446
  %v448 = vrot.slane %v447, 1
  %v449 = vadd.f32 %v447, %v448
  %v450 = vld [vmem:[%s2] sm:$0xff]
  %v451 = vld [vmem:[%s2 + $0x8] sm:$0xff]
  %v452 = vld [vmem:[%s2 + $0x10] sm:$0xff]
  %v453 = vld [vmem:[%s2 + $0x18] sm:$0xff]
  %v454 = vld [vmem:[%s2 + $0x20] sm:$0xff]
  %v455 = vld [vmem:[%s2 + $0x28] sm:$0xff]
  %v456 = vld [vmem:[%s2 + $0x30] sm:$0xff]
  %v457 = vld [vmem:[%s2 + $0x38] sm:$0xff]
  %vm460 = vcmask 1041409
  %v461 = vsel %vm460, %v449, %v440
  %v462 = vsel %vm431, %v461, 0
  %464 = vmatprep.subr.mxu0 0.0
  %465 = vmatpush1.msra.mxu0 %v450
  %466 = vmatprep.subr.mxu0 0.0
  %467 = vmatpush1.msra.mxu0 %v451
  %468 = vmatprep.subr.mxu0 0.0
  %469 = vmatpush1.msra.mxu0 %v452
  %470 = vmatprep.subr.mxu0 0.0
  %471 = vmatpush1.msra.mxu0 %v453
  %472 = vmatprep.subr.mxu0 0.0
  %473 = vmatpush1.msra.mxu0 %v454
  %474 = vmatprep.subr.mxu0 0.0
  %475 = vmatpush1.msra.mxu0 %v455
  %476 = vmatprep.subr.mxu0 0.0
  %477 = vmatpush1.msra.mxu0 %v456
  %478 = vmatprep.subr.mxu0 0.0
  %479 = vmatpush1.msra.mxu0 %v457
  %480 = vmatprep.subr.mxu0 0.0
  %481 = vmatpush1.msra.mxu0 0.0
  %482 = vmatprep.subr.mxu0 0.0
  %483 = vmatpush1.msra.mxu0 0.0
  %484 = vmatprep.subr.mxu0 0.0
  %485 = vmatpush1.msra.mxu0 0.0
  %486 = vmatprep.subr.mxu0 0.0
  %487 = vmatpush1.msra.mxu0 0.0
  %488 = vmatprep.subr.mxu0 0.0
  %489 = vmatpush1.msra.mxu0 0.0
  %490 = vmatprep.subr.mxu0 0.0
  %491 = vmatpush1.msra.mxu0 0.0
  %492 = vmatprep.subr.mxu0 0.0
  %493 = vmatpush1.msra.mxu0 0.0
  %494 = vmatprep.subr.mxu0 0.0
  %495 = vmatpush1.msra.mxu0 0.0
  %496 = vmatprep.subr.mxu0 0.0
  %497 = vmatpush1.msra.mxu0 0.0
  %498 = vmatprep.subr.mxu0 0.0
  %499 = vmatpush1.msra.mxu0 0.0
  %500 = vmatprep.subr.mxu0 0.0
  %501 = vmatpush1.msra.mxu0 0.0
  %502 = vmatprep.subr.mxu0 0.0
  %503 = vmatpush1.msra.mxu0 0.0
  %504 = vmatprep.subr.mxu0 0.0
  %505 = vmatpush1.msra.mxu0 0.0
  %506 = vmatprep.subr.mxu0 0.0
  %507 = vmatpush1.msra.mxu0 0.0
  %508 = vmatprep.subr.mxu0 0.0
  %509 = vmatpush1.msra.mxu0 0.0
  %510 = vmatprep.subr.mxu0 0.0
  %511 = vmatpush1.msra.mxu0 0.0
  %512 = vmatprep.subr.mxu0 0.0
  %513 = vmatpush1.msra.mxu0 0.0
  %514 = vmatprep.subr.mxu0 0.0
  %515 = vmatpush1.msra.mxu0 0.0
  %516 = vmatprep.subr.mxu0 0.0
  %517 = vmatpush1.msra.mxu0 0.0
  %518 = vmatprep.subr.mxu0 0.0
  %519 = vmatpush1.msra.mxu0 0.0
  %520 = vmatprep.subr.mxu0 0.0
  %521 = vmatpush1.msra.mxu0 0.0
  %522 = vmatprep.subr.mxu0 0.0
  %523 = vmatpush1.msra.mxu0 0.0
  %524 = vmatprep.subr.mxu0 0.0
  %525 = vmatpush1.msra.mxu0 0.0
  %526 = vmatprep.subr.mxu0 0.0
  %527 = vmatpush1.msra.mxu0 0.0
  %528 = vmatprep.mubr.f32.mxu0 0.0
  %529 = vmatmul.mubr.f32.gmra.mrb[0].mxu0 %v462
  %v530 = vpop.f32.mrb[0].mxu0
  %v531 = vadd.f32 0.0, %v530
  %v532 = vpop.f32.mrb[0].mxu0
  %533 = vdwg.mxu0
  %v534 = vld [vmem:[%s3] sm:$0xff]
  %v535 = vld [vmem:[%s3 + $0x8] sm:$0xff]
  %v536 = vld [vmem:[%s3 + $0x10] sm:$0xff]
  %v537 = vld [vmem:[%s3 + $0x18] sm:$0xff]
  %vm538 = vcmask 261120
  %v540 = vsel %vm538, %v531, 0
  %542 = vmatprep.subr.mxu0 0.0
  %543 = vmatpush1.msra.mxu0 %v534
  %544 = vmatprep.subr.mxu0 0.0
  %545 = vmatpush1.msra.mxu0 %v535
  %546 = vmatprep.subr.mxu0 0.0
  %547 = vmatpush1.msra.mxu0 %v536
  %548 = vmatprep.subr.mxu0 0.0
  %549 = vmatpush1.msra.mxu0 %v537
  %550 = vmatprep.subr.mxu0 0.0
  %551 = vmatpush1.msra.mxu0 0.0
  %552 = vmatprep.subr.mxu0 0.0
  %553 = vmatpush1.msra.mxu0 0.0
  %554 = vmatprep.subr.mxu0 0.0
  %555 = vmatpush1.msra.mxu0 0.0
  %556 = vmatprep.subr.mxu0 0.0
  %557 = vmatpush1.msra.mxu0 0.0
  %558 = vmatprep.subr.mxu0 0.0
  %559 = vmatpush1.msra.mxu0 0.0
  %560 = vmatprep.subr.mxu0 0.0
  %561 = vmatpush1.msra.mxu0 0.0
  %562 = vmatprep.subr.mxu0 0.0
  %563 = vmatpush1.msra.mxu0 0.0
  %564 = vmatprep.subr.mxu0 0.0
  %565 = vmatpush1.msra.mxu0 0.0
  %566 = vmatprep.subr.mxu0 0.0
  %567 = vmatpush1.msra.mxu0 0.0
  %568 = vmatprep.subr.mxu0 0.0
  %569 = vmatpush1.msra.mxu0 0.0
  %570 = vmatprep.subr.mxu0 0.0
  %571 = vmatpush1.msra.mxu0 0.0
  %572 = vmatprep.subr.mxu0 0.0
  %573 = vmatpush1.msra.mxu0 0.0
  %574 = vmatprep.subr.mxu0 0.0
  %575 = vmatpush1.msra.mxu0 0.0
  %576 = vmatprep.subr.mxu0 0.0
  %577 = vmatpush1.msra.mxu0 0.0
  %578 = vmatprep.subr.mxu0 0.0
  %579 = vmatpush1.msra.mxu0 0.0
  %580 = vmatprep.subr.mxu0 0.0
  %581 = vmatpush1.msra.mxu0 0.0
  %582 = vmatprep.subr.mxu0 0.0
  %583 = vmatpush1.msra.mxu0 0.0
  %584 = vmatprep.subr.mxu0 0.0
  %585 = vmatpush1.msra.mxu0 0.0
  %586 = vmatprep.subr.mxu0 0.0
  %587 = vmatpush1.msra.mxu0 0.0
  %588 = vmatprep.subr.mxu0 0.0
  %589 = vmatpush1.msra.mxu0 0.0
  %590 = vmatprep.subr.mxu0 0.0
  %591 = vmatpush1.msra.mxu0 0.0
  %592 = vmatprep.subr.mxu0 0.0
  %593 = vmatpush1.msra.mxu0 0.0
  %594 = vmatprep.subr.mxu0 0.0
  %595 = vmatpush1.msra.mxu0 0.0
  %596 = vmatprep.subr.mxu0 0.0
  %597 = vmatpush1.msra.mxu0 0.0
  %598 = vmatprep.subr.mxu0 0.0
  %599 = vmatpush1.msra.mxu0 0.0
  %600 = vmatprep.subr.mxu0 0.0
  %601 = vmatpush1.msra.mxu0 0.0
  %602 = vmatprep.subr.mxu0 0.0
  %603 = vmatpush1.msra.mxu0 0.0
  %604 = vmatprep.subr.mxu0 0.0
  %605 = vmatpush1.msra.mxu0 0.0
  %606 = vmatprep.mubr.f32.mxu0 0.0
  %607 = vmatmul.mubr.f32.gmra.mrb[0].mxu0 %v540
  %v608 = vpop.f32.mrb[0].mxu0
  %v609 = vadd.f32 0.0, %v608
  %v610 = vpop.f32.mrb[0].mxu0
  %611 = vdwg.mxu0
  %v614 = vunpack.c.l.s4 1966171168
  %v615 = vunpack.c.0.s8 %v614
  %v616 = vlaneseq
  %v617 = vshrl.u32 %v616, 7
  %v618 = vsub.s32 %v615, %v617
  %v619 = vrot.slane %v609, %v618
  %v620 = vcombine.high %v619, %v619
  %v622 = vunpack.c.l.s4 1966171168
  %v623 = vunpack.c.0.s8 %v622
  %v624 = vlaneseq
  %v625 = vshrl.u32 %v624, 7
  %v626 = vsub.s32 %v623, %v625
  %v627 = vrot.slane %v619, %v626
  %v629 = vunpack.c.l.s4 1966171168
  %v630 = vunpack.c.0.s8 %v629
  %v631 = vlaneseq
  %v632 = vshrl.u32 %v631, 7
  %v633 = vsub.s32 %v630, %v632
  %v634 = vrot.slane %v620, %v633
  %v635 = vlaneseq
  %v636 = vshrl.u32 %v635, 7
  %v637 = vsub.s32 0, %v636
  %v638 = vrot.slane %v627, %v637
  %v639 = vlaneseq
  %v640 = vshrl.u32 %v639, 7
  %v641 = vsub.s32 0, %v640
  %v642 = vrot.slane %v634, %v641
  %v645 = vsub.f32 %v415, %v638
  %v646 = vsub.f32 %v418, %v638
  %v647 = vsub.f32 %v423, %v642
  %v648 = vsub.f32 %v426, %v642
  %v649 = vmul.f32 %v645, %v645
  %v650 = vmul.f32 %v646, %v646
  %v651 = vmul.f32 %v647, %v647
  %v652 = vmul.f32 %v648, %v648
  %v653 = vsel %vm431, %v649, 0.0
  %v654 = vsel %vm431, %v650, 0.0
  %v655 = vadd.f32 %v653, %v654
  %v656 = vrot.slane %v655, 4
  %v657 = vadd.f32 %v655, %v656
  %v658 = vrot.slane %v657, 2
  %v659 = vadd.f32 %v657, %v658
  %v660 = vrot.slane %v659, 1
  %v661 = vadd.f32 %v659, %v660
  %v662 = vsel %vm431, %v651, 0.0
  %v663 = vsel %vm431, %v652, 0.0
  %v664 = vadd.f32 %v662, %v663
  %v665 = vrot.slane %v664, 4
  %v666 = vadd.f32 %v664, %v665
  %v667 = vrot.slane %v666, 2
  %v668 = vadd.f32 %v666, %v667
  %v669 = vrot.slane %v668, 1
  %v670 = vadd.f32 %v668, %v669
  %v673 = vsel %vm460, %v670, %v661
  %v674 = vsel %vm431, %v673, 0
  %676 = vmatprep.subr.mxu0 0.0
  %677 = vmatpush1.msra.mxu0 %v450
  %678 = vmatprep.subr.mxu0 0.0
  %679 = vmatpush1.msra.mxu0 %v451
  %680 = vmatprep.subr.mxu0 0.0
  %681 = vmatpush1.msra.mxu0 %v452
  %682 = vmatprep.subr.mxu0 0.0
  %683 = vmatpush1.msra.mxu0 %v453
  %684 = vmatprep.subr.mxu0 0.0
  %685 = vmatpush1.msra.mxu0 %v454
  %686 = vmatprep.subr.mxu0 0.0
  %687 = vmatpush1.msra.mxu0 %v455
  %688 = vmatprep.subr.mxu0 0.0
  %689 = vmatpush1.msra.mxu0 %v456
  %690 = vmatprep.subr.mxu0 0.0
  %691 = vmatpush1.msra.mxu0 %v457
  %692 = vmatprep.subr.mxu0 0.0
  %693 = vmatpush1.msra.mxu0 0.0
  %694 = vmatprep.subr.mxu0 0.0
  %695 = vmatpush1.msra.mxu0 0.0
  %696 = vmatprep.subr.mxu0 0.0
  %697 = vmatpush1.msra.mxu0 0.0
  %698 = vmatprep.subr.mxu0 0.0
  %699 = vmatpush1.msra.mxu0 0.0
  %700 = vmatprep.subr.mxu0 0.0
  %701 = vmatpush1.msra.mxu0 0.0
  %702 = vmatprep.subr.mxu0 0.0
  %703 = vmatpush1.msra.mxu0 0.0
  %704 = vmatprep.subr.mxu0 0.0
  %705 = vmatpush1.msra.mxu0 0.0
  %706 = vmatprep.subr.mxu0 0.0
  %707 = vmatpush1.msra.mxu0 0.0
  %708 = vmatprep.subr.mxu0 0.0
  %709 = vmatpush1.msra.mxu0 0.0
  %710 = vmatprep.subr.mxu0 0.0
  %711 = vmatpush1.msra.mxu0 0.0
  %712 = vmatprep.subr.mxu0 0.0
  %713 = vmatpush1.msra.mxu0 0.0
  %714 = vmatprep.subr.mxu0 0.0
  %715 = vmatpush1.msra.mxu0 0.0
  %716 = vmatprep.subr.mxu0 0.0
  %717 = vmatpush1.msra.mxu0 0.0
  %718 = vmatprep.subr.mxu0 0.0
  %719 = vmatpush1.msra.mxu0 0.0
  %720 = vmatprep.subr.mxu0 0.0
  %721 = vmatpush1.msra.mxu0 0.0
  %722 = vmatprep.subr.mxu0 0.0
  %723 = vmatpush1.msra.mxu0 0.0
  %724 = vmatprep.subr.mxu0 0.0
  %725 = vmatpush1.msra.mxu0 0.0
  %726 = vmatprep.subr.mxu0 0.0
  %727 = vmatpush1.msra.mxu0 0.0
  %728 = vmatprep.subr.mxu0 0.0
  %729 = vmatpush1.msra.mxu0 0.0
  %730 = vmatprep.subr.mxu0 0.0
  %731 = vmatpush1.msra.mxu0 0.0
  %732 = vmatprep.subr.mxu0 0.0
  %733 = vmatpush1.msra.mxu0 0.0
  %734 = vmatprep.subr.mxu0 0.0
  %735 = vmatpush1.msra.mxu0 0.0
  %736 = vmatprep.subr.mxu0 0.0
  %737 = vmatpush1.msra.mxu0 0.0
  %738 = vmatprep.subr.mxu0 0.0
  %739 = vmatpush1.msra.mxu0 0.0
  %740 = vmatprep.mubr.f32.mxu0 0.0
  %741 = vmatmul.mubr.f32.gmra.mrb[0].mxu0 %v674
  %v742 = vpop.f32.mrb[0].mxu0
  %v743 = vadd.f32 0.0, %v742
  %v744 = vpop.f32.mrb[0].mxu0
  %745 = vdwg.mxu0
  %v747 = vsel %vm538, %v743, 0
  %749 = vmatprep.subr.mxu0 0.0
  %750 = vmatpush1.msra.mxu0 %v534
  %751 = vmatprep.subr.mxu0 0.0
  %752 = vmatpush1.msra.mxu0 %v535
  %753 = vmatprep.subr.mxu0 0.0
  %754 = vmatpush1.msra.mxu0 %v536
  %755 = vmatprep.subr.mxu0 0.0
  %756 = vmatpush1.msra.mxu0 %v537
  %757 = vmatprep.subr.mxu0 0.0
  %758 = vmatpush1.msra.mxu0 0.0
  %759 = vmatprep.subr.mxu0 0.0
  %760 = vmatpush1.msra.mxu0 0.0
  %761 = vmatprep.subr.mxu0 0.0
  %762 = vmatpush1.msra.mxu0 0.0
  %763 = vmatprep.subr.mxu0 0.0
  %764 = vmatpush1.msra.mxu0 0.0
  %765 = vmatprep.subr.mxu0 0.0
  %766 = vmatpush1.msra.mxu0 0.0
  %767 = vmatprep.subr.mxu0 0.0
  %768 = vmatpush1.msra.mxu0 0.0
  %769 = vmatprep.subr.mxu0 0.0
  %770 = vmatpush1.msra.mxu0 0.0
  %771 = vmatprep.subr.mxu0 0.0
  %772 = vmatpush1.msra.mxu0 0.0
  %773 = vmatprep.subr.mxu0 0.0
  %774 = vmatpush1.msra.mxu0 0.0
  %775 = vmatprep.subr.mxu0 0.0
  %776 = vmatpush1.msra.mxu0 0.0
  %777 = vmatprep.subr.mxu0 0.0
  %778 = vmatpush1.msra.mxu0 0.0
  %779 = vmatprep.subr.mxu0 0.0
  %780 = vmatpush1.msra.mxu0 0.0
  %781 = vmatprep.subr.mxu0 0.0
  %782 = vmatpush1.msra.mxu0 0.0
  %783 = vmatprep.subr.mxu0 0.0
  %784 = vmatpush1.msra.mxu0 0.0
  %785 = vmatprep.subr.mxu0 0.0
  %786 = vmatpush1.msra.mxu0 0.0
  %787 = vmatprep.subr.mxu0 0.0
  %788 = vmatpush1.msra.mxu0 0.0
  %789 = vmatprep.subr.mxu0 0.0
  %790 = vmatpush1.msra.mxu0 0.0
  %791 = vmatprep.subr.mxu0 0.0
  %792 = vmatpush1.msra.mxu0 0.0
  %793 = vmatprep.subr.mxu0 0.0
  %794 = vmatpush1.msra.mxu0 0.0
  %795 = vmatprep.subr.mxu0 0.0
  %796 = vmatpush1.msra.mxu0 0.0
  %797 = vmatprep.subr.mxu0 0.0
  %798 = vmatpush1.msra.mxu0 0.0
  %799 = vmatprep.subr.mxu0 0.0
  %800 = vmatpush1.msra.mxu0 0.0
  %801 = vmatprep.subr.mxu0 0.0
  %802 = vmatpush1.msra.mxu0 0.0
  %803 = vmatprep.subr.mxu0 0.0
  %804 = vmatpush1.msra.mxu0 0.0
  %805 = vmatprep.subr.mxu0 0.0
  %806 = vmatpush1.msra.mxu0 0.0
  %807 = vmatprep.subr.mxu0 0.0
  %808 = vmatpush1.msra.mxu0 0.0
  %809 = vmatprep.subr.mxu0 0.0
  %810 = vmatpush1.msra.mxu0 0.0
  %811 = vmatprep.subr.mxu0 0.0
  %812 = vmatpush1.msra.mxu0 0.0
  %813 = vmatprep.mubr.f32.mxu0 0.0
  %814 = vmatmul.mubr.f32.gmra.mrb[0].mxu0 %v747
  %v815 = vpop.f32.mrb[0].mxu0
  %v816 = vadd.f32 1e-05, %v815
  %v817 = vpop.f32.mrb[0].mxu0
  %818 = vdwg.mxu0
  %v819 = vrsqrt.pop %v816
  %v822 = vunpack.c.l.s4 1966171168
  %v823 = vunpack.c.0.s8 %v822
  %v824 = vlaneseq
  %v825 = vshrl.u32 %v824, 7
  %v826 = vsub.s32 %v823, %v825
  %v827 = vrot.slane %v819, %v826
  %v828 = vcombine.high %v827, %v827
  %v830 = vunpack.c.l.s4 1966171168
  %v831 = vunpack.c.0.s8 %v830
  %v832 = vlaneseq
  %v833 = vshrl.u32 %v832, 7
  %v834 = vsub.s32 %v831, %v833
  %v835 = vrot.slane %v827, %v834
  %v837 = vunpack.c.l.s4 1966171168
  %v838 = vunpack.c.0.s8 %v837
  %v839 = vlaneseq
  %v840 = vshrl.u32 %v839, 7
  %v841 = vsub.s32 %v838, %v840
  %v842 = vrot.slane %v828, %v841
  %v843 = vlaneseq
  %v844 = vshrl.u32 %v843, 7
  %v845 = vsub.s32 0, %v844
  %v846 = vrot.slane %v835, %v845
  %v847 = vlaneseq
  %v848 = vshrl.u32 %v847, 7
  %v849 = vsub.s32 0, %v848
  %v850 = vrot.slane %v842, %v849
  %v853 = vmul.f32 %v645, %v846
  %v854 = vmul.f32 %v646, %v846
  %v855 = vmul.f32 %v647, %v850
  %v856 = vmul.f32 %v648, %v850
  %v858 = vlaneseq
  %v859 = vshrl.u32 %v858, 7
  %v860 = vsub.s32 0, %v859
  %v861 = vrot.slane %v429, %v860
  %v863 = vmul.f32 %v853, %v861
  %v864 = vmul.f32 %v854, %v861
  %v865 = vmul.f32 %v855, %v861
  %v866 = vmul.f32 %v856, %v861
  %v868 = vlaneseq
  %v869 = vshrl.u32 %v868, 7
  %v870 = vsub.s32 0, %v869
  %v871 = vrot.slane %v430, %v870
  %v873 = vadd.f32 %v863, %v871
  %v874 = vadd.f32 %v864, %v871
  %v875 = vadd.f32 %v865, %v871
  %v876 = vadd.f32 %v866, %v871
  %vm877 = vcmp.gt.f32.partialorder %v873, 0.0
  %vm878 = vcmp.gt.f32.partialorder %v874, 0.0
  %vm879 = vcmp.gt.f32.partialorder %v875, 0.0
  %vm880 = vcmp.gt.f32.partialorder %v876, 0.0
  %v881 = vmul.f32 %v873, 0.2
  %v882 = vmul.f32 %v874, 0.2
  %v883 = vmul.f32 %v875, 0.2
  %v884 = vmul.f32 %v876, 0.2
  %v885 = vsel %vm877, %v873, %v881
  %v886 = vsel %vm878, %v874, %v882
  %v887 = vsel %vm879, %v875, %v883
  %v888 = vsel %vm880, %v876, %v884
  %v889 = vld [vmem:[%s6] sm:$0xff]
  %v890 = vld [vmem:[%s6 + $0x8] sm:$0xff]
  %v891 = vmul.f32 %v885, %v889
  %v892 = vmul.f32 %v886, %v890
  %v893 = vmul.f32 %v887, %v889
  %v894 = vmul.f32 %v888, %v890
  %v895 = vsel %vm431, %v891, 0.0
  %896 = vadd.xlane.f32.xlu0 %v895
  %v897 = vpop.xlane.xlu0 %896
  %v898 = vsel %vm431, %v892, 0.0
  %899 = vadd.xlane.f32.xlu0 %v898
  %v900 = vpop.xlane.xlu0 %899
  %v901 = vsel %vm431, %v893, 0.0
  %902 = vadd.xlane.f32.xlu0 %v901
  %v903 = vpop.xlane.xlu0 %902
  %v904 = vsel %vm431, %v894, 0.0
  %905 = vadd.xlane.f32.xlu0 %v904
  %v906 = vpop.xlane.xlu0 %905
  %v907 = vadd.f32 %v897, %v900
  %v908 = vrot.slane %v907, 4
  %v909 = vadd.f32 %v907, %v908
  %v910 = vrot.slane %v909, 2
  %v911 = vadd.f32 %v909, %v910
  %v912 = vrot.slane %v911, 1
  %v913 = vadd.f32 %v911, %v912
  %v914 = vadd.f32 %v903, %v906
  %v915 = vrot.slane %v914, 4
  %v916 = vadd.f32 %v914, %v915
  %v917 = vrot.slane %v916, 2
  %v918 = vadd.f32 %v916, %v917
  %v919 = vrot.slane %v918, 1
  %v920 = vadd.f32 %v918, %v919
  %v921 = vsub.f32 0.0, %v913
  %v922 = vsub.f32 0.0, %v920
  %v923 = vmul.f32 %v921, 1.442695
  %v924 = vpow.pop %v923
  %v925 = vmul.f32 %v922, 1.442695
  %v926 = vpow.pop %v925
  %v927 = vadd.f32 %v924, 1.0
  %v928 = vadd.f32 %v926, 1.0
  %v929 = vrcp.pop %v927
  %v930 = vrcp.pop %v928
  %vm931 = vcmask 0
  %932 = vst.msk [vmem:[%s7] sm:$0x1] %vm931, %v929
  %933 = vst.msk [vmem:[%s7 + $0x1] sm:$0x1] %vm931, %v930
  // Predicated region
  $region30: #{_lambda_.7} parent=0 // pred_check
    _
  $region31: #{_lambda_.7} parent=0 // pred_check_branch
    %935 = sbr.rel (0) target = $region33
  $region32: #{_lambda_.7} parent=0 // pred_region
    _
  $region33: #{_lambda_.7} parent=0 // pred_fallthru
    _
  // Predicated region
  $region34: #{_lambda_.7} parent=0 // pred_check
    _
  $region35: #{_lambda_.7} parent=0 // pred_check_branch
    %937 = sbr.rel (0) target = $region37
  $region36: #{_lambda_.7} parent=0 // pred_region
    _
  $region37: #{_lambda_.7} parent=0 // pred_fallthru
    _

</llo_original>
